<compile_context>
chip_gen: v7x
topology: tpu7x:2x2x1
jax: 0.10.0
libtpu: 0.0.40
codegen_flags: <defaults>
</compile_context>

<pallas_src>
import functools

import jax
import jax.numpy as jnp
from jax.experimental import pallas as pl
from jax.experimental.pallas import tpu as pltpu

VMEM = pltpu.MemorySpace.VMEM
SMEM = pltpu.MemorySpace.SMEM


def _vspec():
    return pl.BlockSpec(memory_space=VMEM)


def _sspec():
    return pl.BlockSpec(memory_space=SMEM)


def _align8(x):
    return ((x + 7) // 8) * 8


def _slab_layout(head_n, seq, k_dim, m_dim):
    """Row offsets of each parameter block inside the packed VMEM slab."""
    hid = m_dim
    offs = {}
    r = 0

    def add(name, rows):
        nonlocal r
        offs[name] = r
        r = _align8(r + rows)

    add('wsd', 2 * head_n)                 # (2H, seq)   [wsT ; wdT]
    add('gcn_wt', seq)                     # (seq, seq)  gcn_w.T
    add('gcn_b', 1)                        # (1, seq)
    add('m0', 2 * seq)                     # (2*seq, seq*4*hid) layer-0 input proj
    add('bias_x', 1)                       # (1, seq*4*hid)    tiled layer-0 bias
    add('lstm_rec', 3 * hid + 1)           # whh0T, wih1T, whh1T, bias1 (width 4*hid)
    add('fc1_big', hid * (seq - 1) + 1)    # block-diag fc1 + bias row (width hid*k)
    add('fc2_big', hid * k_dim + 1)        # block-diag fc2 + bias row (width hid*m)
    add('fc3', 1)                          # (1, k+m+1)
    return offs, r


# ---------------------------------------------------------------------------
# Fused forward kernel
# ---------------------------------------------------------------------------
def pag_fused_kernel(occ_ref, prc_ref, adj_ref, slab_ref, scal_ref, y_ref, *,
                     b, n, seq, head_n, k_dim, m_dim, alpha):
    f32 = jnp.float32
    B = b * n
    hid = m_dim
    gw = 4 * hid
    L, _ = _slab_layout(head_n, seq, k_dim, m_dim)

    # ---- Conv2d(1, 1, (2, 2)) over stacked (occ, prc): (B, seq+1) -> (B, seq)
    o = occ_ref[...]
    p = prc_ref[...]
    data = (scal_ref[0] * o[:, :-1] + scal_ref[1] * p[:, :-1]
            + scal_ref[2] * o[:, 1:] + scal_ref[3] * p[:, 1:] + scal_ref[4])

    # block-diagonal adjacency / mask (mask derived in-kernel, one where)
    adj_bd = adj_ref[...]                                    # (B, B)
    mask_bd = jnp.where(adj_bd == 0.0, -1e9, 0.0).astype(f32)

    wsT = slab_ref[L['wsd']:L['wsd'] + head_n, 0:seq]                 # (H, seq)
    wdT = slab_ref[L['wsd'] + head_n:L['wsd'] + 2 * head_n, 0:seq]    # (H, seq)
    gcn_wt = slab_ref[L['gcn_wt']:L['gcn_wt'] + seq, 0:seq]           # (seq, seq)
    gcn_b = slab_ref[L['gcn_b']:L['gcn_b'] + 1, 0:seq]                # (1, seq)

    # ---- MultiHeadsGATLayer: attention from batch 0, applied to all batches.
    # Produces the (B, B) BLOCK-DIAGONAL attention directly (off-diagonal
    # blocks are -1e9 pre-softmax -> exact zeros), so GCN is one MXU push.
    def gat(x_flat):
        x0 = x_flat[:n, :]                                             # (n, seq)
        srcs = jax.lax.dot_general(x0, wsT, (((1,), (1,)), ((), ())),
                                   preferred_element_type=f32)         # (n, H)
        dsts = jax.lax.dot_general(wdT, x0, (((1,), (1,)), ((), ())),
                                   preferred_element_type=f32)         # (H, n)
        srcs_B = jnp.concatenate([srcs] * b, axis=0)                   # (B, H)
        dsts_B = jnp.concatenate([dsts] * b, axis=1)                   # (H, B)
        mt = jnp.full((B, B), scal_ref[5 + head_n], f32)               # linear bias
        for h in range(head_n):
            e = srcs_B[:, h:h + 1] + dsts_B[h:h + 1, :]                # (B, B)
            e = jnp.where(e > 0, e, 0.2 * e)                           # LeakyReLU(0.2)
            mt = mt + scal_ref[5 + h] * e
        pre = adj_bd * mt + mask_bd
        mx = jnp.max(pre, axis=0, keepdims=True)
        ex = jnp.exp(pre - mx)
        return ex / jnp.sum(ex, axis=0, keepdims=True)                 # (B, B)

    # ---- GCN: LeakyReLU_0.01((A @ X) @ W^T + b), projection hoisted by
    #      associativity; aggregation is a single block-diag matmul.
    def gcn(atts_bd, x_flat):
        proj = jnp.dot(x_flat, gcn_wt, preferred_element_type=f32)     # (B, seq)
        z = jnp.dot(atts_bd, proj, preferred_element_type=f32) + gcn_b
        return jnp.where(z > 0, z, 0.01 * z)

    atts1 = gat(data)
    oc1 = gcn(atts1, data)
    atts2 = gat(oc1)
    oc2 = gcn(atts2, oc1)
    oc1 = (1.0 - alpha) * oc1 + alpha * data
    oc2 = (1.0 - alpha) * oc2 + alpha * oc1
    # TODO(synk): Dropout(p=0.5) is identity here (eval mode only).

    # ---- 2-layer LSTM (input = hidden = m_dim) ----
    # Layer-0 input pre-activations for ALL steps in one MXU push.
    m0 = slab_ref[L['m0']:L['m0'] + 2 * seq, 0:seq * gw]               # (2*seq, seq*gw)
    bias_x = slab_ref[L['bias_x']:L['bias_x'] + 1, 0:seq * gw]
    x2 = jnp.concatenate([oc1, oc2], axis=1)                           # (B, 2*seq)
    pre_x = jnp.dot(x2, m0, preferred_element_type=f32) + bias_x       # (B, seq*gw)

    rec = slab_ref[L['lstm_rec']:L['lstm_rec'] + 3 * hid + 1, 0:gw]
    whh0T = rec[0:hid, :]
    wih1T = rec[hid:2 * hid, :]
    whh1T = rec[2 * hid:3 * hid, :]
    bias1 = rec[3 * hid:3 * hid + 1, :]

    lane = jax.lax.broadcasted_iota(jnp.int32, (B, gw), 1)
    g_cols = (lane >= 2 * hid) & (lane < 3 * hid)

    def gates(pre, c):
        # single full-width tanh; sigmoid(x) == 0.5*(tanh(x/2)+1)
        t = jnp.tanh(jnp.where(g_cols, pre, 0.5 * pre))
        act = jnp.where(g_cols, t, 0.5 * (t + 1.0))
        i_g = act[:, 0:hid]
        f_g = act[:, hid:2 * hid]
        g_g = act[:, 2 * hid:3 * hid]
        o_g = act[:, 3 * hid:4 * hid]
        c = f_g * c + i_g * g_g
        h = o_g * jnp.tanh(c)
        return h, c

    def rec_term(h, wT):                       # h @ W^T via hid broadcast-FMAs
        out = h[:, 0:1] * wT[0:1, :]
        for j in range(1, hid):
            out = out + h[:, j:j + 1] * wT[j:j + 1, :]
        return out

    zeros_h = jnp.zeros((B, hid), f32)
    h0, c0, h1, c1 = zeros_h, zeros_h, zeros_h, zeros_h
    h1_hist = []
    # NOTE: layer-1(t) only depends on h0(t); layer-0(t+1) is independent of it,
    # so the traced DAG already lets the scheduler overlap the two layers.
    for t in range(seq):
        h0, c0 = gates(pre_x[:, t * gw:(t + 1) * gw] + rec_term(h0, whh0T), c0)
        h1, c1 = gates(rec_term(h0, wih1T) + rec_term(h1, whh1T) + bias1, c1)
        if t < seq - 1:
            h1_hist.append(h1)

    ht = h1                                                            # (B, hid)
    hcat = jnp.concatenate(h1_hist, axis=1)                            # (B, hid*(seq-1))

    # fc1 / fc2 for both channels in one push each (block-diag weights).
    nfr = hid * (seq - 1)
    fc1_w_big = slab_ref[L['fc1_big']:L['fc1_big'] + nfr, 0:hid * k_dim]
    fc1_b_big = slab_ref[L['fc1_big'] + nfr:L['fc1_big'] + nfr + 1, 0:hid * k_dim]
    hcc = jnp.dot(hcat, fc1_w_big, preferred_element_type=f32) + fc1_b_big   # (B, hid*k)

    nr2 = hid * k_dim
    fc2_w_big = slab_ref[L['fc2_big']:L['fc2_big'] + nr2, 0:hid * m_dim]
    fc2_b_big = slab_ref[L['fc2_big'] + nr2:L['fc2_big'] + nr2 + 1, 0:hid * m_dim]
    hnn = jnp.dot(hcc, fc2_w_big, preferred_element_type=f32) + fc2_b_big    # (B, hid*m)

    # attention scores (both channels through ONE sigmoid push)
    ips = [jnp.sum(hnn[:, c * m_dim:(c + 1) * m_dim] * ht, axis=1, keepdims=True)
           for c in range(hid)]
    a = jax.nn.sigmoid(jnp.concatenate(ips, axis=1))                   # (B, hid)
    vt = a[:, 0:1] * hcc[:, 0:k_dim]
    for c in range(1, hid):
        vt = vt + a[:, c:c + 1] * hcc[:, c * k_dim:(c + 1) * k_dim]

    fc3 = slab_ref[L['fc3']:L['fc3'] + 1, 0:k_dim + m_dim + 1]
    hx = jnp.concatenate([vt, ht], axis=1)                             # (B, k+m)
    y = (jnp.sum(hx * fc3[0:1, 0:k_dim + m_dim], axis=1, keepdims=True)
         + fc3[0:1, k_dim + m_dim:k_dim + m_dim + 1])
    y_ref[...] = y


# ---------------------------------------------------------------------------
# One-time parameter preparation (hoisted out of the forward)
# ---------------------------------------------------------------------------
def prepare_pag_params(params):
    head_n, seq, _ = params['gat_W'].shape
    k_dim = params['fc1_w'].shape[0]
    m_dim = params['fc2_w'].shape[0]
    hid = m_dim
    gw = 4 * hid
    L, n_rows = _slab_layout(head_n, seq, k_dim, m_dim)
    slab = jnp.zeros((n_rows, 128), jnp.float32)

    def put(name, block):
        nonlocal slab
        r, c = block.shape
        slab = slab.at[L[name]:L[name] + r, 0:c].set(block.astype(jnp.float32))

    # fold the per-head GAT projection into the attention vectors:
    #   a_src . (x @ W_h) == x . (W_h @ a_src)
    asrc = params['gat_a'][:, :seq]
    adst = params['gat_a'][:, seq:]
    wsT = jnp.einsum('hmk,hk->hm', params['gat_W'], asrc)
    wdT = jnp.einsum('hmk,hk->hm', params['gat_W'], adst)
    put('wsd', jnp.concatenate([wsT, wdT], axis=0))

    put('gcn_wt', params['gcn_w'].T)
    put('gcn_b', params['gcn_b'].reshape(1, -1))

    # layer-0 LSTM input projection over all timesteps:
    #   pre_x[:, t*gw+g] = oc1[:,t]*wih0[g,0] + oc2[:,t]*wih0[g,1]
    wih0 = params['wih0']                          # (gw, 2) — LSTM input size is 2
    m0 = jnp.zeros((2 * seq, seq * gw), jnp.float32)
    for t in range(seq):
        m0 = m0.at[t, t * gw:(t + 1) * gw].set(wih0[:, 0])
        m0 = m0.at[seq + t, t * gw:(t + 1) * gw].set(wih0[:, 1])
    put('m0', m0)
    put('bias_x', jnp.tile((params['bih0'] + params['bhh0']).reshape(1, gw), (1, seq)))

    rec = jnp.concatenate([params['whh0'].T, params['wih1'].T, params['whh1'].T,
                           (params['bih1'] + params['bhh1']).reshape(1, gw)], axis=0)
    put('lstm_rec', rec)

    # block-diagonal fc1 acting on lane-interleaved h1 history [h1_t[:,0], h1_t[:,1], ...]
    fc1_big = jnp.zeros((hid * (seq - 1), hid * k_dim), jnp.float32)
    for t in range(seq - 1):
        for c in range(hid):
            fc1_big = fc1_big.at[hid * t + c,
                                 c * k_dim:(c + 1) * k_dim].set(params['fc1_w'][:, t])
    put('fc1_big', jnp.concatenate(
        [fc1_big, jnp.tile(params['fc1_b'].reshape(1, k_dim), (1, hid))], axis=0))

    fc2_big = jnp.zeros((hid * k_dim, hid * m_dim), jnp.float32)
    for c in range(hid):
        fc2_big = fc2_big.at[c * k_dim:(c + 1) * k_dim,
                             c * m_dim:(c + 1) * m_dim].set(params['fc2_w'].T)
    put('fc2_big', jnp.concatenate(
        [fc2_big, jnp.tile(params['fc2_b'].reshape(1, m_dim), (1, hid))], axis=0))

    put('fc3', jnp.concatenate([params['fc3_w'].reshape(1, -1),
                                params['fc3_b'].reshape(1, 1)], axis=1))

    scal = jnp.concatenate([params['conv_w'].reshape(-1),
                            params['conv_b'].reshape(-1),
                            params['lin_w'].reshape(-1),
                            params['lin_b'].reshape(-1)]).astype(jnp.float32)

    meta = dict(head_n=int(head_n), seq=int(seq),
                k_dim=int(k_dim), m_dim=int(m_dim))
    return dict(slab=slab, scal=scal), meta


@functools.partial(jax.jit, static_argnames=('head_n', 'seq', 'k_dim', 'm_dim'))
def pag_forward(occ, prc, prep, adj, *, head_n, seq, k_dim, m_dim):
    b, n, feature = occ.shape
    B = b * n
    adj_bd = jnp.kron(jnp.eye(b, dtype=jnp.float32), adj.astype(jnp.float32))
    kernel = functools.partial(pag_fused_kernel, b=b, n=n, seq=seq,
                               head_n=head_n, k_dim=k_dim, m_dim=m_dim, alpha=0.5)
    y = pl.pallas_call(
        kernel,
        out_shape=jax.ShapeDtypeStruct((B, 1), jnp.float32),
        in_specs=[_vspec(), _vspec(), _vspec(), _vspec(), _sspec()],
        out_specs=_vspec(),
    )(occ.reshape(B, feature).astype(jnp.float32),
      prc.reshape(B, feature).astype(jnp.float32),
      adj_bd, prep['slab'], prep['scal'])
    return y.reshape(b, n)


# ---------------------------------------------------------------------------
# Pure-JAX reference (faithful to the PyTorch module, eval mode)
# ---------------------------------------------------------------------------
def pag_reference(occ, prc, params, adj, mask):
    b, n, s = occ.shape
    B = b * n
    seq = s - 1
    head_n = params['gat_W'].shape[0]
    occ_f = occ.reshape(B, s)
    prc_f = prc.reshape(B, s)
    w = params['conv_w']
    data_f = (w[0, 0] * occ_f[:, :-1] + w[0, 1] * prc_f[:, :-1]
              + w[1, 0] * occ_f[:, 1:] + w[1, 1] * prc_f[:, 1:]
              + params['conv_b'][0])
    data = data_f.reshape(b, n, seq)

    asrc = params['gat_a'][:, :seq]
    adst = params['gat_a'][:, seq:]

    def gat(x):
        xf = x.reshape(b * n, seq)[:n]
        mt = jnp.zeros((n, n), jnp.float32)
        for h in range(head_n):
            H = xf @ params['gat_W'][h]
            src = H @ asrc[h]
            dst = H @ adst[h]
            e = src[:, None] + dst[None, :]
            e = jnp.where(e > 0, e, 0.2 * e)
            mt = mt + params['lin_w'][h] * e
        mt = mt + params['lin_b'][0]
        pre = adj * mt + mask
        pre = pre - jnp.max(pre, axis=0, keepdims=True)
        ex = jnp.exp(pre)
        return ex / jnp.sum(ex, axis=0, keepdims=True)

    def gcn(atts, x):
        agg = jnp.einsum('ij,bjt->bit', atts, x)
        z = agg @ params['gcn_w'].T + params['gcn_b']
        return jnp.where(z > 0, z, 0.01 * z)

    atts1 = gat(data)
    oc1 = gcn(atts1, data)
    atts2 = gat(oc1)
    oc2 = gcn(atts2, oc1)
    oc1 = 0.5 * oc1 + 0.5 * data
    oc2 = 0.5 * oc2 + 0.5 * oc1
    xa = oc1.reshape(B, seq)
    xb = oc2.reshape(B, seq)

    def lstm_cell(x_t, h, c, wih, whh, bih, bhh):
        pre = x_t @ wih.T + h @ whh.T + bih + bhh
        i = jax.nn.sigmoid(pre[:, 0:2])
        f = jax.nn.sigmoid(pre[:, 2:4])
        g = jnp.tanh(pre[:, 4:6])
        o = jax.nn.sigmoid(pre[:, 6:8])
        c = f * c + i * g
        h = o * jnp.tanh(c)
        return h, c

    h0 = c0 = h1 = c1 = jnp.zeros((B, 2), jnp.float32)
    outs = []
    for t in range(seq):
        x_t = jnp.stack([xa[:, t], xb[:, t]], axis=1)
        h0, c0 = lstm_cell(x_t, h0, c0, params['wih0'], params['whh0'],
                           params['bih0'], params['bhh0'])
        h1, c1 = lstm_cell(h0, h1, c1, params['wih1'], params['whh1'],
                           params['bih1'], params['bhh1'])
        outs.append(h1)
    lstm_out = jnp.stack(outs, axis=1)                     # (B, seq, 2)
    ht = lstm_out[:, -1, :]
    hw = jnp.transpose(lstm_out[:, :-1, :], (0, 2, 1))     # (B, 2, seq-1)
    Hc = hw @ params['fc1_w'].T + params['fc1_b']          # (B, 2, k)
    Hn = Hc @ params['fc2_w'].T + params['fc2_b']          # (B, 2, m)
    a = jax.nn.sigmoid(jnp.einsum('bcm,bm->bc', Hn, ht))   # (B, 2)
    vt = jnp.einsum('bc,bck->bk', a, Hc)                   # (B, k)
    hx = jnp.concatenate([vt, ht], axis=1)
    y = hx @ params['fc3_w'].T + params['fc3_b']
    return y.reshape(b, n)


if __name__ == "__main__":
    key = jax.random.PRNGKey(0)
    b, n, feature = 2, 8, 12           # batch, nodes, seq(=12)
    seq = feature - 2 + 1              # 11
    k_dim, m_dim, head_n = 6, 2, 4

    # deterministic adjacency: self loops + ring neighbours, values = 1.0
    idx = jnp.arange(n)
    adj = jnp.zeros((n, n), jnp.float32)
    adj = adj.at[idx, idx].set(1.0)
    adj = adj.at[idx, (idx + 1) % n].set(1.0)
    adj = adj.at[idx, (idx - 1) % n].set(1.0)
    mask = jnp.where(adj == 1.0, 0.0, -1e9).astype(jnp.float32)

    keys = jax.random.split(key, 24)

    def init(kk, shape, scale=0.3):
        return (scale * jax.random.normal(kk, shape)).astype(jnp.float32)

    params = dict(
        conv_w=init(keys[0], (2, 2)),
        conv_b=init(keys[1], (1,)),
        gat_W=init(keys[2], (head_n, seq, seq)),
        gat_a=init(keys[3], (head_n, 2 * seq)),
        lin_w=init(keys[4], (head_n,)),
        lin_b=init(keys[5], (1,)),
        gcn_w=init(keys[6], (seq, seq)),
        gcn_b=init(keys[7], (seq,)),
        wih0=init(keys[8], (4 * m_dim, m_dim)),
        whh0=init(keys[9], (4 * m_dim, m_dim)),
        bih0=init(keys[10], (4 * m_dim,)),
        bhh0=init(keys[11], (4 * m_dim,)),
        wih1=init(keys[12], (4 * m_dim, m_dim)),
        whh1=init(keys[13], (4 * m_dim, m_dim)),
        bih1=init(keys[14], (4 * m_dim,)),
        bhh1=init(keys[15], (4 * m_dim,)),
        fc1_w=init(keys[16], (k_dim, seq - 1)),
        fc1_b=init(keys[17], (k_dim,)),
        fc2_w=init(keys[18], (m_dim, k_dim)),
        fc2_b=init(keys[19], (m_dim,)),
        fc3_w=init(keys[20], (1, k_dim + m_dim)),
        fc3_b=init(keys[21], (1,)),
    )

    occ = jax.random.uniform(keys[22], (b, n, feature), dtype=jnp.float32)
    prc = jax.random.uniform(keys[23], (b, n, feature), dtype=jnp.float32)

    prep, meta = prepare_pag_params(params)
    y = pag_forward(occ, prc, prep, adj, **meta)
    jax.block_until_ready(y)
    assert y.shape == (b, n) and y.dtype == jnp.float32
    assert bool(jnp.all(jnp.isfinite(y)))

    # sanity check against a pure-JAX reference (loose tol: algebraic
    # refactors + TPU matmul precision modes)
    with jax.default_matmul_precision("highest"):
        y_ref = pag_reference(occ, prc, params, adj, mask)
    err = float(jnp.max(jnp.abs(y - y_ref)))
    assert err < 5e-2, f"mismatch vs pure-JAX reference: {err}"

    print("KERNEL_OK")
</pallas_src>

<mosaic_0001>
module attributes {stable_mosaic.version = 11 : i64} {
  func.func @pag_fused_kernel(%arg0: memref<16x12xf32, #tpu.memory_space<vmem>>, %arg1: memref<16x12xf32, #tpu.memory_space<vmem>>, %arg2: memref<16x16xf32, #tpu.memory_space<vmem>>, %arg3: memref<120x128xf32, #tpu.memory_space<vmem>>, %arg4: memref<10xf32, #tpu.memory_space<smem>>, %arg5: memref<16x1xf32, #tpu.memory_space<vmem>>) attributes {dimension_semantics = [], scalar_prefetch = 0 : i64, scratch_operands = 0 : i64, tpu.core_type = #tpu.core_type<tc>} {
    %c0 = arith.constant 0 : index
    %c0_0 = arith.constant 0 : index
    %0 = vector.load %arg0[%c0, %c0_0] : memref<16x12xf32, #tpu.memory_space<vmem>>, vector<16x12xf32>
    %c0_1 = arith.constant 0 : index
    %c0_2 = arith.constant 0 : index
    %1 = vector.load %arg1[%c0_1, %c0_2] : memref<16x12xf32, #tpu.memory_space<vmem>>, vector<16x12xf32>
    %c0_3 = arith.constant 0 : index
    %2 = memref.load %arg4[%c0_3] : memref<10xf32, #tpu.memory_space<smem>>
    %3 = vector.extract_strided_slice %0 {offsets = [0, 0], sizes = [16, 11], strides = [1, 1]} : vector<16x12xf32> to vector<16x11xf32>
    %4 = vector.broadcast %2 : f32 to vector<16x11xf32>
    %5 = arith.mulf %4, %3 : vector<16x11xf32>
    %c1 = arith.constant 1 : index
    %6 = memref.load %arg4[%c1] : memref<10xf32, #tpu.memory_space<smem>>
    %7 = vector.extract_strided_slice %1 {offsets = [0, 0], sizes = [16, 11], strides = [1, 1]} : vector<16x12xf32> to vector<16x11xf32>
    %8 = vector.broadcast %6 : f32 to vector<16x11xf32>
    %9 = arith.mulf %8, %7 : vector<16x11xf32>
    %10 = arith.addf %5, %9 : vector<16x11xf32>
    %c2 = arith.constant 2 : index
    %11 = memref.load %arg4[%c2] : memref<10xf32, #tpu.memory_space<smem>>
    %12 = vector.extract_strided_slice %0 {offsets = [0, 1], sizes = [16, 11], strides = [1, 1]} : vector<16x12xf32> to vector<16x11xf32>
    %13 = vector.broadcast %11 : f32 to vector<16x11xf32>
    %14 = arith.mulf %13, %12 : vector<16x11xf32>
    %15 = arith.addf %10, %14 : vector<16x11xf32>
    %c3 = arith.constant 3 : index
    %16 = memref.load %arg4[%c3] : memref<10xf32, #tpu.memory_space<smem>>
    %17 = vector.extract_strided_slice %1 {offsets = [0, 1], sizes = [16, 11], strides = [1, 1]} : vector<16x12xf32> to vector<16x11xf32>
    %18 = vector.broadcast %16 : f32 to vector<16x11xf32>
    %19 = arith.mulf %18, %17 : vector<16x11xf32>
    %20 = arith.addf %15, %19 : vector<16x11xf32>
    %c4 = arith.constant 4 : index
    %21 = memref.load %arg4[%c4] : memref<10xf32, #tpu.memory_space<smem>>
    %22 = vector.broadcast %21 : f32 to vector<16x11xf32>
    %23 = arith.addf %20, %22 : vector<16x11xf32>
    %c0_4 = arith.constant 0 : index
    %c0_5 = arith.constant 0 : index
    %24 = vector.load %arg2[%c0_4, %c0_5] : memref<16x16xf32, #tpu.memory_space<vmem>>, vector<16x16xf32>
    %cst = arith.constant 0.000000e+00 : f32
    %25 = vector.broadcast %cst : f32 to vector<16x16xf32>
    %26 = arith.cmpf oeq, %24, %25 : vector<16x16xf32>
    %cst_6 = arith.constant -1.000000e+09 : f32
    %cst_7 = arith.constant 0.000000e+00 : f32
    %27 = vector.broadcast %cst_6 : f32 to vector<16x16xf32>
    %28 = vector.broadcast %cst_7 : f32 to vector<16x16xf32>
    %29 = arith.select %26, %27, %28 : vector<16x16xi1>, vector<16x16xf32>
    %c0_8 = arith.constant 0 : index
    %c0_9 = arith.constant 0 : index
    %30 = vector.load %arg3[%c0_8, %c0_9] : memref<120x128xf32, #tpu.memory_space<vmem>>, vector<4x11xf32>
    %c4_10 = arith.constant 4 : index
    %c0_11 = arith.constant 0 : index
    %31 = vector.load %arg3[%c4_10, %c0_11] : memref<120x128xf32, #tpu.memory_space<vmem>>, vector<4x11xf32>
    %c8 = arith.constant 8 : index
    %c0_12 = arith.constant 0 : index
    %32 = vector.load %arg3[%c8, %c0_12] : memref<120x128xf32, #tpu.memory_space<vmem>>, vector<11x11xf32>
    %c24 = arith.constant 24 : index
    %c0_13 = arith.constant 0 : index
    %33 = vector.load %arg3[%c24, %c0_13] : memref<120x128xf32, #tpu.memory_space<vmem>>, vector<1x11xf32>
    %34 = vector.extract_strided_slice %23 {offsets = [0, 0], sizes = [8, 11], strides = [1, 1]} : vector<16x11xf32> to vector<8x11xf32>
    %cst_14 = arith.constant dense<0.000000e+00> : vector<8x4xf32>
    %35 = tpu.matmul %34, %30, %cst_14 {dimension_numbers = #tpu.dot_dimension_numbers<[1], [1], [0], [0], [0, 0, 1, 0], [], []>} : vector<8x11xf32>, vector<4x11xf32>, vector<8x4xf32> -> vector<8x4xf32>
    %cst_15 = arith.constant dense<0.000000e+00> : vector<4x8xf32>
    %36 = tpu.matmul %31, %34, %cst_15 {dimension_numbers = #tpu.dot_dimension_numbers<[1], [1], [0], [0], [0, 0, 1, 0], [], []>} : vector<4x11xf32>, vector<8x11xf32>, vector<4x8xf32> -> vector<4x8xf32>
    %37 = tpu.concatenate %35, %35 in 0 : vector<8x4xf32>, vector<8x4xf32> -> vector<16x4xf32>
    %38 = tpu.concatenate %36, %36 in 1 : vector<4x8xf32>, vector<4x8xf32> -> vector<4x16xf32>
    %c9 = arith.constant 9 : index
    %39 = memref.load %arg4[%c9] : memref<10xf32, #tpu.memory_space<smem>>
    %40 = vector.broadcast %39 : f32 to vector<16x16xf32>
    %41 = vector.extract_strided_slice %37 {offsets = [0, 0], sizes = [16, 1], strides = [1, 1]} : vector<16x4xf32> to vector<16x1xf32>
    %42 = vector.extract_strided_slice %38 {offsets = [0, 0], sizes = [1, 16], strides = [1, 1]} : vector<4x16xf32> to vector<1x16xf32>
    %43 = vector.broadcast %41 : vector<16x1xf32> to vector<16x16xf32>
    %44 = vector.broadcast %42 : vector<1x16xf32> to vector<16x16xf32>
    %45 = arith.addf %43, %44 : vector<16x16xf32>
    %cst_16 = arith.constant 0.000000e+00 : f32
    %46 = vector.broadcast %cst_16 : f32 to vector<16x16xf32>
    %47 = arith.cmpf ogt, %45, %46 : vector<16x16xf32>
    %cst_17 = arith.constant 2.000000e-01 : f32
    %48 = vector.broadcast %cst_17 : f32 to vector<16x16xf32>
    %49 = arith.mulf %48, %45 : vector<16x16xf32>
    %50 = arith.select %47, %45, %49 : vector<16x16xi1>, vector<16x16xf32>
    %c5 = arith.constant 5 : index
    %51 = memref.load %arg4[%c5] : memref<10xf32, #tpu.memory_space<smem>>
    %52 = vector.broadcast %51 : f32 to vector<16x16xf32>
    %53 = arith.mulf %52, %50 : vector<16x16xf32>
    %54 = arith.addf %40, %53 : vector<16x16xf32>
    %55 = vector.extract_strided_slice %37 {offsets = [0, 1], sizes = [16, 1], strides = [1, 1]} : vector<16x4xf32> to vector<16x1xf32>
    %56 = vector.extract_strided_slice %38 {offsets = [1, 0], sizes = [1, 16], strides = [1, 1]} : vector<4x16xf32> to vector<1x16xf32>
    %57 = vector.broadcast %55 : vector<16x1xf32> to vector<16x16xf32>
    %58 = vector.broadcast %56 : vector<1x16xf32> to vector<16x16xf32>
    %59 = arith.addf %57, %58 : vector<16x16xf32>
    %cst_18 = arith.constant 0.000000e+00 : f32
    %60 = vector.broadcast %cst_18 : f32 to vector<16x16xf32>
    %61 = arith.cmpf ogt, %59, %60 : vector<16x16xf32>
    %cst_19 = arith.constant 2.000000e-01 : f32
    %62 = vector.broadcast %cst_19 : f32 to vector<16x16xf32>
    %63 = arith.mulf %62, %59 : vector<16x16xf32>
    %64 = arith.select %61, %59, %63 : vector<16x16xi1>, vector<16x16xf32>
    %c6 = arith.constant 6 : index
    %65 = memref.load %arg4[%c6] : memref<10xf32, #tpu.memory_space<smem>>
    %66 = vector.broadcast %65 : f32 to vector<16x16xf32>
    %67 = arith.mulf %66, %64 : vector<16x16xf32>
    %68 = arith.addf %54, %67 : vector<16x16xf32>
    %69 = vector.extract_strided_slice %37 {offsets = [0, 2], sizes = [16, 1], strides = [1, 1]} : vector<16x4xf32> to vector<16x1xf32>
    %70 = vector.extract_strided_slice %38 {offsets = [2, 0], sizes = [1, 16], strides = [1, 1]} : vector<4x16xf32> to vector<1x16xf32>
    %71 = vector.broadcast %69 : vector<16x1xf32> to vector<16x16xf32>
    %72 = vector.broadcast %70 : vector<1x16xf32> to vector<16x16xf32>
    %73 = arith.addf %71, %72 : vector<16x16xf32>
    %cst_20 = arith.constant 0.000000e+00 : f32
    %74 = vector.broadcast %cst_20 : f32 to vector<16x16xf32>
    %75 = arith.cmpf ogt, %73, %74 : vector<16x16xf32>
    %cst_21 = arith.constant 2.000000e-01 : f32
    %76 = vector.broadcast %cst_21 : f32 to vector<16x16xf32>
    %77 = arith.mulf %76, %73 : vector<16x16xf32>
    %78 = arith.select %75, %73, %77 : vector<16x16xi1>, vector<16x16xf32>
    %c7 = arith.constant 7 : index
    %79 = memref.load %arg4[%c7] : memref<10xf32, #tpu.memory_space<smem>>
    %80 = vector.broadcast %79 : f32 to vector<16x16xf32>
    %81 = arith.mulf %80, %78 : vector<16x16xf32>
    %82 = arith.addf %68, %81 : vector<16x16xf32>
    %83 = vector.extract_strided_slice %37 {offsets = [0, 3], sizes = [16, 1], strides = [1, 1]} : vector<16x4xf32> to vector<16x1xf32>
    %84 = vector.extract_strided_slice %38 {offsets = [3, 0], sizes = [1, 16], strides = [1, 1]} : vector<4x16xf32> to vector<1x16xf32>
    %85 = vector.broadcast %83 : vector<16x1xf32> to vector<16x16xf32>
    %86 = vector.broadcast %84 : vector<1x16xf32> to vector<16x16xf32>
    %87 = arith.addf %85, %86 : vector<16x16xf32>
    %cst_22 = arith.constant 0.000000e+00 : f32
    %88 = vector.broadcast %cst_22 : f32 to vector<16x16xf32>
    %89 = arith.cmpf ogt, %87, %88 : vector<16x16xf32>
    %cst_23 = arith.constant 2.000000e-01 : f32
    %90 = vector.broadcast %cst_23 : f32 to vector<16x16xf32>
    %91 = arith.mulf %90, %87 : vector<16x16xf32>
    %92 = arith.select %89, %87, %91 : vector<16x16xi1>, vector<16x16xf32>
    %c8_24 = arith.constant 8 : index
    %93 = memref.load %arg4[%c8_24] : memref<10xf32, #tpu.memory_space<smem>>
    %94 = vector.broadcast %93 : f32 to vector<16x16xf32>
    %95 = arith.mulf %94, %92 : vector<16x16xf32>
    %96 = arith.addf %82, %95 : vector<16x16xf32>
    %97 = arith.mulf %24, %96 : vector<16x16xf32>
    %98 = arith.addf %97, %29 : vector<16x16xf32>
    %cst_25 = arith.constant dense<0xFF800000> : vector<16xf32>
    %99 = vector.multi_reduction <maximumf>, %98, %cst_25 [0] : vector<16x16xf32> to vector<16xf32>
    %100 = vector.shape_cast %99 : vector<16xf32> to vector<1x16xf32>
    %101 = vector.broadcast %100 : vector<1x16xf32> to vector<16x16xf32>
    %102 = arith.subf %98, %101 : vector<16x16xf32>
    %103 = math.exp %102 : vector<16x16xf32>
    %cst_26 = arith.constant dense<0.000000e+00> : vector<16xf32>
    %104 = vector.multi_reduction <add>, %103, %cst_26 [0] : vector<16x16xf32> to vector<16xf32>
    %105 = vector.shape_cast %104 : vector<16xf32> to vector<1x16xf32>
    %106 = vector.broadcast %105 : vector<1x16xf32> to vector<16x16xf32>
    %107 = arith.divf %103, %106 : vector<16x16xf32>
    %cst_27 = arith.constant dense<0.000000e+00> : vector<16x11xf32>
    %108 = tpu.matmul %23, %32, %cst_27 {dimension_numbers = #tpu.dot_dimension_numbers<[1], [0], [0], [1], [0, 0, 1, 1], [], []>} : vector<16x11xf32>, vector<11x11xf32>, vector<16x11xf32> -> vector<16x11xf32>
    %cst_28 = arith.constant dense<0.000000e+00> : vector<16x11xf32>
    %109 = tpu.matmul %107, %108, %cst_28 {dimension_numbers = #tpu.dot_dimension_numbers<[1], [0], [0], [1], [0, 0, 1, 1], [], []>} : vector<16x16xf32>, vector<16x11xf32>, vector<16x11xf32> -> vector<16x11xf32>
    %110 = vector.broadcast %33 : vector<1x11xf32> to vector<16x11xf32>
    %111 = arith.addf %109, %110 : vector<16x11xf32>
    %cst_29 = arith.constant 0.000000e+00 : f32
    %112 = vector.broadcast %cst_29 : f32 to vector<16x11xf32>
    %113 = arith.cmpf ogt, %111, %112 : vector<16x11xf32>
    %cst_30 = arith.constant 0.00999999977 : f32
    %114 = vector.broadcast %cst_30 : f32 to vector<16x11xf32>
    %115 = arith.mulf %114, %111 : vector<16x11xf32>
    %116 = arith.select %113, %111, %115 : vector<16x11xi1>, vector<16x11xf32>
    %117 = vector.extract_strided_slice %116 {offsets = [0, 0], sizes = [8, 11], strides = [1, 1]} : vector<16x11xf32> to vector<8x11xf32>
    %cst_31 = arith.constant dense<0.000000e+00> : vector<8x4xf32>
    %118 = tpu.matmul %117, %30, %cst_31 {dimension_numbers = #tpu.dot_dimension_numbers<[1], [1], [0], [0], [0, 0, 1, 0], [], []>} : vector<8x11xf32>, vector<4x11xf32>, vector<8x4xf32> -> vector<8x4xf32>
    %cst_32 = arith.constant dense<0.000000e+00> : vector<4x8xf32>
    %119 = tpu.matmul %31, %117, %cst_32 {dimension_numbers = #tpu.dot_dimension_numbers<[1], [1], [0], [0], [0, 0, 1, 0], [], []>} : vector<4x11xf32>, vector<8x11xf32>, vector<4x8xf32> -> vector<4x8xf32>
    %120 = tpu.concatenate %118, %118 in 0 : vector<8x4xf32>, vector<8x4xf32> -> vector<16x4xf32>
    %121 = tpu.concatenate %119, %119 in 1 : vector<4x8xf32>, vector<4x8xf32> -> vector<4x16xf32>
    %c9_33 = arith.constant 9 : index
    %122 = memref.load %arg4[%c9_33] : memref<10xf32, #tpu.memory_space<smem>>
    %123 = vector.broadcast %122 : f32 to vector<16x16xf32>
    %124 = vector.extract_strided_slice %120 {offsets = [0, 0], sizes = [16, 1], strides = [1, 1]} : vector<16x4xf32> to vector<16x1xf32>
    %125 = vector.extract_strided_slice %121 {offsets = [0, 0], sizes = [1, 16], strides = [1, 1]} : vector<4x16xf32> to vector<1x16xf32>
    %126 = vector.broadcast %124 : vector<16x1xf32> to vector<16x16xf32>
    %127 = vector.broadcast %125 : vector<1x16xf32> to vector<16x16xf32>
    %128 = arith.addf %126, %127 : vector<16x16xf32>
    %cst_34 = arith.constant 0.000000e+00 : f32
    %129 = vector.broadcast %cst_34 : f32 to vector<16x16xf32>
    %130 = arith.cmpf ogt, %128, %129 : vector<16x16xf32>
    %cst_35 = arith.constant 2.000000e-01 : f32
    %131 = vector.broadcast %cst_35 : f32 to vector<16x16xf32>
    %132 = arith.mulf %131, %128 : vector<16x16xf32>
    %133 = arith.select %130, %128, %132 : vector<16x16xi1>, vector<16x16xf32>
    %c5_36 = arith.constant 5 : index
    %134 = memref.load %arg4[%c5_36] : memref<10xf32, #tpu.memory_space<smem>>
    %135 = vector.broadcast %134 : f32 to vector<16x16xf32>
    %136 = arith.mulf %135, %133 : vector<16x16xf32>
    %137 = arith.addf %123, %136 : vector<16x16xf32>
    %138 = vector.extract_strided_slice %120 {offsets = [0, 1], sizes = [16, 1], strides = [1, 1]} : vector<16x4xf32> to vector<16x1xf32>
    %139 = vector.extract_strided_slice %121 {offsets = [1, 0], sizes = [1, 16], strides = [1, 1]} : vector<4x16xf32> to vector<1x16xf32>
    %140 = vector.broadcast %138 : vector<16x1xf32> to vector<16x16xf32>
    %141 = vector.broadcast %139 : vector<1x16xf32> to vector<16x16xf32>
    %142 = arith.addf %140, %141 : vector<16x16xf32>
    %cst_37 = arith.constant 0.000000e+00 : f32
    %143 = vector.broadcast %cst_37 : f32 to vector<16x16xf32>
    %144 = arith.cmpf ogt, %142, %143 : vector<16x16xf32>
    %cst_38 = arith.constant 2.000000e-01 : f32
    %145 = vector.broadcast %cst_38 : f32 to vector<16x16xf32>
    %146 = arith.mulf %145, %142 : vector<16x16xf32>
    %147 = arith.select %144, %142, %146 : vector<16x16xi1>, vector<16x16xf32>
    %c6_39 = arith.constant 6 : index
    %148 = memref.load %arg4[%c6_39] : memref<10xf32, #tpu.memory_space<smem>>
    %149 = vector.broadcast %148 : f32 to vector<16x16xf32>
    %150 = arith.mulf %149, %147 : vector<16x16xf32>
    %151 = arith.addf %137, %150 : vector<16x16xf32>
    %152 = vector.extract_strided_slice %120 {offsets = [0, 2], sizes = [16, 1], strides = [1, 1]} : vector<16x4xf32> to vector<16x1xf32>
    %153 = vector.extract_strided_slice %121 {offsets = [2, 0], sizes = [1, 16], strides = [1, 1]} : vector<4x16xf32> to vector<1x16xf32>
    %154 = vector.broadcast %152 : vector<16x1xf32> to vector<16x16xf32>
    %155 = vector.broadcast %153 : vector<1x16xf32> to vector<16x16xf32>
    %156 = arith.addf %154, %155 : vector<16x16xf32>
    %cst_40 = arith.constant 0.000000e+00 : f32
    %157 = vector.broadcast %cst_40 : f32 to vector<16x16xf32>
    %158 = arith.cmpf ogt, %156, %157 : vector<16x16xf32>
    %cst_41 = arith.constant 2.000000e-01 : f32
    %159 = vector.broadcast %cst_41 : f32 to vector<16x16xf32>
    %160 = arith.mulf %159, %156 : vector<16x16xf32>
    %161 = arith.select %158, %156, %160 : vector<16x16xi1>, vector<16x16xf32>
    %c7_42 = arith.constant 7 : index
    %162 = memref.load %arg4[%c7_42] : memref<10xf32, #tpu.memory_space<smem>>
    %163 = vector.broadcast %162 : f32 to vector<16x16xf32>
    %164 = arith.mulf %163, %161 : vector<16x16xf32>
    %165 = arith.addf %151, %164 : vector<16x16xf32>
    %166 = vector.extract_strided_slice %120 {offsets = [0, 3], sizes = [16, 1], strides = [1, 1]} : vector<16x4xf32> to vector<16x1xf32>
    %167 = vector.extract_strided_slice %121 {offsets = [3, 0], sizes = [1, 16], strides = [1, 1]} : vector<4x16xf32> to vector<1x16xf32>
    %168 = vector.broadcast %166 : vector<16x1xf32> to vector<16x16xf32>
    %169 = vector.broadcast %167 : vector<1x16xf32> to vector<16x16xf32>
    %170 = arith.addf %168, %169 : vector<16x16xf32>
    %cst_43 = arith.constant 0.000000e+00 : f32
    %171 = vector.broadcast %cst_43 : f32 to vector<16x16xf32>
    %172 = arith.cmpf ogt, %170, %171 : vector<16x16xf32>
    %cst_44 = arith.constant 2.000000e-01 : f32
    %173 = vector.broadcast %cst_44 : f32 to vector<16x16xf32>
    %174 = arith.mulf %173, %170 : vector<16x16xf32>
    %175 = arith.select %172, %170, %174 : vector<16x16xi1>, vector<16x16xf32>
    %c8_45 = arith.constant 8 : index
    %176 = memref.load %arg4[%c8_45] : memref<10xf32, #tpu.memory_space<smem>>
    %177 = vector.broadcast %176 : f32 to vector<16x16xf32>
    %178 = arith.mulf %177, %175 : vector<16x16xf32>
    %179 = arith.addf %165, %178 : vector<16x16xf32>
    %180 = arith.mulf %24, %179 : vector<16x16xf32>
    %181 = arith.addf %180, %29 : vector<16x16xf32>
    %cst_46 = arith.constant dense<0xFF800000> : vector<16xf32>
    %182 = vector.multi_reduction <maximumf>, %181, %cst_46 [0] : vector<16x16xf32> to vector<16xf32>
    %183 = vector.shape_cast %182 : vector<16xf32> to vector<1x16xf32>
    %184 = vector.broadcast %183 : vector<1x16xf32> to vector<16x16xf32>
    %185 = arith.subf %181, %184 : vector<16x16xf32>
    %186 = math.exp %185 : vector<16x16xf32>
    %cst_47 = arith.constant dense<0.000000e+00> : vector<16xf32>
    %187 = vector.multi_reduction <add>, %186, %cst_47 [0] : vector<16x16xf32> to vector<16xf32>
    %188 = vector.shape_cast %187 : vector<16xf32> to vector<1x16xf32>
    %189 = vector.broadcast %188 : vector<1x16xf32> to vector<16x16xf32>
    %190 = arith.divf %186, %189 : vector<16x16xf32>
    %cst_48 = arith.constant dense<0.000000e+00> : vector<16x11xf32>
    %191 = tpu.matmul %116, %32, %cst_48 {dimension_numbers = #tpu.dot_dimension_numbers<[1], [0], [0], [1], [0, 0, 1, 1], [], []>} : vector<16x11xf32>, vector<11x11xf32>, vector<16x11xf32> -> vector<16x11xf32>
    %cst_49 = arith.constant dense<0.000000e+00> : vector<16x11xf32>
    %192 = tpu.matmul %190, %191, %cst_49 {dimension_numbers = #tpu.dot_dimension_numbers<[1], [0], [0], [1], [0, 0, 1, 1], [], []>} : vector<16x16xf32>, vector<16x11xf32>, vector<16x11xf32> -> vector<16x11xf32>
    %193 = vector.broadcast %33 : vector<1x11xf32> to vector<16x11xf32>
    %194 = arith.addf %192, %193 : vector<16x11xf32>
    %cst_50 = arith.constant 0.000000e+00 : f32
    %195 = vector.broadcast %cst_50 : f32 to vector<16x11xf32>
    %196 = arith.cmpf ogt, %194, %195 : vector<16x11xf32>
    %cst_51 = arith.constant 0.00999999977 : f32
    %197 = vector.broadcast %cst_51 : f32 to vector<16x11xf32>
    %198 = arith.mulf %197, %194 : vector<16x11xf32>
    %199 = arith.select %196, %194, %198 : vector<16x11xi1>, vector<16x11xf32>
    %cst_52 = arith.constant 5.000000e-01 : f32
    %200 = vector.broadcast %cst_52 : f32 to vector<16x11xf32>
    %201 = arith.mulf %200, %116 : vector<16x11xf32>
    %cst_53 = arith.constant 5.000000e-01 : f32
    %202 = vector.broadcast %cst_53 : f32 to vector<16x11xf32>
    %203 = arith.mulf %202, %23 : vector<16x11xf32>
    %204 = arith.addf %201, %203 : vector<16x11xf32>
    %cst_54 = arith.constant 5.000000e-01 : f32
    %205 = vector.broadcast %cst_54 : f32 to vector<16x11xf32>
    %206 = arith.mulf %205, %199 : vector<16x11xf32>
    %cst_55 = arith.constant 5.000000e-01 : f32
    %207 = vector.broadcast %cst_55 : f32 to vector<16x11xf32>
    %208 = arith.mulf %207, %204 : vector<16x11xf32>
    %209 = arith.addf %206, %208 : vector<16x11xf32>
    %c32 = arith.constant 32 : index
    %c0_56 = arith.constant 0 : index
    %210 = vector.load %arg3[%c32, %c0_56] : memref<120x128xf32, #tpu.memory_space<vmem>>, vector<22x88xf32>
    %c56 = arith.constant 56 : index
    %c0_57 = arith.constant 0 : index
    %211 = vector.load %arg3[%c56, %c0_57] : memref<120x128xf32, #tpu.memory_space<vmem>>, vector<1x88xf32>
    %212 = tpu.concatenate %204, %209 in 1 : vector<16x11xf32>, vector<16x11xf32> -> vector<16x22xf32>
    %cst_58 = arith.constant dense<0.000000e+00> : vector<16x88xf32>
    %213 = tpu.matmul %212, %210, %cst_58 {dimension_numbers = #tpu.dot_dimension_numbers<[1], [0], [0], [1], [0, 0, 1, 1], [], []>} : vector<16x22xf32>, vector<22x88xf32>, vector<16x88xf32> -> vector<16x88xf32>
    %214 = vector.broadcast %211 : vector<1x88xf32> to vector<16x88xf32>
    %215 = arith.addf %213, %214 : vector<16x88xf32>
    %c64 = arith.constant 64 : index
    %c0_59 = arith.constant 0 : index
    %216 = vector.load %arg3[%c64, %c0_59] : memref<120x128xf32, #tpu.memory_space<vmem>>, vector<7x8xf32>
    %217 = vector.extract_strided_slice %216 {offsets = [0, 0], sizes = [2, 8], strides = [1, 1]} : vector<7x8xf32> to vector<2x8xf32>
    %218 = vector.extract_strided_slice %216 {offsets = [2, 0], sizes = [2, 8], strides = [1, 1]} : vector<7x8xf32> to vector<2x8xf32>
    %219 = vector.extract_strided_slice %216 {offsets = [4, 0], sizes = [2, 8], strides = [1, 1]} : vector<7x8xf32> to vector<2x8xf32>
    %220 = vector.extract_strided_slice %216 {offsets = [6, 0], sizes = [1, 8], strides = [1, 1]} : vector<7x8xf32> to vector<1x8xf32>
    %221 = tpu.iota {dimensions = array<i32: 1>} : vector<16x8xi32>
    %c4_i32 = arith.constant 4 : i32
    %222 = vector.broadcast %c4_i32 : i32 to vector<16x8xi32>
    %223 = arith.cmpi sge, %221, %222 : vector<16x8xi32>
    %c6_i32 = arith.constant 6 : i32
    %224 = vector.broadcast %c6_i32 : i32 to vector<16x8xi32>
    %225 = arith.cmpi slt, %221, %224 : vector<16x8xi32>
    %226 = arith.andi %223, %225 : vector<16x8xi1>
    %cst_60 = arith.constant 0.000000e+00 : f32
    %227 = vector.broadcast %cst_60 : f32 to vector<16x2xf32>
    %228 = vector.extract_strided_slice %215 {offsets = [0, 0], sizes = [16, 8], strides = [1, 1]} : vector<16x88xf32> to vector<16x8xf32>
    %229 = vector.extract_strided_slice %227 {offsets = [0, 0], sizes = [16, 1], strides = [1, 1]} : vector<16x2xf32> to vector<16x1xf32>
    %230 = vector.extract_strided_slice %217 {offsets = [0, 0], sizes = [1, 8], strides = [1, 1]} : vector<2x8xf32> to vector<1x8xf32>
    %231 = vector.broadcast %229 : vector<16x1xf32> to vector<16x8xf32>
    %232 = vector.broadcast %230 : vector<1x8xf32> to vector<16x8xf32>
    %233 = arith.mulf %231, %232 : vector<16x8xf32>
    %234 = vector.extract_strided_slice %227 {offsets = [0, 1], sizes = [16, 1], strides = [1, 1]} : vector<16x2xf32> to vector<16x1xf32>
    %235 = vector.extract_strided_slice %217 {offsets = [1, 0], sizes = [1, 8], strides = [1, 1]} : vector<2x8xf32> to vector<1x8xf32>
    %236 = vector.broadcast %234 : vector<16x1xf32> to vector<16x8xf32>
    %237 = vector.broadcast %235 : vector<1x8xf32> to vector<16x8xf32>
    %238 = arith.mulf %236, %237 : vector<16x8xf32>
    %239 = arith.addf %233, %238 : vector<16x8xf32>
    %240 = arith.addf %228, %239 : vector<16x8xf32>
    %cst_61 = arith.constant 5.000000e-01 : f32
    %241 = vector.broadcast %cst_61 : f32 to vector<16x8xf32>
    %242 = arith.mulf %241, %240 : vector<16x8xf32>
    %243 = arith.select %226, %240, %242 : vector<16x8xi1>, vector<16x8xf32>
    %244 = math.tanh %243 : vector<16x8xf32>
    %cst_62 = arith.constant 1.000000e+00 : f32
    %245 = vector.broadcast %cst_62 : f32 to vector<16x8xf32>
    %246 = arith.addf %244, %245 : vector<16x8xf32>
    %cst_63 = arith.constant 5.000000e-01 : f32
    %247 = vector.broadcast %cst_63 : f32 to vector<16x8xf32>
    %248 = arith.mulf %247, %246 : vector<16x8xf32>
    %249 = arith.select %226, %244, %248 : vector<16x8xi1>, vector<16x8xf32>
    %250 = vector.extract_strided_slice %249 {offsets = [0, 0], sizes = [16, 2], strides = [1, 1]} : vector<16x8xf32> to vector<16x2xf32>
    %251 = vector.extract_strided_slice %249 {offsets = [0, 2], sizes = [16, 2], strides = [1, 1]} : vector<16x8xf32> to vector<16x2xf32>
    %252 = vector.extract_strided_slice %249 {offsets = [0, 4], sizes = [16, 2], strides = [1, 1]} : vector<16x8xf32> to vector<16x2xf32>
    %253 = vector.extract_strided_slice %249 {offsets = [0, 6], sizes = [16, 2], strides = [1, 1]} : vector<16x8xf32> to vector<16x2xf32>
    %254 = arith.mulf %251, %227 : vector<16x2xf32>
    %255 = arith.mulf %250, %252 : vector<16x2xf32>
    %256 = arith.addf %254, %255 : vector<16x2xf32>
    %257 = math.tanh %256 : vector<16x2xf32>
    %258 = arith.mulf %253, %257 : vector<16x2xf32>
    %259 = vector.extract_strided_slice %258 {offsets = [0, 0], sizes = [16, 1], strides = [1, 1]} : vector<16x2xf32> to vector<16x1xf32>
    %260 = vector.extract_strided_slice %218 {offsets = [0, 0], sizes = [1, 8], strides = [1, 1]} : vector<2x8xf32> to vector<1x8xf32>
    %261 = vector.broadcast %259 : vector<16x1xf32> to vector<16x8xf32>
    %262 = vector.broadcast %260 : vector<1x8xf32> to vector<16x8xf32>
    %263 = arith.mulf %261, %262 : vector<16x8xf32>
    %264 = vector.extract_strided_slice %258 {offsets = [0, 1], sizes = [16, 1], strides = [1, 1]} : vector<16x2xf32> to vector<16x1xf32>
    %265 = vector.extract_strided_slice %218 {offsets = [1, 0], sizes = [1, 8], strides = [1, 1]} : vector<2x8xf32> to vector<1x8xf32>
    %266 = vector.broadcast %264 : vector<16x1xf32> to vector<16x8xf32>
    %267 = vector.broadcast %265 : vector<1x8xf32> to vector<16x8xf32>
    %268 = arith.mulf %266, %267 : vector<16x8xf32>
    %269 = arith.addf %263, %268 : vector<16x8xf32>
    %270 = vector.extract_strided_slice %227 {offsets = [0, 0], sizes = [16, 1], strides = [1, 1]} : vector<16x2xf32> to vector<16x1xf32>
    %271 = vector.extract_strided_slice %219 {offsets = [0, 0], sizes = [1, 8], strides = [1, 1]} : vector<2x8xf32> to vector<1x8xf32>
    %272 = vector.broadcast %270 : vector<16x1xf32> to vector<16x8xf32>
    %273 = vector.broadcast %271 : vector<1x8xf32> to vector<16x8xf32>
    %274 = arith.mulf %272, %273 : vector<16x8xf32>
    %275 = vector.extract_strided_slice %227 {offsets = [0, 1], sizes = [16, 1], strides = [1, 1]} : vector<16x2xf32> to vector<16x1xf32>
    %276 = vector.extract_strided_slice %219 {offsets = [1, 0], sizes = [1, 8], strides = [1, 1]} : vector<2x8xf32> to vector<1x8xf32>
    %277 = vector.broadcast %275 : vector<16x1xf32> to vector<16x8xf32>
    %278 = vector.broadcast %276 : vector<1x8xf32> to vector<16x8xf32>
    %279 = arith.mulf %277, %278 : vector<16x8xf32>
    %280 = arith.addf %274, %279 : vector<16x8xf32>
    %281 = arith.addf %269, %280 : vector<16x8xf32>
    %282 = vector.broadcast %220 : vector<1x8xf32> to vector<16x8xf32>
    %283 = arith.addf %281, %282 : vector<16x8xf32>
    %cst_64 = arith.constant 5.000000e-01 : f32
    %284 = vector.broadcast %cst_64 : f32 to vector<16x8xf32>
    %285 = arith.mulf %284, %283 : vector<16x8xf32>
    %286 = arith.select %226, %283, %285 : vector<16x8xi1>, vector<16x8xf32>
    %287 = math.tanh %286 : vector<16x8xf32>
    %cst_65 = arith.constant 1.000000e+00 : f32
    %288 = vector.broadcast %cst_65 : f32 to vector<16x8xf32>
    %289 = arith.addf %287, %288 : vector<16x8xf32>
    %cst_66 = arith.constant 5.000000e-01 : f32
    %290 = vector.broadcast %cst_66 : f32 to vector<16x8xf32>
    %291 = arith.mulf %290, %289 : vector<16x8xf32>
    %292 = arith.select %226, %287, %291 : vector<16x8xi1>, vector<16x8xf32>
    %293 = vector.extract_strided_slice %292 {offsets = [0, 0], sizes = [16, 2], strides = [1, 1]} : vector<16x8xf32> to vector<16x2xf32>
    %294 = vector.extract_strided_slice %292 {offsets = [0, 2], sizes = [16, 2], strides = [1, 1]} : vector<16x8xf32> to vector<16x2xf32>
    %295 = vector.extract_strided_slice %292 {offsets = [0, 4], sizes = [16, 2], strides = [1, 1]} : vector<16x8xf32> to vector<16x2xf32>
    %296 = vector.extract_strided_slice %292 {offsets = [0, 6], sizes = [16, 2], strides = [1, 1]} : vector<16x8xf32> to vector<16x2xf32>
    %297 = arith.mulf %294, %227 : vector<16x2xf32>
    %298 = arith.mulf %293, %295 : vector<16x2xf32>
    %299 = arith.addf %297, %298 : vector<16x2xf32>
    %300 = math.tanh %299 : vector<16x2xf32>
    %301 = arith.mulf %296, %300 : vector<16x2xf32>
    %302 = vector.extract_strided_slice %215 {offsets = [0, 8], sizes = [16, 8], strides = [1, 1]} : vector<16x88xf32> to vector<16x8xf32>
    %303 = vector.extract_strided_slice %258 {offsets = [0, 0], sizes = [16, 1], strides = [1, 1]} : vector<16x2xf32> to vector<16x1xf32>
    %304 = vector.extract_strided_slice %217 {offsets = [0, 0], sizes = [1, 8], strides = [1, 1]} : vector<2x8xf32> to vector<1x8xf32>
    %305 = vector.broadcast %303 : vector<16x1xf32> to vector<16x8xf32>
    %306 = vector.broadcast %304 : vector<1x8xf32> to vector<16x8xf32>
    %307 = arith.mulf %305, %306 : vector<16x8xf32>
    %308 = vector.extract_strided_slice %258 {offsets = [0, 1], sizes = [16, 1], strides = [1, 1]} : vector<16x2xf32> to vector<16x1xf32>
    %309 = vector.extract_strided_slice %217 {offsets = [1, 0], sizes = [1, 8], strides = [1, 1]} : vector<2x8xf32> to vector<1x8xf32>
    %310 = vector.broadcast %308 : vector<16x1xf32> to vector<16x8xf32>
    %311 = vector.broadcast %309 : vector<1x8xf32> to vector<16x8xf32>
    %312 = arith.mulf %310, %311 : vector<16x8xf32>
    %313 = arith.addf %307, %312 : vector<16x8xf32>
    %314 = arith.addf %302, %313 : vector<16x8xf32>
    %cst_67 = arith.constant 5.000000e-01 : f32
    %315 = vector.broadcast %cst_67 : f32 to vector<16x8xf32>
    %316 = arith.mulf %315, %314 : vector<16x8xf32>
    %317 = arith.select %226, %314, %316 : vector<16x8xi1>, vector<16x8xf32>
    %318 = math.tanh %317 : vector<16x8xf32>
    %cst_68 = arith.constant 1.000000e+00 : f32
    %319 = vector.broadcast %cst_68 : f32 to vector<16x8xf32>
    %320 = arith.addf %318, %319 : vector<16x8xf32>
    %cst_69 = arith.constant 5.000000e-01 : f32
    %321 = vector.broadcast %cst_69 : f32 to vector<16x8xf32>
    %322 = arith.mulf %321, %320 : vector<16x8xf32>
    %323 = arith.select %226, %318, %322 : vector<16x8xi1>, vector<16x8xf32>
    %324 = vector.extract_strided_slice %323 {offsets = [0, 0], sizes = [16, 2], strides = [1, 1]} : vector<16x8xf32> to vector<16x2xf32>
    %325 = vector.extract_strided_slice %323 {offsets = [0, 2], sizes = [16, 2], strides = [1, 1]} : vector<16x8xf32> to vector<16x2xf32>
    %326 = vector.extract_strided_slice %323 {offsets = [0, 4], sizes = [16, 2], strides = [1, 1]} : vector<16x8xf32> to vector<16x2xf32>
    %327 = vector.extract_strided_slice %323 {offsets = [0, 6], sizes = [16, 2], strides = [1, 1]} : vector<16x8xf32> to vector<16x2xf32>
    %328 = arith.mulf %325, %256 : vector<16x2xf32>
    %329 = arith.mulf %324, %326 : vector<16x2xf32>
    %330 = arith.addf %328, %329 : vector<16x2xf32>
    %331 = math.tanh %330 : vector<16x2xf32>
    %332 = arith.mulf %327, %331 : vector<16x2xf32>
    %333 = vector.extract_strided_slice %332 {offsets = [0, 0], sizes = [16, 1], strides = [1, 1]} : vector<16x2xf32> to vector<16x1xf32>
    %334 = vector.extract_strided_slice %218 {offsets = [0, 0], sizes = [1, 8], strides = [1, 1]} : vector<2x8xf32> to vector<1x8xf32>
    %335 = vector.broadcast %333 : vector<16x1xf32> to vector<16x8xf32>
    %336 = vector.broadcast %334 : vector<1x8xf32> to vector<16x8xf32>
    %337 = arith.mulf %335, %336 : vector<16x8xf32>
    %338 = vector.extract_strided_slice %332 {offsets = [0, 1], sizes = [16, 1], strides = [1, 1]} : vector<16x2xf32> to vector<16x1xf32>
    %339 = vector.extract_strided_slice %218 {offsets = [1, 0], sizes = [1, 8], strides = [1, 1]} : vector<2x8xf32> to vector<1x8xf32>
    %340 = vector.broadcast %338 : vector<16x1xf32> to vector<16x8xf32>
    %341 = vector.broadcast %339 : vector<1x8xf32> to vector<16x8xf32>
    %342 = arith.mulf %340, %341 : vector<16x8xf32>
    %343 = arith.addf %337, %342 : vector<16x8xf32>
    %344 = vector.extract_strided_slice %301 {offsets = [0, 0], sizes = [16, 1], strides = [1, 1]} : vector<16x2xf32> to vector<16x1xf32>
    %345 = vector.extract_strided_slice %219 {offsets = [0, 0], sizes = [1, 8], strides = [1, 1]} : vector<2x8xf32> to vector<1x8xf32>
    %346 = vector.broadcast %344 : vector<16x1xf32> to vector<16x8xf32>
    %347 = vector.broadcast %345 : vector<1x8xf32> to vector<16x8xf32>
    %348 = arith.mulf %346, %347 : vector<16x8xf32>
    %349 = vector.extract_strided_slice %301 {offsets = [0, 1], sizes = [16, 1], strides = [1, 1]} : vector<16x2xf32> to vector<16x1xf32>
    %350 = vector.extract_strided_slice %219 {offsets = [1, 0], sizes = [1, 8], strides = [1, 1]} : vector<2x8xf32> to vector<1x8xf32>
    %351 = vector.broadcast %349 : vector<16x1xf32> to vector<16x8xf32>
    %352 = vector.broadcast %350 : vector<1x8xf32> to vector<16x8xf32>
    %353 = arith.mulf %351, %352 : vector<16x8xf32>
    %354 = arith.addf %348, %353 : vector<16x8xf32>
    %355 = arith.addf %343, %354 : vector<16x8xf32>
    %356 = vector.broadcast %220 : vector<1x8xf32> to vector<16x8xf32>
    %357 = arith.addf %355, %356 : vector<16x8xf32>
    %cst_70 = arith.constant 5.000000e-01 : f32
    %358 = vector.broadcast %cst_70 : f32 to vector<16x8xf32>
    %359 = arith.mulf %358, %357 : vector<16x8xf32>
    %360 = arith.select %226, %357, %359 : vector<16x8xi1>, vector<16x8xf32>
    %361 = math.tanh %360 : vector<16x8xf32>
    %cst_71 = arith.constant 1.000000e+00 : f32
    %362 = vector.broadcast %cst_71 : f32 to vector<16x8xf32>
    %363 = arith.addf %361, %362 : vector<16x8xf32>
    %cst_72 = arith.constant 5.000000e-01 : f32
    %364 = vector.broadcast %cst_72 : f32 to vector<16x8xf32>
    %365 = arith.mulf %364, %363 : vector<16x8xf32>
    %366 = arith.select %226, %361, %365 : vector<16x8xi1>, vector<16x8xf32>
    %367 = vector.extract_strided_slice %366 {offsets = [0, 0], sizes = [16, 2], strides = [1, 1]} : vector<16x8xf32> to vector<16x2xf32>
    %368 = vector.extract_strided_slice %366 {offsets = [0, 2], sizes = [16, 2], strides = [1, 1]} : vector<16x8xf32> to vector<16x2xf32>
    %369 = vector.extract_strided_slice %366 {offsets = [0, 4], sizes = [16, 2], strides = [1, 1]} : vector<16x8xf32> to vector<16x2xf32>
    %370 = vector.extract_strided_slice %366 {offsets = [0, 6], sizes = [16, 2], strides = [1, 1]} : vector<16x8xf32> to vector<16x2xf32>
    %371 = arith.mulf %368, %299 : vector<16x2xf32>
    %372 = arith.mulf %367, %369 : vector<16x2xf32>
    %373 = arith.addf %371, %372 : vector<16x2xf32>
    %374 = math.tanh %373 : vector<16x2xf32>
    %375 = arith.mulf %370, %374 : vector<16x2xf32>
    %376 = vector.extract_strided_slice %215 {offsets = [0, 16], sizes = [16, 8], strides = [1, 1]} : vector<16x88xf32> to vector<16x8xf32>
    %377 = vector.extract_strided_slice %332 {offsets = [0, 0], sizes = [16, 1], strides = [1, 1]} : vector<16x2xf32> to vector<16x1xf32>
    %378 = vector.extract_strided_slice %217 {offsets = [0, 0], sizes = [1, 8], strides = [1, 1]} : vector<2x8xf32> to vector<1x8xf32>
    %379 = vector.broadcast %377 : vector<16x1xf32> to vector<16x8xf32>
    %380 = vector.broadcast %378 : vector<1x8xf32> to vector<16x8xf32>
    %381 = arith.mulf %379, %380 : vector<16x8xf32>
    %382 = vector.extract_strided_slice %332 {offsets = [0, 1], sizes = [16, 1], strides = [1, 1]} : vector<16x2xf32> to vector<16x1xf32>
    %383 = vector.extract_strided_slice %217 {offsets = [1, 0], sizes = [1, 8], strides = [1, 1]} : vector<2x8xf32> to vector<1x8xf32>
    %384 = vector.broadcast %382 : vector<16x1xf32> to vector<16x8xf32>
    %385 = vector.broadcast %383 : vector<1x8xf32> to vector<16x8xf32>
    %386 = arith.mulf %384, %385 : vector<16x8xf32>
    %387 = arith.addf %381, %386 : vector<16x8xf32>
    %388 = arith.addf %376, %387 : vector<16x8xf32>
    %cst_73 = arith.constant 5.000000e-01 : f32
    %389 = vector.broadcast %cst_73 : f32 to vector<16x8xf32>
    %390 = arith.mulf %389, %388 : vector<16x8xf32>
    %391 = arith.select %226, %388, %390 : vector<16x8xi1>, vector<16x8xf32>
    %392 = math.tanh %391 : vector<16x8xf32>
    %cst_74 = arith.constant 1.000000e+00 : f32
    %393 = vector.broadcast %cst_74 : f32 to vector<16x8xf32>
    %394 = arith.addf %392, %393 : vector<16x8xf32>
    %cst_75 = arith.constant 5.000000e-01 : f32
    %395 = vector.broadcast %cst_75 : f32 to vector<16x8xf32>
    %396 = arith.mulf %395, %394 : vector<16x8xf32>
    %397 = arith.select %226, %392, %396 : vector<16x8xi1>, vector<16x8xf32>
    %398 = vector.extract_strided_slice %397 {offsets = [0, 0], sizes = [16, 2], strides = [1, 1]} : vector<16x8xf32> to vector<16x2xf32>
    %399 = vector.extract_strided_slice %397 {offsets = [0, 2], sizes = [16, 2], strides = [1, 1]} : vector<16x8xf32> to vector<16x2xf32>
    %400 = vector.extract_strided_slice %397 {offsets = [0, 4], sizes = [16, 2], strides = [1, 1]} : vector<16x8xf32> to vector<16x2xf32>
    %401 = vector.extract_strided_slice %397 {offsets = [0, 6], sizes = [16, 2], strides = [1, 1]} : vector<16x8xf32> to vector<16x2xf32>
    %402 = arith.mulf %399, %330 : vector<16x2xf32>
    %403 = arith.mulf %398, %400 : vector<16x2xf32>
    %404 = arith.addf %402, %403 : vector<16x2xf32>
    %405 = math.tanh %404 : vector<16x2xf32>
    %406 = arith.mulf %401, %405 : vector<16x2xf32>
    %407 = vector.extract_strided_slice %406 {offsets = [0, 0], sizes = [16, 1], strides = [1, 1]} : vector<16x2xf32> to vector<16x1xf32>
    %408 = vector.extract_strided_slice %218 {offsets = [0, 0], sizes = [1, 8], strides = [1, 1]} : vector<2x8xf32> to vector<1x8xf32>
    %409 = vector.broadcast %407 : vector<16x1xf32> to vector<16x8xf32>
    %410 = vector.broadcast %408 : vector<1x8xf32> to vector<16x8xf32>
    %411 = arith.mulf %409, %410 : vector<16x8xf32>
    %412 = vector.extract_strided_slice %406 {offsets = [0, 1], sizes = [16, 1], strides = [1, 1]} : vector<16x2xf32> to vector<16x1xf32>
    %413 = vector.extract_strided_slice %218 {offsets = [1, 0], sizes = [1, 8], strides = [1, 1]} : vector<2x8xf32> to vector<1x8xf32>
    %414 = vector.broadcast %412 : vector<16x1xf32> to vector<16x8xf32>
    %415 = vector.broadcast %413 : vector<1x8xf32> to vector<16x8xf32>
    %416 = arith.mulf %414, %415 : vector<16x8xf32>
    %417 = arith.addf %411, %416 : vector<16x8xf32>
    %418 = vector.extract_strided_slice %375 {offsets = [0, 0], sizes = [16, 1], strides = [1, 1]} : vector<16x2xf32> to vector<16x1xf32>
    %419 = vector.extract_strided_slice %219 {offsets = [0, 0], sizes = [1, 8], strides = [1, 1]} : vector<2x8xf32> to vector<1x8xf32>
    %420 = vector.broadcast %418 : vector<16x1xf32> to vector<16x8xf32>
    %421 = vector.broadcast %419 : vector<1x8xf32> to vector<16x8xf32>
    %422 = arith.mulf %420, %421 : vector<16x8xf32>
    %423 = vector.extract_strided_slice %375 {offsets = [0, 1], sizes = [16, 1], strides = [1, 1]} : vector<16x2xf32> to vector<16x1xf32>
    %424 = vector.extract_strided_slice %219 {offsets = [1, 0], sizes = [1, 8], strides = [1, 1]} : vector<2x8xf32> to vector<1x8xf32>
    %425 = vector.broadcast %423 : vector<16x1xf32> to vector<16x8xf32>
    %426 = vector.broadcast %424 : vector<1x8xf32> to vector<16x8xf32>
    %427 = arith.mulf %425, %426 : vector<16x8xf32>
    %428 = arith.addf %422, %427 : vector<16x8xf32>
    %429 = arith.addf %417, %428 : vector<16x8xf32>
    %430 = vector.broadcast %220 : vector<1x8xf32> to vector<16x8xf32>
    %431 = arith.addf %429, %430 : vector<16x8xf32>
    %cst_76 = arith.constant 5.000000e-01 : f32
    %432 = vector.broadcast %cst_76 : f32 to vector<16x8xf32>
    %433 = arith.mulf %432, %431 : vector<16x8xf32>
    %434 = arith.select %226, %431, %433 : vector<16x8xi1>, vector<16x8xf32>
    %435 = math.tanh %434 : vector<16x8xf32>
    %cst_77 = arith.constant 1.000000e+00 : f32
    %436 = vector.broadcast %cst_77 : f32 to vector<16x8xf32>
    %437 = arith.addf %435, %436 : vector<16x8xf32>
    %cst_78 = arith.constant 5.000000e-01 : f32
    %438 = vector.broadcast %cst_78 : f32 to vector<16x8xf32>
    %439 = arith.mulf %438, %437 : vector<16x8xf32>
    %440 = arith.select %226, %435, %439 : vector<16x8xi1>, vector<16x8xf32>
    %441 = vector.extract_strided_slice %440 {offsets = [0, 0], sizes = [16, 2], strides = [1, 1]} : vector<16x8xf32> to vector<16x2xf32>
    %442 = vector.extract_strided_slice %440 {offsets = [0, 2], sizes = [16, 2], strides = [1, 1]} : vector<16x8xf32> to vector<16x2xf32>
    %443 = vector.extract_strided_slice %440 {offsets = [0, 4], sizes = [16, 2], strides = [1, 1]} : vector<16x8xf32> to vector<16x2xf32>
    %444 = vector.extract_strided_slice %440 {offsets = [0, 6], sizes = [16, 2], strides = [1, 1]} : vector<16x8xf32> to vector<16x2xf32>
    %445 = arith.mulf %442, %373 : vector<16x2xf32>
    %446 = arith.mulf %441, %443 : vector<16x2xf32>
    %447 = arith.addf %445, %446 : vector<16x2xf32>
    %448 = math.tanh %447 : vector<16x2xf32>
    %449 = arith.mulf %444, %448 : vector<16x2xf32>
    %450 = vector.extract_strided_slice %215 {offsets = [0, 24], sizes = [16, 8], strides = [1, 1]} : vector<16x88xf32> to vector<16x8xf32>
    %451 = vector.extract_strided_slice %406 {offsets = [0, 0], sizes = [16, 1], strides = [1, 1]} : vector<16x2xf32> to vector<16x1xf32>
    %452 = vector.extract_strided_slice %217 {offsets = [0, 0], sizes = [1, 8], strides = [1, 1]} : vector<2x8xf32> to vector<1x8xf32>
    %453 = vector.broadcast %451 : vector<16x1xf32> to vector<16x8xf32>
    %454 = vector.broadcast %452 : vector<1x8xf32> to vector<16x8xf32>
    %455 = arith.mulf %453, %454 : vector<16x8xf32>
    %456 = vector.extract_strided_slice %406 {offsets = [0, 1], sizes = [16, 1], strides = [1, 1]} : vector<16x2xf32> to vector<16x1xf32>
    %457 = vector.extract_strided_slice %217 {offsets = [1, 0], sizes = [1, 8], strides = [1, 1]} : vector<2x8xf32> to vector<1x8xf32>
    %458 = vector.broadcast %456 : vector<16x1xf32> to vector<16x8xf32>
    %459 = vector.broadcast %457 : vector<1x8xf32> to vector<16x8xf32>
    %460 = arith.mulf %458, %459 : vector<16x8xf32>
    %461 = arith.addf %455, %460 : vector<16x8xf32>
    %462 = arith.addf %450, %461 : vector<16x8xf32>
    %cst_79 = arith.constant 5.000000e-01 : f32
    %463 = vector.broadcast %cst_79 : f32 to vector<16x8xf32>
    %464 = arith.mulf %463, %462 : vector<16x8xf32>
    %465 = arith.select %226, %462, %464 : vector<16x8xi1>, vector<16x8xf32>
    %466 = math.tanh %465 : vector<16x8xf32>
    %cst_80 = arith.constant 1.000000e+00 : f32
    %467 = vector.broadcast %cst_80 : f32 to vector<16x8xf32>
    %468 = arith.addf %466, %467 : vector<16x8xf32>
    %cst_81 = arith.constant 5.000000e-01 : f32
    %469 = vector.broadcast %cst_81 : f32 to vector<16x8xf32>
    %470 = arith.mulf %469, %468 : vector<16x8xf32>
    %471 = arith.select %226, %466, %470 : vector<16x8xi1>, vector<16x8xf32>
    %472 = vector.extract_strided_slice %471 {offsets = [0, 0], sizes = [16, 2], strides = [1, 1]} : vector<16x8xf32> to vector<16x2xf32>
    %473 = vector.extract_strided_slice %471 {offsets = [0, 2], sizes = [16, 2], strides = [1, 1]} : vector<16x8xf32> to vector<16x2xf32>
    %474 = vector.extract_strided_slice %471 {offsets = [0, 4], sizes = [16, 2], strides = [1, 1]} : vector<16x8xf32> to vector<16x2xf32>
    %475 = vector.extract_strided_slice %471 {offsets = [0, 6], sizes = [16, 2], strides = [1, 1]} : vector<16x8xf32> to vector<16x2xf32>
    %476 = arith.mulf %473, %404 : vector<16x2xf32>
    %477 = arith.mulf %472, %474 : vector<16x2xf32>
    %478 = arith.addf %476, %477 : vector<16x2xf32>
    %479 = math.tanh %478 : vector<16x2xf32>
    %480 = arith.mulf %475, %479 : vector<16x2xf32>
    %481 = vector.extract_strided_slice %480 {offsets = [0, 0], sizes = [16, 1], strides = [1, 1]} : vector<16x2xf32> to vector<16x1xf32>
    %482 = vector.extract_strided_slice %218 {offsets = [0, 0], sizes = [1, 8], strides = [1, 1]} : vector<2x8xf32> to vector<1x8xf32>
    %483 = vector.broadcast %481 : vector<16x1xf32> to vector<16x8xf32>
    %484 = vector.broadcast %482 : vector<1x8xf32> to vector<16x8xf32>
    %485 = arith.mulf %483, %484 : vector<16x8xf32>
    %486 = vector.extract_strided_slice %480 {offsets = [0, 1], sizes = [16, 1], strides = [1, 1]} : vector<16x2xf32> to vector<16x1xf32>
    %487 = vector.extract_strided_slice %218 {offsets = [1, 0], sizes = [1, 8], strides = [1, 1]} : vector<2x8xf32> to vector<1x8xf32>
    %488 = vector.broadcast %486 : vector<16x1xf32> to vector<16x8xf32>
    %489 = vector.broadcast %487 : vector<1x8xf32> to vector<16x8xf32>
    %490 = arith.mulf %488, %489 : vector<16x8xf32>
    %491 = arith.addf %485, %490 : vector<16x8xf32>
    %492 = vector.extract_strided_slice %449 {offsets = [0, 0], sizes = [16, 1], strides = [1, 1]} : vector<16x2xf32> to vector<16x1xf32>
    %493 = vector.extract_strided_slice %219 {offsets = [0, 0], sizes = [1, 8], strides = [1, 1]} : vector<2x8xf32> to vector<1x8xf32>
    %494 = vector.broadcast %492 : vector<16x1xf32> to vector<16x8xf32>
    %495 = vector.broadcast %493 : vector<1x8xf32> to vector<16x8xf32>
    %496 = arith.mulf %494, %495 : vector<16x8xf32>
    %497 = vector.extract_strided_slice %449 {offsets = [0, 1], sizes = [16, 1], strides = [1, 1]} : vector<16x2xf32> to vector<16x1xf32>
    %498 = vector.extract_strided_slice %219 {offsets = [1, 0], sizes = [1, 8], strides = [1, 1]} : vector<2x8xf32> to vector<1x8xf32>
    %499 = vector.broadcast %497 : vector<16x1xf32> to vector<16x8xf32>
    %500 = vector.broadcast %498 : vector<1x8xf32> to vector<16x8xf32>
    %501 = arith.mulf %499, %500 : vector<16x8xf32>
    %502 = arith.addf %496, %501 : vector<16x8xf32>
    %503 = arith.addf %491, %502 : vector<16x8xf32>
    %504 = vector.broadcast %220 : vector<1x8xf32> to vector<16x8xf32>
    %505 = arith.addf %503, %504 : vector<16x8xf32>
    %cst_82 = arith.constant 5.000000e-01 : f32
    %506 = vector.broadcast %cst_82 : f32 to vector<16x8xf32>
    %507 = arith.mulf %506, %505 : vector<16x8xf32>
    %508 = arith.select %226, %505, %507 : vector<16x8xi1>, vector<16x8xf32>
    %509 = math.tanh %508 : vector<16x8xf32>
    %cst_83 = arith.constant 1.000000e+00 : f32
    %510 = vector.broadcast %cst_83 : f32 to vector<16x8xf32>
    %511 = arith.addf %509, %510 : vector<16x8xf32>
    %cst_84 = arith.constant 5.000000e-01 : f32
    %512 = vector.broadcast %cst_84 : f32 to vector<16x8xf32>
    %513 = arith.mulf %512, %511 : vector<16x8xf32>
    %514 = arith.select %226, %509, %513 : vector<16x8xi1>, vector<16x8xf32>
    %515 = vector.extract_strided_slice %514 {offsets = [0, 0], sizes = [16, 2], strides = [1, 1]} : vector<16x8xf32> to vector<16x2xf32>
    %516 = vector.extract_strided_slice %514 {offsets = [0, 2], sizes = [16, 2], strides = [1, 1]} : vector<16x8xf32> to vector<16x2xf32>
    %517 = vector.extract_strided_slice %514 {offsets = [0, 4], sizes = [16, 2], strides = [1, 1]} : vector<16x8xf32> to vector<16x2xf32>
    %518 = vector.extract_strided_slice %514 {offsets = [0, 6], sizes = [16, 2], strides = [1, 1]} : vector<16x8xf32> to vector<16x2xf32>
    %519 = arith.mulf %516, %447 : vector<16x2xf32>
    %520 = arith.mulf %515, %517 : vector<16x2xf32>
    %521 = arith.addf %519, %520 : vector<16x2xf32>
    %522 = math.tanh %521 : vector<16x2xf32>
    %523 = arith.mulf %518, %522 : vector<16x2xf32>
    %524 = vector.extract_strided_slice %215 {offsets = [0, 32], sizes = [16, 8], strides = [1, 1]} : vector<16x88xf32> to vector<16x8xf32>
    %525 = vector.extract_strided_slice %480 {offsets = [0, 0], sizes = [16, 1], strides = [1, 1]} : vector<16x2xf32> to vector<16x1xf32>
    %526 = vector.extract_strided_slice %217 {offsets = [0, 0], sizes = [1, 8], strides = [1, 1]} : vector<2x8xf32> to vector<1x8xf32>
    %527 = vector.broadcast %525 : vector<16x1xf32> to vector<16x8xf32>
    %528 = vector.broadcast %526 : vector<1x8xf32> to vector<16x8xf32>
    %529 = arith.mulf %527, %528 : vector<16x8xf32>
    %530 = vector.extract_strided_slice %480 {offsets = [0, 1], sizes = [16, 1], strides = [1, 1]} : vector<16x2xf32> to vector<16x1xf32>
    %531 = vector.extract_strided_slice %217 {offsets = [1, 0], sizes = [1, 8], strides = [1, 1]} : vector<2x8xf32> to vector<1x8xf32>
    %532 = vector.broadcast %530 : vector<16x1xf32> to vector<16x8xf32>
    %533 = vector.broadcast %531 : vector<1x8xf32> to vector<16x8xf32>
    %534 = arith.mulf %532, %533 : vector<16x8xf32>
    %535 = arith.addf %529, %534 : vector<16x8xf32>
    %536 = arith.addf %524, %535 : vector<16x8xf32>
    %cst_85 = arith.constant 5.000000e-01 : f32
    %537 = vector.broadcast %cst_85 : f32 to vector<16x8xf32>
    %538 = arith.mulf %537, %536 : vector<16x8xf32>
    %539 = arith.select %226, %536, %538 : vector<16x8xi1>, vector<16x8xf32>
    %540 = math.tanh %539 : vector<16x8xf32>
    %cst_86 = arith.constant 1.000000e+00 : f32
    %541 = vector.broadcast %cst_86 : f32 to vector<16x8xf32>
    %542 = arith.addf %540, %541 : vector<16x8xf32>
    %cst_87 = arith.constant 5.000000e-01 : f32
    %543 = vector.broadcast %cst_87 : f32 to vector<16x8xf32>
    %544 = arith.mulf %543, %542 : vector<16x8xf32>
    %545 = arith.select %226, %540, %544 : vector<16x8xi1>, vector<16x8xf32>
    %546 = vector.extract_strided_slice %545 {offsets = [0, 0], sizes = [16, 2], strides = [1, 1]} : vector<16x8xf32> to vector<16x2xf32>
    %547 = vector.extract_strided_slice %545 {offsets = [0, 2], sizes = [16, 2], strides = [1, 1]} : vector<16x8xf32> to vector<16x2xf32>
    %548 = vector.extract_strided_slice %545 {offsets = [0, 4], sizes = [16, 2], strides = [1, 1]} : vector<16x8xf32> to vector<16x2xf32>
    %549 = vector.extract_strided_slice %545 {offsets = [0, 6], sizes = [16, 2], strides = [1, 1]} : vector<16x8xf32> to vector<16x2xf32>
    %550 = arith.mulf %547, %478 : vector<16x2xf32>
    %551 = arith.mulf %546, %548 : vector<16x2xf32>
    %552 = arith.addf %550, %551 : vector<16x2xf32>
    %553 = math.tanh %552 : vector<16x2xf32>
    %554 = arith.mulf %549, %553 : vector<16x2xf32>
    %555 = vector.extract_strided_slice %554 {offsets = [0, 0], sizes = [16, 1], strides = [1, 1]} : vector<16x2xf32> to vector<16x1xf32>
    %556 = vector.extract_strided_slice %218 {offsets = [0, 0], sizes = [1, 8], strides = [1, 1]} : vector<2x8xf32> to vector<1x8xf32>
    %557 = vector.broadcast %555 : vector<16x1xf32> to vector<16x8xf32>
    %558 = vector.broadcast %556 : vector<1x8xf32> to vector<16x8xf32>
    %559 = arith.mulf %557, %558 : vector<16x8xf32>
    %560 = vector.extract_strided_slice %554 {offsets = [0, 1], sizes = [16, 1], strides = [1, 1]} : vector<16x2xf32> to vector<16x1xf32>
    %561 = vector.extract_strided_slice %218 {offsets = [1, 0], sizes = [1, 8], strides = [1, 1]} : vector<2x8xf32> to vector<1x8xf32>
    %562 = vector.broadcast %560 : vector<16x1xf32> to vector<16x8xf32>
    %563 = vector.broadcast %561 : vector<1x8xf32> to vector<16x8xf32>
    %564 = arith.mulf %562, %563 : vector<16x8xf32>
    %565 = arith.addf %559, %564 : vector<16x8xf32>
    %566 = vector.extract_strided_slice %523 {offsets = [0, 0], sizes = [16, 1], strides = [1, 1]} : vector<16x2xf32> to vector<16x1xf32>
    %567 = vector.extract_strided_slice %219 {offsets = [0, 0], sizes = [1, 8], strides = [1, 1]} : vector<2x8xf32> to vector<1x8xf32>
    %568 = vector.broadcast %566 : vector<16x1xf32> to vector<16x8xf32>
    %569 = vector.broadcast %567 : vector<1x8xf32> to vector<16x8xf32>
    %570 = arith.mulf %568, %569 : vector<16x8xf32>
    %571 = vector.extract_strided_slice %523 {offsets = [0, 1], sizes = [16, 1], strides = [1, 1]} : vector<16x2xf32> to vector<16x1xf32>
    %572 = vector.extract_strided_slice %219 {offsets = [1, 0], sizes = [1, 8], strides = [1, 1]} : vector<2x8xf32> to vector<1x8xf32>
    %573 = vector.broadcast %571 : vector<16x1xf32> to vector<16x8xf32>
    %574 = vector.broadcast %572 : vector<1x8xf32> to vector<16x8xf32>
    %575 = arith.mulf %573, %574 : vector<16x8xf32>
    %576 = arith.addf %570, %575 : vector<16x8xf32>
    %577 = arith.addf %565, %576 : vector<16x8xf32>
    %578 = vector.broadcast %220 : vector<1x8xf32> to vector<16x8xf32>
    %579 = arith.addf %577, %578 : vector<16x8xf32>
    %cst_88 = arith.constant 5.000000e-01 : f32
    %580 = vector.broadcast %cst_88 : f32 to vector<16x8xf32>
    %581 = arith.mulf %580, %579 : vector<16x8xf32>
    %582 = arith.select %226, %579, %581 : vector<16x8xi1>, vector<16x8xf32>
    %583 = math.tanh %582 : vector<16x8xf32>
    %cst_89 = arith.constant 1.000000e+00 : f32
    %584 = vector.broadcast %cst_89 : f32 to vector<16x8xf32>
    %585 = arith.addf %583, %584 : vector<16x8xf32>
    %cst_90 = arith.constant 5.000000e-01 : f32
    %586 = vector.broadcast %cst_90 : f32 to vector<16x8xf32>
    %587 = arith.mulf %586, %585 : vector<16x8xf32>
    %588 = arith.select %226, %583, %587 : vector<16x8xi1>, vector<16x8xf32>
    %589 = vector.extract_strided_slice %588 {offsets = [0, 0], sizes = [16, 2], strides = [1, 1]} : vector<16x8xf32> to vector<16x2xf32>
    %590 = vector.extract_strided_slice %588 {offsets = [0, 2], sizes = [16, 2], strides = [1, 1]} : vector<16x8xf32> to vector<16x2xf32>
    %591 = vector.extract_strided_slice %588 {offsets = [0, 4], sizes = [16, 2], strides = [1, 1]} : vector<16x8xf32> to vector<16x2xf32>
    %592 = vector.extract_strided_slice %588 {offsets = [0, 6], sizes = [16, 2], strides = [1, 1]} : vector<16x8xf32> to vector<16x2xf32>
    %593 = arith.mulf %590, %521 : vector<16x2xf32>
    %594 = arith.mulf %589, %591 : vector<16x2xf32>
    %595 = arith.addf %593, %594 : vector<16x2xf32>
    %596 = math.tanh %595 : vector<16x2xf32>
    %597 = arith.mulf %592, %596 : vector<16x2xf32>
    %598 = vector.extract_strided_slice %215 {offsets = [0, 40], sizes = [16, 8], strides = [1, 1]} : vector<16x88xf32> to vector<16x8xf32>
    %599 = vector.extract_strided_slice %554 {offsets = [0, 0], sizes = [16, 1], strides = [1, 1]} : vector<16x2xf32> to vector<16x1xf32>
    %600 = vector.extract_strided_slice %217 {offsets = [0, 0], sizes = [1, 8], strides = [1, 1]} : vector<2x8xf32> to vector<1x8xf32>
    %601 = vector.broadcast %599 : vector<16x1xf32> to vector<16x8xf32>
    %602 = vector.broadcast %600 : vector<1x8xf32> to vector<16x8xf32>
    %603 = arith.mulf %601, %602 : vector<16x8xf32>
    %604 = vector.extract_strided_slice %554 {offsets = [0, 1], sizes = [16, 1], strides = [1, 1]} : vector<16x2xf32> to vector<16x1xf32>
    %605 = vector.extract_strided_slice %217 {offsets = [1, 0], sizes = [1, 8], strides = [1, 1]} : vector<2x8xf32> to vector<1x8xf32>
    %606 = vector.broadcast %604 : vector<16x1xf32> to vector<16x8xf32>
    %607 = vector.broadcast %605 : vector<1x8xf32> to vector<16x8xf32>
    %608 = arith.mulf %606, %607 : vector<16x8xf32>
    %609 = arith.addf %603, %608 : vector<16x8xf32>
    %610 = arith.addf %598, %609 : vector<16x8xf32>
    %cst_91 = arith.constant 5.000000e-01 : f32
    %611 = vector.broadcast %cst_91 : f32 to vector<16x8xf32>
    %612 = arith.mulf %611, %610 : vector<16x8xf32>
    %613 = arith.select %226, %610, %612 : vector<16x8xi1>, vector<16x8xf32>
    %614 = math.tanh %613 : vector<16x8xf32>
    %cst_92 = arith.constant 1.000000e+00 : f32
    %615 = vector.broadcast %cst_92 : f32 to vector<16x8xf32>
    %616 = arith.addf %614, %615 : vector<16x8xf32>
    %cst_93 = arith.constant 5.000000e-01 : f32
    %617 = vector.broadcast %cst_93 : f32 to vector<16x8xf32>
    %618 = arith.mulf %617, %616 : vector<16x8xf32>
    %619 = arith.select %226, %614, %618 : vector<16x8xi1>, vector<16x8xf32>
    %620 = vector.extract_strided_slice %619 {offsets = [0, 0], sizes = [16, 2], strides = [1, 1]} : vector<16x8xf32> to vector<16x2xf32>
    %621 = vector.extract_strided_slice %619 {offsets = [0, 2], sizes = [16, 2], strides = [1, 1]} : vector<16x8xf32> to vector<16x2xf32>
    %622 = vector.extract_strided_slice %619 {offsets = [0, 4], sizes = [16, 2], strides = [1, 1]} : vector<16x8xf32> to vector<16x2xf32>
    %623 = vector.extract_strided_slice %619 {offsets = [0, 6], sizes = [16, 2], strides = [1, 1]} : vector<16x8xf32> to vector<16x2xf32>
    %624 = arith.mulf %621, %552 : vector<16x2xf32>
    %625 = arith.mulf %620, %622 : vector<16x2xf32>
    %626 = arith.addf %624, %625 : vector<16x2xf32>
    %627 = math.tanh %626 : vector<16x2xf32>
    %628 = arith.mulf %623, %627 : vector<16x2xf32>
    %629 = vector.extract_strided_slice %628 {offsets = [0, 0], sizes = [16, 1], strides = [1, 1]} : vector<16x2xf32> to vector<16x1xf32>
    %630 = vector.extract_strided_slice %218 {offsets = [0, 0], sizes = [1, 8], strides = [1, 1]} : vector<2x8xf32> to vector<1x8xf32>
    %631 = vector.broadcast %629 : vector<16x1xf32> to vector<16x8xf32>
    %632 = vector.broadcast %630 : vector<1x8xf32> to vector<16x8xf32>
    %633 = arith.mulf %631, %632 : vector<16x8xf32>
    %634 = vector.extract_strided_slice %628 {offsets = [0, 1], sizes = [16, 1], strides = [1, 1]} : vector<16x2xf32> to vector<16x1xf32>
    %635 = vector.extract_strided_slice %218 {offsets = [1, 0], sizes = [1, 8], strides = [1, 1]} : vector<2x8xf32> to vector<1x8xf32>
    %636 = vector.broadcast %634 : vector<16x1xf32> to vector<16x8xf32>
    %637 = vector.broadcast %635 : vector<1x8xf32> to vector<16x8xf32>
    %638 = arith.mulf %636, %637 : vector<16x8xf32>
    %639 = arith.addf %633, %638 : vector<16x8xf32>
    %640 = vector.extract_strided_slice %597 {offsets = [0, 0], sizes = [16, 1], strides = [1, 1]} : vector<16x2xf32> to vector<16x1xf32>
    %641 = vector.extract_strided_slice %219 {offsets = [0, 0], sizes = [1, 8], strides = [1, 1]} : vector<2x8xf32> to vector<1x8xf32>
    %642 = vector.broadcast %640 : vector<16x1xf32> to vector<16x8xf32>
    %643 = vector.broadcast %641 : vector<1x8xf32> to vector<16x8xf32>
    %644 = arith.mulf %642, %643 : vector<16x8xf32>
    %645 = vector.extract_strided_slice %597 {offsets = [0, 1], sizes = [16, 1], strides = [1, 1]} : vector<16x2xf32> to vector<16x1xf32>
    %646 = vector.extract_strided_slice %219 {offsets = [1, 0], sizes = [1, 8], strides = [1, 1]} : vector<2x8xf32> to vector<1x8xf32>
    %647 = vector.broadcast %645 : vector<16x1xf32> to vector<16x8xf32>
    %648 = vector.broadcast %646 : vector<1x8xf32> to vector<16x8xf32>
    %649 = arith.mulf %647, %648 : vector<16x8xf32>
    %650 = arith.addf %644, %649 : vector<16x8xf32>
    %651 = arith.addf %639, %650 : vector<16x8xf32>
    %652 = vector.broadcast %220 : vector<1x8xf32> to vector<16x8xf32>
    %653 = arith.addf %651, %652 : vector<16x8xf32>
    %cst_94 = arith.constant 5.000000e-01 : f32
    %654 = vector.broadcast %cst_94 : f32 to vector<16x8xf32>
    %655 = arith.mulf %654, %653 : vector<16x8xf32>
    %656 = arith.select %226, %653, %655 : vector<16x8xi1>, vector<16x8xf32>
    %657 = math.tanh %656 : vector<16x8xf32>
    %cst_95 = arith.constant 1.000000e+00 : f32
    %658 = vector.broadcast %cst_95 : f32 to vector<16x8xf32>
    %659 = arith.addf %657, %658 : vector<16x8xf32>
    %cst_96 = arith.constant 5.000000e-01 : f32
    %660 = vector.broadcast %cst_96 : f32 to vector<16x8xf32>
    %661 = arith.mulf %660, %659 : vector<16x8xf32>
    %662 = arith.select %226, %657, %661 : vector<16x8xi1>, vector<16x8xf32>
    %663 = vector.extract_strided_slice %662 {offsets = [0, 0], sizes = [16, 2], strides = [1, 1]} : vector<16x8xf32> to vector<16x2xf32>
    %664 = vector.extract_strided_slice %662 {offsets = [0, 2], sizes = [16, 2], strides = [1, 1]} : vector<16x8xf32> to vector<16x2xf32>
    %665 = vector.extract_strided_slice %662 {offsets = [0, 4], sizes = [16, 2], strides = [1, 1]} : vector<16x8xf32> to vector<16x2xf32>
    %666 = vector.extract_strided_slice %662 {offsets = [0, 6], sizes = [16, 2], strides = [1, 1]} : vector<16x8xf32> to vector<16x2xf32>
    %667 = arith.mulf %664, %595 : vector<16x2xf32>
    %668 = arith.mulf %663, %665 : vector<16x2xf32>
    %669 = arith.addf %667, %668 : vector<16x2xf32>
    %670 = math.tanh %669 : vector<16x2xf32>
    %671 = arith.mulf %666, %670 : vector<16x2xf32>
    %672 = vector.extract_strided_slice %215 {offsets = [0, 48], sizes = [16, 8], strides = [1, 1]} : vector<16x88xf32> to vector<16x8xf32>
    %673 = vector.extract_strided_slice %628 {offsets = [0, 0], sizes = [16, 1], strides = [1, 1]} : vector<16x2xf32> to vector<16x1xf32>
    %674 = vector.extract_strided_slice %217 {offsets = [0, 0], sizes = [1, 8], strides = [1, 1]} : vector<2x8xf32> to vector<1x8xf32>
    %675 = vector.broadcast %673 : vector<16x1xf32> to vector<16x8xf32>
    %676 = vector.broadcast %674 : vector<1x8xf32> to vector<16x8xf32>
    %677 = arith.mulf %675, %676 : vector<16x8xf32>
    %678 = vector.extract_strided_slice %628 {offsets = [0, 1], sizes = [16, 1], strides = [1, 1]} : vector<16x2xf32> to vector<16x1xf32>
    %679 = vector.extract_strided_slice %217 {offsets = [1, 0], sizes = [1, 8], strides = [1, 1]} : vector<2x8xf32> to vector<1x8xf32>
    %680 = vector.broadcast %678 : vector<16x1xf32> to vector<16x8xf32>
    %681 = vector.broadcast %679 : vector<1x8xf32> to vector<16x8xf32>
    %682 = arith.mulf %680, %681 : vector<16x8xf32>
    %683 = arith.addf %677, %682 : vector<16x8xf32>
    %684 = arith.addf %672, %683 : vector<16x8xf32>
    %cst_97 = arith.constant 5.000000e-01 : f32
    %685 = vector.broadcast %cst_97 : f32 to vector<16x8xf32>
    %686 = arith.mulf %685, %684 : vector<16x8xf32>
    %687 = arith.select %226, %684, %686 : vector<16x8xi1>, vector<16x8xf32>
    %688 = math.tanh %687 : vector<16x8xf32>
    %cst_98 = arith.constant 1.000000e+00 : f32
    %689 = vector.broadcast %cst_98 : f32 to vector<16x8xf32>
    %690 = arith.addf %688, %689 : vector<16x8xf32>
    %cst_99 = arith.constant 5.000000e-01 : f32
    %691 = vector.broadcast %cst_99 : f32 to vector<16x8xf32>
    %692 = arith.mulf %691, %690 : vector<16x8xf32>
    %693 = arith.select %226, %688, %692 : vector<16x8xi1>, vector<16x8xf32>
    %694 = vector.extract_strided_slice %693 {offsets = [0, 0], sizes = [16, 2], strides = [1, 1]} : vector<16x8xf32> to vector<16x2xf32>
    %695 = vector.extract_strided_slice %693 {offsets = [0, 2], sizes = [16, 2], strides = [1, 1]} : vector<16x8xf32> to vector<16x2xf32>
    %696 = vector.extract_strided_slice %693 {offsets = [0, 4], sizes = [16, 2], strides = [1, 1]} : vector<16x8xf32> to vector<16x2xf32>
    %697 = vector.extract_strided_slice %693 {offsets = [0, 6], sizes = [16, 2], strides = [1, 1]} : vector<16x8xf32> to vector<16x2xf32>
    %698 = arith.mulf %695, %626 : vector<16x2xf32>
    %699 = arith.mulf %694, %696 : vector<16x2xf32>
    %700 = arith.addf %698, %699 : vector<16x2xf32>
    %701 = math.tanh %700 : vector<16x2xf32>
    %702 = arith.mulf %697, %701 : vector<16x2xf32>
    %703 = vector.extract_strided_slice %702 {offsets = [0, 0], sizes = [16, 1], strides = [1, 1]} : vector<16x2xf32> to vector<16x1xf32>
    %704 = vector.extract_strided_slice %218 {offsets = [0, 0], sizes = [1, 8], strides = [1, 1]} : vector<2x8xf32> to vector<1x8xf32>
    %705 = vector.broadcast %703 : vector<16x1xf32> to vector<16x8xf32>
    %706 = vector.broadcast %704 : vector<1x8xf32> to vector<16x8xf32>
    %707 = arith.mulf %705, %706 : vector<16x8xf32>
    %708 = vector.extract_strided_slice %702 {offsets = [0, 1], sizes = [16, 1], strides = [1, 1]} : vector<16x2xf32> to vector<16x1xf32>
    %709 = vector.extract_strided_slice %218 {offsets = [1, 0], sizes = [1, 8], strides = [1, 1]} : vector<2x8xf32> to vector<1x8xf32>
    %710 = vector.broadcast %708 : vector<16x1xf32> to vector<16x8xf32>
    %711 = vector.broadcast %709 : vector<1x8xf32> to vector<16x8xf32>
    %712 = arith.mulf %710, %711 : vector<16x8xf32>
    %713 = arith.addf %707, %712 : vector<16x8xf32>
    %714 = vector.extract_strided_slice %671 {offsets = [0, 0], sizes = [16, 1], strides = [1, 1]} : vector<16x2xf32> to vector<16x1xf32>
    %715 = vector.extract_strided_slice %219 {offsets = [0, 0], sizes = [1, 8], strides = [1, 1]} : vector<2x8xf32> to vector<1x8xf32>
    %716 = vector.broadcast %714 : vector<16x1xf32> to vector<16x8xf32>
    %717 = vector.broadcast %715 : vector<1x8xf32> to vector<16x8xf32>
    %718 = arith.mulf %716, %717 : vector<16x8xf32>
    %719 = vector.extract_strided_slice %671 {offsets = [0, 1], sizes = [16, 1], strides = [1, 1]} : vector<16x2xf32> to vector<16x1xf32>
    %720 = vector.extract_strided_slice %219 {offsets = [1, 0], sizes = [1, 8], strides = [1, 1]} : vector<2x8xf32> to vector<1x8xf32>
    %721 = vector.broadcast %719 : vector<16x1xf32> to vector<16x8xf32>
    %722 = vector.broadcast %720 : vector<1x8xf32> to vector<16x8xf32>
    %723 = arith.mulf %721, %722 : vector<16x8xf32>
    %724 = arith.addf %718, %723 : vector<16x8xf32>
    %725 = arith.addf %713, %724 : vector<16x8xf32>
    %726 = vector.broadcast %220 : vector<1x8xf32> to vector<16x8xf32>
    %727 = arith.addf %725, %726 : vector<16x8xf32>
    %cst_100 = arith.constant 5.000000e-01 : f32
    %728 = vector.broadcast %cst_100 : f32 to vector<16x8xf32>
    %729 = arith.mulf %728, %727 : vector<16x8xf32>
    %730 = arith.select %226, %727, %729 : vector<16x8xi1>, vector<16x8xf32>
    %731 = math.tanh %730 : vector<16x8xf32>
    %cst_101 = arith.constant 1.000000e+00 : f32
    %732 = vector.broadcast %cst_101 : f32 to vector<16x8xf32>
    %733 = arith.addf %731, %732 : vector<16x8xf32>
    %cst_102 = arith.constant 5.000000e-01 : f32
    %734 = vector.broadcast %cst_102 : f32 to vector<16x8xf32>
    %735 = arith.mulf %734, %733 : vector<16x8xf32>
    %736 = arith.select %226, %731, %735 : vector<16x8xi1>, vector<16x8xf32>
    %737 = vector.extract_strided_slice %736 {offsets = [0, 0], sizes = [16, 2], strides = [1, 1]} : vector<16x8xf32> to vector<16x2xf32>
    %738 = vector.extract_strided_slice %736 {offsets = [0, 2], sizes = [16, 2], strides = [1, 1]} : vector<16x8xf32> to vector<16x2xf32>
    %739 = vector.extract_strided_slice %736 {offsets = [0, 4], sizes = [16, 2], strides = [1, 1]} : vector<16x8xf32> to vector<16x2xf32>
    %740 = vector.extract_strided_slice %736 {offsets = [0, 6], sizes = [16, 2], strides = [1, 1]} : vector<16x8xf32> to vector<16x2xf32>
    %741 = arith.mulf %738, %669 : vector<16x2xf32>
    %742 = arith.mulf %737, %739 : vector<16x2xf32>
    %743 = arith.addf %741, %742 : vector<16x2xf32>
    %744 = math.tanh %743 : vector<16x2xf32>
    %745 = arith.mulf %740, %744 : vector<16x2xf32>
    %746 = vector.extract_strided_slice %215 {offsets = [0, 56], sizes = [16, 8], strides = [1, 1]} : vector<16x88xf32> to vector<16x8xf32>
    %747 = vector.extract_strided_slice %702 {offsets = [0, 0], sizes = [16, 1], strides = [1, 1]} : vector<16x2xf32> to vector<16x1xf32>
    %748 = vector.extract_strided_slice %217 {offsets = [0, 0], sizes = [1, 8], strides = [1, 1]} : vector<2x8xf32> to vector<1x8xf32>
    %749 = vector.broadcast %747 : vector<16x1xf32> to vector<16x8xf32>
    %750 = vector.broadcast %748 : vector<1x8xf32> to vector<16x8xf32>
    %751 = arith.mulf %749, %750 : vector<16x8xf32>
    %752 = vector.extract_strided_slice %702 {offsets = [0, 1], sizes = [16, 1], strides = [1, 1]} : vector<16x2xf32> to vector<16x1xf32>
    %753 = vector.extract_strided_slice %217 {offsets = [1, 0], sizes = [1, 8], strides = [1, 1]} : vector<2x8xf32> to vector<1x8xf32>
    %754 = vector.broadcast %752 : vector<16x1xf32> to vector<16x8xf32>
    %755 = vector.broadcast %753 : vector<1x8xf32> to vector<16x8xf32>
    %756 = arith.mulf %754, %755 : vector<16x8xf32>
    %757 = arith.addf %751, %756 : vector<16x8xf32>
    %758 = arith.addf %746, %757 : vector<16x8xf32>
    %cst_103 = arith.constant 5.000000e-01 : f32
    %759 = vector.broadcast %cst_103 : f32 to vector<16x8xf32>
    %760 = arith.mulf %759, %758 : vector<16x8xf32>
    %761 = arith.select %226, %758, %760 : vector<16x8xi1>, vector<16x8xf32>
    %762 = math.tanh %761 : vector<16x8xf32>
    %cst_104 = arith.constant 1.000000e+00 : f32
    %763 = vector.broadcast %cst_104 : f32 to vector<16x8xf32>
    %764 = arith.addf %762, %763 : vector<16x8xf32>
    %cst_105 = arith.constant 5.000000e-01 : f32
    %765 = vector.broadcast %cst_105 : f32 to vector<16x8xf32>
    %766 = arith.mulf %765, %764 : vector<16x8xf32>
    %767 = arith.select %226, %762, %766 : vector<16x8xi1>, vector<16x8xf32>
    %768 = vector.extract_strided_slice %767 {offsets = [0, 0], sizes = [16, 2], strides = [1, 1]} : vector<16x8xf32> to vector<16x2xf32>
    %769 = vector.extract_strided_slice %767 {offsets = [0, 2], sizes = [16, 2], strides = [1, 1]} : vector<16x8xf32> to vector<16x2xf32>
    %770 = vector.extract_strided_slice %767 {offsets = [0, 4], sizes = [16, 2], strides = [1, 1]} : vector<16x8xf32> to vector<16x2xf32>
    %771 = vector.extract_strided_slice %767 {offsets = [0, 6], sizes = [16, 2], strides = [1, 1]} : vector<16x8xf32> to vector<16x2xf32>
    %772 = arith.mulf %769, %700 : vector<16x2xf32>
    %773 = arith.mulf %768, %770 : vector<16x2xf32>
    %774 = arith.addf %772, %773 : vector<16x2xf32>
    %775 = math.tanh %774 : vector<16x2xf32>
    %776 = arith.mulf %771, %775 : vector<16x2xf32>
    %777 = vector.extract_strided_slice %776 {offsets = [0, 0], sizes = [16, 1], strides = [1, 1]} : vector<16x2xf32> to vector<16x1xf32>
    %778 = vector.extract_strided_slice %218 {offsets = [0, 0], sizes = [1, 8], strides = [1, 1]} : vector<2x8xf32> to vector<1x8xf32>
    %779 = vector.broadcast %777 : vector<16x1xf32> to vector<16x8xf32>
    %780 = vector.broadcast %778 : vector<1x8xf32> to vector<16x8xf32>
    %781 = arith.mulf %779, %780 : vector<16x8xf32>
    %782 = vector.extract_strided_slice %776 {offsets = [0, 1], sizes = [16, 1], strides = [1, 1]} : vector<16x2xf32> to vector<16x1xf32>
    %783 = vector.extract_strided_slice %218 {offsets = [1, 0], sizes = [1, 8], strides = [1, 1]} : vector<2x8xf32> to vector<1x8xf32>
    %784 = vector.broadcast %782 : vector<16x1xf32> to vector<16x8xf32>
    %785 = vector.broadcast %783 : vector<1x8xf32> to vector<16x8xf32>
    %786 = arith.mulf %784, %785 : vector<16x8xf32>
    %787 = arith.addf %781, %786 : vector<16x8xf32>
    %788 = vector.extract_strided_slice %745 {offsets = [0, 0], sizes = [16, 1], strides = [1, 1]} : vector<16x2xf32> to vector<16x1xf32>
    %789 = vector.extract_strided_slice %219 {offsets = [0, 0], sizes = [1, 8], strides = [1, 1]} : vector<2x8xf32> to vector<1x8xf32>
    %790 = vector.broadcast %788 : vector<16x1xf32> to vector<16x8xf32>
    %791 = vector.broadcast %789 : vector<1x8xf32> to vector<16x8xf32>
    %792 = arith.mulf %790, %791 : vector<16x8xf32>
    %793 = vector.extract_strided_slice %745 {offsets = [0, 1], sizes = [16, 1], strides = [1, 1]} : vector<16x2xf32> to vector<16x1xf32>
    %794 = vector.extract_strided_slice %219 {offsets = [1, 0], sizes = [1, 8], strides = [1, 1]} : vector<2x8xf32> to vector<1x8xf32>
    %795 = vector.broadcast %793 : vector<16x1xf32> to vector<16x8xf32>
    %796 = vector.broadcast %794 : vector<1x8xf32> to vector<16x8xf32>
    %797 = arith.mulf %795, %796 : vector<16x8xf32>
    %798 = arith.addf %792, %797 : vector<16x8xf32>
    %799 = arith.addf %787, %798 : vector<16x8xf32>
    %800 = vector.broadcast %220 : vector<1x8xf32> to vector<16x8xf32>
    %801 = arith.addf %799, %800 : vector<16x8xf32>
    %cst_106 = arith.constant 5.000000e-01 : f32
    %802 = vector.broadcast %cst_106 : f32 to vector<16x8xf32>
    %803 = arith.mulf %802, %801 : vector<16x8xf32>
    %804 = arith.select %226, %801, %803 : vector<16x8xi1>, vector<16x8xf32>
    %805 = math.tanh %804 : vector<16x8xf32>
    %cst_107 = arith.constant 1.000000e+00 : f32
    %806 = vector.broadcast %cst_107 : f32 to vector<16x8xf32>
    %807 = arith.addf %805, %806 : vector<16x8xf32>
    %cst_108 = arith.constant 5.000000e-01 : f32
    %808 = vector.broadcast %cst_108 : f32 to vector<16x8xf32>
    %809 = arith.mulf %808, %807 : vector<16x8xf32>
    %810 = arith.select %226, %805, %809 : vector<16x8xi1>, vector<16x8xf32>
    %811 = vector.extract_strided_slice %810 {offsets = [0, 0], sizes = [16, 2], strides = [1, 1]} : vector<16x8xf32> to vector<16x2xf32>
    %812 = vector.extract_strided_slice %810 {offsets = [0, 2], sizes = [16, 2], strides = [1, 1]} : vector<16x8xf32> to vector<16x2xf32>
    %813 = vector.extract_strided_slice %810 {offsets = [0, 4], sizes = [16, 2], strides = [1, 1]} : vector<16x8xf32> to vector<16x2xf32>
    %814 = vector.extract_strided_slice %810 {offsets = [0, 6], sizes = [16, 2], strides = [1, 1]} : vector<16x8xf32> to vector<16x2xf32>
    %815 = arith.mulf %812, %743 : vector<16x2xf32>
    %816 = arith.mulf %811, %813 : vector<16x2xf32>
    %817 = arith.addf %815, %816 : vector<16x2xf32>
    %818 = math.tanh %817 : vector<16x2xf32>
    %819 = arith.mulf %814, %818 : vector<16x2xf32>
    %820 = vector.extract_strided_slice %215 {offsets = [0, 64], sizes = [16, 8], strides = [1, 1]} : vector<16x88xf32> to vector<16x8xf32>
    %821 = vector.extract_strided_slice %776 {offsets = [0, 0], sizes = [16, 1], strides = [1, 1]} : vector<16x2xf32> to vector<16x1xf32>
    %822 = vector.extract_strided_slice %217 {offsets = [0, 0], sizes = [1, 8], strides = [1, 1]} : vector<2x8xf32> to vector<1x8xf32>
    %823 = vector.broadcast %821 : vector<16x1xf32> to vector<16x8xf32>
    %824 = vector.broadcast %822 : vector<1x8xf32> to vector<16x8xf32>
    %825 = arith.mulf %823, %824 : vector<16x8xf32>
    %826 = vector.extract_strided_slice %776 {offsets = [0, 1], sizes = [16, 1], strides = [1, 1]} : vector<16x2xf32> to vector<16x1xf32>
    %827 = vector.extract_strided_slice %217 {offsets = [1, 0], sizes = [1, 8], strides = [1, 1]} : vector<2x8xf32> to vector<1x8xf32>
    %828 = vector.broadcast %826 : vector<16x1xf32> to vector<16x8xf32>
    %829 = vector.broadcast %827 : vector<1x8xf32> to vector<16x8xf32>
    %830 = arith.mulf %828, %829 : vector<16x8xf32>
    %831 = arith.addf %825, %830 : vector<16x8xf32>
    %832 = arith.addf %820, %831 : vector<16x8xf32>
    %cst_109 = arith.constant 5.000000e-01 : f32
    %833 = vector.broadcast %cst_109 : f32 to vector<16x8xf32>
    %834 = arith.mulf %833, %832 : vector<16x8xf32>
    %835 = arith.select %226, %832, %834 : vector<16x8xi1>, vector<16x8xf32>
    %836 = math.tanh %835 : vector<16x8xf32>
    %cst_110 = arith.constant 1.000000e+00 : f32
    %837 = vector.broadcast %cst_110 : f32 to vector<16x8xf32>
    %838 = arith.addf %836, %837 : vector<16x8xf32>
    %cst_111 = arith.constant 5.000000e-01 : f32
    %839 = vector.broadcast %cst_111 : f32 to vector<16x8xf32>
    %840 = arith.mulf %839, %838 : vector<16x8xf32>
    %841 = arith.select %226, %836, %840 : vector<16x8xi1>, vector<16x8xf32>
    %842 = vector.extract_strided_slice %841 {offsets = [0, 0], sizes = [16, 2], strides = [1, 1]} : vector<16x8xf32> to vector<16x2xf32>
    %843 = vector.extract_strided_slice %841 {offsets = [0, 2], sizes = [16, 2], strides = [1, 1]} : vector<16x8xf32> to vector<16x2xf32>
    %844 = vector.extract_strided_slice %841 {offsets = [0, 4], sizes = [16, 2], strides = [1, 1]} : vector<16x8xf32> to vector<16x2xf32>
    %845 = vector.extract_strided_slice %841 {offsets = [0, 6], sizes = [16, 2], strides = [1, 1]} : vector<16x8xf32> to vector<16x2xf32>
    %846 = arith.mulf %843, %774 : vector<16x2xf32>
    %847 = arith.mulf %842, %844 : vector<16x2xf32>
    %848 = arith.addf %846, %847 : vector<16x2xf32>
    %849 = math.tanh %848 : vector<16x2xf32>
    %850 = arith.mulf %845, %849 : vector<16x2xf32>
    %851 = vector.extract_strided_slice %850 {offsets = [0, 0], sizes = [16, 1], strides = [1, 1]} : vector<16x2xf32> to vector<16x1xf32>
    %852 = vector.extract_strided_slice %218 {offsets = [0, 0], sizes = [1, 8], strides = [1, 1]} : vector<2x8xf32> to vector<1x8xf32>
    %853 = vector.broadcast %851 : vector<16x1xf32> to vector<16x8xf32>
    %854 = vector.broadcast %852 : vector<1x8xf32> to vector<16x8xf32>
    %855 = arith.mulf %853, %854 : vector<16x8xf32>
    %856 = vector.extract_strided_slice %850 {offsets = [0, 1], sizes = [16, 1], strides = [1, 1]} : vector<16x2xf32> to vector<16x1xf32>
    %857 = vector.extract_strided_slice %218 {offsets = [1, 0], sizes = [1, 8], strides = [1, 1]} : vector<2x8xf32> to vector<1x8xf32>
    %858 = vector.broadcast %856 : vector<16x1xf32> to vector<16x8xf32>
    %859 = vector.broadcast %857 : vector<1x8xf32> to vector<16x8xf32>
    %860 = arith.mulf %858, %859 : vector<16x8xf32>
    %861 = arith.addf %855, %860 : vector<16x8xf32>
    %862 = vector.extract_strided_slice %819 {offsets = [0, 0], sizes = [16, 1], strides = [1, 1]} : vector<16x2xf32> to vector<16x1xf32>
    %863 = vector.extract_strided_slice %219 {offsets = [0, 0], sizes = [1, 8], strides = [1, 1]} : vector<2x8xf32> to vector<1x8xf32>
    %864 = vector.broadcast %862 : vector<16x1xf32> to vector<16x8xf32>
    %865 = vector.broadcast %863 : vector<1x8xf32> to vector<16x8xf32>
    %866 = arith.mulf %864, %865 : vector<16x8xf32>
    %867 = vector.extract_strided_slice %819 {offsets = [0, 1], sizes = [16, 1], strides = [1, 1]} : vector<16x2xf32> to vector<16x1xf32>
    %868 = vector.extract_strided_slice %219 {offsets = [1, 0], sizes = [1, 8], strides = [1, 1]} : vector<2x8xf32> to vector<1x8xf32>
    %869 = vector.broadcast %867 : vector<16x1xf32> to vector<16x8xf32>
    %870 = vector.broadcast %868 : vector<1x8xf32> to vector<16x8xf32>
    %871 = arith.mulf %869, %870 : vector<16x8xf32>
    %872 = arith.addf %866, %871 : vector<16x8xf32>
    %873 = arith.addf %861, %872 : vector<16x8xf32>
    %874 = vector.broadcast %220 : vector<1x8xf32> to vector<16x8xf32>
    %875 = arith.addf %873, %874 : vector<16x8xf32>
    %cst_112 = arith.constant 5.000000e-01 : f32
    %876 = vector.broadcast %cst_112 : f32 to vector<16x8xf32>
    %877 = arith.mulf %876, %875 : vector<16x8xf32>
    %878 = arith.select %226, %875, %877 : vector<16x8xi1>, vector<16x8xf32>
    %879 = math.tanh %878 : vector<16x8xf32>
    %cst_113 = arith.constant 1.000000e+00 : f32
    %880 = vector.broadcast %cst_113 : f32 to vector<16x8xf32>
    %881 = arith.addf %879, %880 : vector<16x8xf32>
    %cst_114 = arith.constant 5.000000e-01 : f32
    %882 = vector.broadcast %cst_114 : f32 to vector<16x8xf32>
    %883 = arith.mulf %882, %881 : vector<16x8xf32>
    %884 = arith.select %226, %879, %883 : vector<16x8xi1>, vector<16x8xf32>
    %885 = vector.extract_strided_slice %884 {offsets = [0, 0], sizes = [16, 2], strides = [1, 1]} : vector<16x8xf32> to vector<16x2xf32>
    %886 = vector.extract_strided_slice %884 {offsets = [0, 2], sizes = [16, 2], strides = [1, 1]} : vector<16x8xf32> to vector<16x2xf32>
    %887 = vector.extract_strided_slice %884 {offsets = [0, 4], sizes = [16, 2], strides = [1, 1]} : vector<16x8xf32> to vector<16x2xf32>
    %888 = vector.extract_strided_slice %884 {offsets = [0, 6], sizes = [16, 2], strides = [1, 1]} : vector<16x8xf32> to vector<16x2xf32>
    %889 = arith.mulf %886, %817 : vector<16x2xf32>
    %890 = arith.mulf %885, %887 : vector<16x2xf32>
    %891 = arith.addf %889, %890 : vector<16x2xf32>
    %892 = math.tanh %891 : vector<16x2xf32>
    %893 = arith.mulf %888, %892 : vector<16x2xf32>
    %894 = vector.extract_strided_slice %215 {offsets = [0, 72], sizes = [16, 8], strides = [1, 1]} : vector<16x88xf32> to vector<16x8xf32>
    %895 = vector.extract_strided_slice %850 {offsets = [0, 0], sizes = [16, 1], strides = [1, 1]} : vector<16x2xf32> to vector<16x1xf32>
    %896 = vector.extract_strided_slice %217 {offsets = [0, 0], sizes = [1, 8], strides = [1, 1]} : vector<2x8xf32> to vector<1x8xf32>
    %897 = vector.broadcast %895 : vector<16x1xf32> to vector<16x8xf32>
    %898 = vector.broadcast %896 : vector<1x8xf32> to vector<16x8xf32>
    %899 = arith.mulf %897, %898 : vector<16x8xf32>
    %900 = vector.extract_strided_slice %850 {offsets = [0, 1], sizes = [16, 1], strides = [1, 1]} : vector<16x2xf32> to vector<16x1xf32>
    %901 = vector.extract_strided_slice %217 {offsets = [1, 0], sizes = [1, 8], strides = [1, 1]} : vector<2x8xf32> to vector<1x8xf32>
    %902 = vector.broadcast %900 : vector<16x1xf32> to vector<16x8xf32>
    %903 = vector.broadcast %901 : vector<1x8xf32> to vector<16x8xf32>
    %904 = arith.mulf %902, %903 : vector<16x8xf32>
    %905 = arith.addf %899, %904 : vector<16x8xf32>
    %906 = arith.addf %894, %905 : vector<16x8xf32>
    %cst_115 = arith.constant 5.000000e-01 : f32
    %907 = vector.broadcast %cst_115 : f32 to vector<16x8xf32>
    %908 = arith.mulf %907, %906 : vector<16x8xf32>
    %909 = arith.select %226, %906, %908 : vector<16x8xi1>, vector<16x8xf32>
    %910 = math.tanh %909 : vector<16x8xf32>
    %cst_116 = arith.constant 1.000000e+00 : f32
    %911 = vector.broadcast %cst_116 : f32 to vector<16x8xf32>
    %912 = arith.addf %910, %911 : vector<16x8xf32>
    %cst_117 = arith.constant 5.000000e-01 : f32
    %913 = vector.broadcast %cst_117 : f32 to vector<16x8xf32>
    %914 = arith.mulf %913, %912 : vector<16x8xf32>
    %915 = arith.select %226, %910, %914 : vector<16x8xi1>, vector<16x8xf32>
    %916 = vector.extract_strided_slice %915 {offsets = [0, 0], sizes = [16, 2], strides = [1, 1]} : vector<16x8xf32> to vector<16x2xf32>
    %917 = vector.extract_strided_slice %915 {offsets = [0, 2], sizes = [16, 2], strides = [1, 1]} : vector<16x8xf32> to vector<16x2xf32>
    %918 = vector.extract_strided_slice %915 {offsets = [0, 4], sizes = [16, 2], strides = [1, 1]} : vector<16x8xf32> to vector<16x2xf32>
    %919 = vector.extract_strided_slice %915 {offsets = [0, 6], sizes = [16, 2], strides = [1, 1]} : vector<16x8xf32> to vector<16x2xf32>
    %920 = arith.mulf %917, %848 : vector<16x2xf32>
    %921 = arith.mulf %916, %918 : vector<16x2xf32>
    %922 = arith.addf %920, %921 : vector<16x2xf32>
    %923 = math.tanh %922 : vector<16x2xf32>
    %924 = arith.mulf %919, %923 : vector<16x2xf32>
    %925 = vector.extract_strided_slice %924 {offsets = [0, 0], sizes = [16, 1], strides = [1, 1]} : vector<16x2xf32> to vector<16x1xf32>
    %926 = vector.extract_strided_slice %218 {offsets = [0, 0], sizes = [1, 8], strides = [1, 1]} : vector<2x8xf32> to vector<1x8xf32>
    %927 = vector.broadcast %925 : vector<16x1xf32> to vector<16x8xf32>
    %928 = vector.broadcast %926 : vector<1x8xf32> to vector<16x8xf32>
    %929 = arith.mulf %927, %928 : vector<16x8xf32>
    %930 = vector.extract_strided_slice %924 {offsets = [0, 1], sizes = [16, 1], strides = [1, 1]} : vector<16x2xf32> to vector<16x1xf32>
    %931 = vector.extract_strided_slice %218 {offsets = [1, 0], sizes = [1, 8], strides = [1, 1]} : vector<2x8xf32> to vector<1x8xf32>
    %932 = vector.broadcast %930 : vector<16x1xf32> to vector<16x8xf32>
    %933 = vector.broadcast %931 : vector<1x8xf32> to vector<16x8xf32>
    %934 = arith.mulf %932, %933 : vector<16x8xf32>
    %935 = arith.addf %929, %934 : vector<16x8xf32>
    %936 = vector.extract_strided_slice %893 {offsets = [0, 0], sizes = [16, 1], strides = [1, 1]} : vector<16x2xf32> to vector<16x1xf32>
    %937 = vector.extract_strided_slice %219 {offsets = [0, 0], sizes = [1, 8], strides = [1, 1]} : vector<2x8xf32> to vector<1x8xf32>
    %938 = vector.broadcast %936 : vector<16x1xf32> to vector<16x8xf32>
    %939 = vector.broadcast %937 : vector<1x8xf32> to vector<16x8xf32>
    %940 = arith.mulf %938, %939 : vector<16x8xf32>
    %941 = vector.extract_strided_slice %893 {offsets = [0, 1], sizes = [16, 1], strides = [1, 1]} : vector<16x2xf32> to vector<16x1xf32>
    %942 = vector.extract_strided_slice %219 {offsets = [1, 0], sizes = [1, 8], strides = [1, 1]} : vector<2x8xf32> to vector<1x8xf32>
    %943 = vector.broadcast %941 : vector<16x1xf32> to vector<16x8xf32>
    %944 = vector.broadcast %942 : vector<1x8xf32> to vector<16x8xf32>
    %945 = arith.mulf %943, %944 : vector<16x8xf32>
    %946 = arith.addf %940, %945 : vector<16x8xf32>
    %947 = arith.addf %935, %946 : vector<16x8xf32>
    %948 = vector.broadcast %220 : vector<1x8xf32> to vector<16x8xf32>
    %949 = arith.addf %947, %948 : vector<16x8xf32>
    %cst_118 = arith.constant 5.000000e-01 : f32
    %950 = vector.broadcast %cst_118 : f32 to vector<16x8xf32>
    %951 = arith.mulf %950, %949 : vector<16x8xf32>
    %952 = arith.select %226, %949, %951 : vector<16x8xi1>, vector<16x8xf32>
    %953 = math.tanh %952 : vector<16x8xf32>
    %cst_119 = arith.constant 1.000000e+00 : f32
    %954 = vector.broadcast %cst_119 : f32 to vector<16x8xf32>
    %955 = arith.addf %953, %954 : vector<16x8xf32>
    %cst_120 = arith.constant 5.000000e-01 : f32
    %956 = vector.broadcast %cst_120 : f32 to vector<16x8xf32>
    %957 = arith.mulf %956, %955 : vector<16x8xf32>
    %958 = arith.select %226, %953, %957 : vector<16x8xi1>, vector<16x8xf32>
    %959 = vector.extract_strided_slice %958 {offsets = [0, 0], sizes = [16, 2], strides = [1, 1]} : vector<16x8xf32> to vector<16x2xf32>
    %960 = vector.extract_strided_slice %958 {offsets = [0, 2], sizes = [16, 2], strides = [1, 1]} : vector<16x8xf32> to vector<16x2xf32>
    %961 = vector.extract_strided_slice %958 {offsets = [0, 4], sizes = [16, 2], strides = [1, 1]} : vector<16x8xf32> to vector<16x2xf32>
    %962 = vector.extract_strided_slice %958 {offsets = [0, 6], sizes = [16, 2], strides = [1, 1]} : vector<16x8xf32> to vector<16x2xf32>
    %963 = arith.mulf %960, %891 : vector<16x2xf32>
    %964 = arith.mulf %959, %961 : vector<16x2xf32>
    %965 = arith.addf %963, %964 : vector<16x2xf32>
    %966 = math.tanh %965 : vector<16x2xf32>
    %967 = arith.mulf %962, %966 : vector<16x2xf32>
    %968 = vector.extract_strided_slice %215 {offsets = [0, 80], sizes = [16, 8], strides = [1, 1]} : vector<16x88xf32> to vector<16x8xf32>
    %969 = vector.extract_strided_slice %924 {offsets = [0, 0], sizes = [16, 1], strides = [1, 1]} : vector<16x2xf32> to vector<16x1xf32>
    %970 = vector.extract_strided_slice %217 {offsets = [0, 0], sizes = [1, 8], strides = [1, 1]} : vector<2x8xf32> to vector<1x8xf32>
    %971 = vector.broadcast %969 : vector<16x1xf32> to vector<16x8xf32>
    %972 = vector.broadcast %970 : vector<1x8xf32> to vector<16x8xf32>
    %973 = arith.mulf %971, %972 : vector<16x8xf32>
    %974 = vector.extract_strided_slice %924 {offsets = [0, 1], sizes = [16, 1], strides = [1, 1]} : vector<16x2xf32> to vector<16x1xf32>
    %975 = vector.extract_strided_slice %217 {offsets = [1, 0], sizes = [1, 8], strides = [1, 1]} : vector<2x8xf32> to vector<1x8xf32>
    %976 = vector.broadcast %974 : vector<16x1xf32> to vector<16x8xf32>
    %977 = vector.broadcast %975 : vector<1x8xf32> to vector<16x8xf32>
    %978 = arith.mulf %976, %977 : vector<16x8xf32>
    %979 = arith.addf %973, %978 : vector<16x8xf32>
    %980 = arith.addf %968, %979 : vector<16x8xf32>
    %cst_121 = arith.constant 5.000000e-01 : f32
    %981 = vector.broadcast %cst_121 : f32 to vector<16x8xf32>
    %982 = arith.mulf %981, %980 : vector<16x8xf32>
    %983 = arith.select %226, %980, %982 : vector<16x8xi1>, vector<16x8xf32>
    %984 = math.tanh %983 : vector<16x8xf32>
    %cst_122 = arith.constant 1.000000e+00 : f32
    %985 = vector.broadcast %cst_122 : f32 to vector<16x8xf32>
    %986 = arith.addf %984, %985 : vector<16x8xf32>
    %cst_123 = arith.constant 5.000000e-01 : f32
    %987 = vector.broadcast %cst_123 : f32 to vector<16x8xf32>
    %988 = arith.mulf %987, %986 : vector<16x8xf32>
    %989 = arith.select %226, %984, %988 : vector<16x8xi1>, vector<16x8xf32>
    %990 = vector.extract_strided_slice %989 {offsets = [0, 0], sizes = [16, 2], strides = [1, 1]} : vector<16x8xf32> to vector<16x2xf32>
    %991 = vector.extract_strided_slice %989 {offsets = [0, 2], sizes = [16, 2], strides = [1, 1]} : vector<16x8xf32> to vector<16x2xf32>
    %992 = vector.extract_strided_slice %989 {offsets = [0, 4], sizes = [16, 2], strides = [1, 1]} : vector<16x8xf32> to vector<16x2xf32>
    %993 = vector.extract_strided_slice %989 {offsets = [0, 6], sizes = [16, 2], strides = [1, 1]} : vector<16x8xf32> to vector<16x2xf32>
    %994 = arith.mulf %991, %922 : vector<16x2xf32>
    %995 = arith.mulf %990, %992 : vector<16x2xf32>
    %996 = arith.addf %994, %995 : vector<16x2xf32>
    %997 = math.tanh %996 : vector<16x2xf32>
    %998 = arith.mulf %993, %997 : vector<16x2xf32>
    %999 = vector.extract_strided_slice %998 {offsets = [0, 0], sizes = [16, 1], strides = [1, 1]} : vector<16x2xf32> to vector<16x1xf32>
    %1000 = vector.extract_strided_slice %218 {offsets = [0, 0], sizes = [1, 8], strides = [1, 1]} : vector<2x8xf32> to vector<1x8xf32>
    %1001 = vector.broadcast %999 : vector<16x1xf32> to vector<16x8xf32>
    %1002 = vector.broadcast %1000 : vector<1x8xf32> to vector<16x8xf32>
    %1003 = arith.mulf %1001, %1002 : vector<16x8xf32>
    %1004 = vector.extract_strided_slice %998 {offsets = [0, 1], sizes = [16, 1], strides = [1, 1]} : vector<16x2xf32> to vector<16x1xf32>
    %1005 = vector.extract_strided_slice %218 {offsets = [1, 0], sizes = [1, 8], strides = [1, 1]} : vector<2x8xf32> to vector<1x8xf32>
    %1006 = vector.broadcast %1004 : vector<16x1xf32> to vector<16x8xf32>
    %1007 = vector.broadcast %1005 : vector<1x8xf32> to vector<16x8xf32>
    %1008 = arith.mulf %1006, %1007 : vector<16x8xf32>
    %1009 = arith.addf %1003, %1008 : vector<16x8xf32>
    %1010 = vector.extract_strided_slice %967 {offsets = [0, 0], sizes = [16, 1], strides = [1, 1]} : vector<16x2xf32> to vector<16x1xf32>
    %1011 = vector.extract_strided_slice %219 {offsets = [0, 0], sizes = [1, 8], strides = [1, 1]} : vector<2x8xf32> to vector<1x8xf32>
    %1012 = vector.broadcast %1010 : vector<16x1xf32> to vector<16x8xf32>
    %1013 = vector.broadcast %1011 : vector<1x8xf32> to vector<16x8xf32>
    %1014 = arith.mulf %1012, %1013 : vector<16x8xf32>
    %1015 = vector.extract_strided_slice %967 {offsets = [0, 1], sizes = [16, 1], strides = [1, 1]} : vector<16x2xf32> to vector<16x1xf32>
    %1016 = vector.extract_strided_slice %219 {offsets = [1, 0], sizes = [1, 8], strides = [1, 1]} : vector<2x8xf32> to vector<1x8xf32>
    %1017 = vector.broadcast %1015 : vector<16x1xf32> to vector<16x8xf32>
    %1018 = vector.broadcast %1016 : vector<1x8xf32> to vector<16x8xf32>
    %1019 = arith.mulf %1017, %1018 : vector<16x8xf32>
    %1020 = arith.addf %1014, %1019 : vector<16x8xf32>
    %1021 = arith.addf %1009, %1020 : vector<16x8xf32>
    %1022 = vector.broadcast %220 : vector<1x8xf32> to vector<16x8xf32>
    %1023 = arith.addf %1021, %1022 : vector<16x8xf32>
    %cst_124 = arith.constant 5.000000e-01 : f32
    %1024 = vector.broadcast %cst_124 : f32 to vector<16x8xf32>
    %1025 = arith.mulf %1024, %1023 : vector<16x8xf32>
    %1026 = arith.select %226, %1023, %1025 : vector<16x8xi1>, vector<16x8xf32>
    %1027 = math.tanh %1026 : vector<16x8xf32>
    %cst_125 = arith.constant 1.000000e+00 : f32
    %1028 = vector.broadcast %cst_125 : f32 to vector<16x8xf32>
    %1029 = arith.addf %1027, %1028 : vector<16x8xf32>
    %cst_126 = arith.constant 5.000000e-01 : f32
    %1030 = vector.broadcast %cst_126 : f32 to vector<16x8xf32>
    %1031 = arith.mulf %1030, %1029 : vector<16x8xf32>
    %1032 = arith.select %226, %1027, %1031 : vector<16x8xi1>, vector<16x8xf32>
    %1033 = vector.extract_strided_slice %1032 {offsets = [0, 0], sizes = [16, 2], strides = [1, 1]} : vector<16x8xf32> to vector<16x2xf32>
    %1034 = vector.extract_strided_slice %1032 {offsets = [0, 2], sizes = [16, 2], strides = [1, 1]} : vector<16x8xf32> to vector<16x2xf32>
    %1035 = vector.extract_strided_slice %1032 {offsets = [0, 4], sizes = [16, 2], strides = [1, 1]} : vector<16x8xf32> to vector<16x2xf32>
    %1036 = vector.extract_strided_slice %1032 {offsets = [0, 6], sizes = [16, 2], strides = [1, 1]} : vector<16x8xf32> to vector<16x2xf32>
    %1037 = arith.mulf %1034, %965 : vector<16x2xf32>
    %1038 = arith.mulf %1033, %1035 : vector<16x2xf32>
    %1039 = arith.addf %1037, %1038 : vector<16x2xf32>
    %1040 = math.tanh %1039 : vector<16x2xf32>
    %1041 = arith.mulf %1036, %1040 : vector<16x2xf32>
    %1042 = tpu.concatenate %301, %375, %449, %523, %597, %671, %745, %819, %893, %967 in 1 : vector<16x2xf32>, vector<16x2xf32>, vector<16x2xf32>, vector<16x2xf32>, vector<16x2xf32>, vector<16x2xf32>, vector<16x2xf32>, vector<16x2xf32>, vector<16x2xf32>, vector<16x2xf32> -> vector<16x20xf32>
    %c72 = arith.constant 72 : index
    %c0_127 = arith.constant 0 : index
    %1043 = vector.load %arg3[%c72, %c0_127] : memref<120x128xf32, #tpu.memory_space<vmem>>, vector<20x12xf32>
    %c92 = arith.constant 92 : index
    %c0_128 = arith.constant 0 : index
    %1044 = vector.load %arg3[%c92, %c0_128] : memref<120x128xf32, #tpu.memory_space<vmem>>, vector<1x12xf32>
    %cst_129 = arith.constant dense<0.000000e+00> : vector<16x12xf32>
    %1045 = tpu.matmul %1042, %1043, %cst_129 {dimension_numbers = #tpu.dot_dimension_numbers<[1], [0], [0], [1], [0, 0, 1, 1], [], []>} : vector<16x20xf32>, vector<20x12xf32>, vector<16x12xf32> -> vector<16x12xf32>
    %1046 = vector.broadcast %1044 : vector<1x12xf32> to vector<16x12xf32>
    %1047 = arith.addf %1045, %1046 : vector<16x12xf32>
    %c96 = arith.constant 96 : index
    %c0_130 = arith.constant 0 : index
    %1048 = vector.load %arg3[%c96, %c0_130] : memref<120x128xf32, #tpu.memory_space<vmem>>, vector<12x4xf32>
    %c108 = arith.constant 108 : index
    %c0_131 = arith.constant 0 : index
    %1049 = vector.load %arg3[%c108, %c0_131] : memref<120x128xf32, #tpu.memory_space<vmem>>, vector<1x4xf32>
    %cst_132 = arith.constant dense<0.000000e+00> : vector<16x4xf32>
    %1050 = tpu.matmul %1047, %1048, %cst_132 {dimension_numbers = #tpu.dot_dimension_numbers<[1], [0], [0], [1], [0, 0, 1, 1], [], []>} : vector<16x12xf32>, vector<12x4xf32>, vector<16x4xf32> -> vector<16x4xf32>
    %1051 = vector.broadcast %1049 : vector<1x4xf32> to vector<16x4xf32>
    %1052 = arith.addf %1050, %1051 : vector<16x4xf32>
    %1053 = vector.extract_strided_slice %1052 {offsets = [0, 0], sizes = [16, 2], strides = [1, 1]} : vector<16x4xf32> to vector<16x2xf32>
    %1054 = arith.mulf %1053, %1041 : vector<16x2xf32>
    %cst_133 = arith.constant dense<0.000000e+00> : vector<16xf32>
    %1055 = vector.multi_reduction <add>, %1054, %cst_133 [1] : vector<16x2xf32> to vector<16xf32>
    %1056 = vector.shape_cast %1055 : vector<16xf32> to vector<16x1xf32>
    %1057 = vector.extract_strided_slice %1052 {offsets = [0, 2], sizes = [16, 2], strides = [1, 1]} : vector<16x4xf32> to vector<16x2xf32>
    %1058 = arith.mulf %1057, %1041 : vector<16x2xf32>
    %cst_134 = arith.constant dense<0.000000e+00> : vector<16xf32>
    %1059 = vector.multi_reduction <add>, %1058, %cst_134 [1] : vector<16x2xf32> to vector<16xf32>
    %1060 = vector.shape_cast %1059 : vector<16xf32> to vector<16x1xf32>
    %1061 = tpu.concatenate %1056, %1060 in 1 : vector<16x1xf32>, vector<16x1xf32> -> vector<16x2xf32>
    %1062 = arith.negf %1061 : vector<16x2xf32>
    %1063 = math.exp %1062 : vector<16x2xf32>
    %cst_135 = arith.constant 1.000000e+00 : f32
    %1064 = vector.broadcast %cst_135 : f32 to vector<16x2xf32>
    %1065 = arith.addf %1064, %1063 : vector<16x2xf32>
    %1066 = arith.divf %1064, %1065 : vector<16x2xf32>
    %1067 = vector.extract_strided_slice %1066 {offsets = [0, 0], sizes = [16, 1], strides = [1, 1]} : vector<16x2xf32> to vector<16x1xf32>
    %1068 = vector.extract_strided_slice %1047 {offsets = [0, 0], sizes = [16, 6], strides = [1, 1]} : vector<16x12xf32> to vector<16x6xf32>
    %1069 = vector.broadcast %1067 : vector<16x1xf32> to vector<16x6xf32>
    %1070 = arith.mulf %1069, %1068 : vector<16x6xf32>
    %1071 = vector.extract_strided_slice %1066 {offsets = [0, 1], sizes = [16, 1], strides = [1, 1]} : vector<16x2xf32> to vector<16x1xf32>
    %1072 = vector.extract_strided_slice %1047 {offsets = [0, 6], sizes = [16, 6], strides = [1, 1]} : vector<16x12xf32> to vector<16x6xf32>
    %1073 = vector.broadcast %1071 : vector<16x1xf32> to vector<16x6xf32>
    %1074 = arith.mulf %1073, %1072 : vector<16x6xf32>
    %1075 = arith.addf %1070, %1074 : vector<16x6xf32>
    %c112 = arith.constant 112 : index
    %c0_136 = arith.constant 0 : index
    %1076 = vector.load %arg3[%c112, %c0_136] : memref<120x128xf32, #tpu.memory_space<vmem>>, vector<1x9xf32>
    %1077 = tpu.concatenate %1075, %1041 in 1 : vector<16x6xf32>, vector<16x2xf32> -> vector<16x8xf32>
    %1078 = vector.extract_strided_slice %1076 {offsets = [0, 0], sizes = [1, 8], strides = [1, 1]} : vector<1x9xf32> to vector<1x8xf32>
    %1079 = vector.broadcast %1078 : vector<1x8xf32> to vector<16x8xf32>
    %1080 = arith.mulf %1077, %1079 : vector<16x8xf32>
    %cst_137 = arith.constant dense<0.000000e+00> : vector<16xf32>
    %1081 = vector.multi_reduction <add>, %1080, %cst_137 [1] : vector<16x8xf32> to vector<16xf32>
    %1082 = vector.shape_cast %1081 : vector<16xf32> to vector<16x1xf32>
    %1083 = vector.extract_strided_slice %1076 {offsets = [0, 8], sizes = [1, 1], strides = [1, 1]} : vector<1x9xf32> to vector<1x1xf32>
    %1084 = vector.broadcast %1083 : vector<1x1xf32> to vector<16x1xf32>
    %1085 = arith.addf %1082, %1084 : vector<16x1xf32>
    %c0_138 = arith.constant 0 : index
    %c0_139 = arith.constant 0 : index
    %1086 = vector.load %arg5[%c0_138, %c0_139] : memref<16x1xf32, #tpu.memory_space<vmem>>, vector<16x1xf32>
    tpu.vector_store %arg5[%c0_138, %c0_139], %1085 {strides = array<i32>} : memref<16x1xf32, #tpu.memory_space<vmem>>, vector<16x1xf32>,
    return
  }
}

</mosaic_0001>

<llo_original>
// kernel: pag_forward.1
$region0: #{pag_forward.1}
  #allocation0 [shape = 'u32[]', space=smem, size = 0x4, offset = 0x4, fixed_abs, tag = 'smem constant byte address 0x4 - core index']
  #allocation1 [shape = 'u32[144,128]{1,0:T(1,128)}', space=vmem, size = 0x12000, scoped, tag = 'internal scratch']
  %s0 = inlined_call_operand.vmem [shape: f32[16,12], index: 0, kind: input, shape index: {}]
  %s1 = inlined_call_operand.vmem [shape: f32[16,12], index: 1, kind: input, shape index: {}]
  %s2 = inlined_call_operand.vmem [shape: f32[16,16], index: 2, kind: input, shape index: {}]
  %s3 = inlined_call_operand.hbm [shape: f32[120,128], index: 3, kind: input, shape index: {}]
  %s4 = inlined_call_operand.vmem [shape: f32[10], index: 4, kind: input, shape index: {}]
  %s5 = inlined_call_operand.vmem [shape: f32[16,1], index: 5, kind: output, shape index: {}]
  %s6 = sld [smem:[#allocation0]]
  $region38: #{pag_forward.1} parent=0
    _
  %s8 = ssub.s32 1, %s6
  %s9 = scalar_select 0, %s8, %s6
  $region1: #{pag_forward.1} parent=0
    #allocation2 [shape = 'u8[61440]{0}', space=vmem, size = 0xf000, scoped, tag = 'input window, operand 3, single buffered']
    #allocation3 [shape = 's32[1]{0}', space=sflag, size = 0x4, scoped, tag = 'scoped memory for pag_forward.1']
    #allocation4 [shape = 's32[1]{0}', space=sflag, size = 0x4, scoped, tag = 'scoped memory for pag_forward.1']
    #allocation5 [shape = 'u8[512]{0}', space=smem, size = 0x200, scoped, tag = 'input window, operand 4, single buffered']
    %10 = vsyncpa [#allocation3], 0
    %11 = vsyncpa [#allocation4], 0
    // Predicated region
    $region2: #{pag_forward.1} parent=1 // pred_check
      _
    $region3: #{pag_forward.1} parent=1 // pred_check_branch
      %13 = sbr.rel (0) target = $region5
    $region4: #{pag_forward.1} parent=1 // pred_region
      _
    $region5: #{pag_forward.1} parent=1 // pred_fallthru
      _
    // Predicated region
    $region6: #{pag_forward.1} parent=1 // pred_check
      _
    $region7: #{pag_forward.1} parent=1 // pred_check_branch
      %15 = sbr.rel (0) target = $region9
    $region8: #{pag_forward.1} parent=1 // pred_region
      _
    $region9: #{pag_forward.1} parent=1 // pred_fallthru
      _
    // Predicated region
    $region10: #{pag_forward.1} parent=1 // pred_check
      _
    $region11: #{pag_forward.1} parent=1 // pred_check_branch
      %17 = sbr.rel (0) target = $region13
    $region12: #{pag_forward.1} parent=1 // pred_region
      _
    $region13: #{pag_forward.1} parent=1 // pred_fallthru
      _
    // Predicated region
    $region14: #{pag_forward.1} parent=1 // pred_check
      _
    $region15: #{pag_forward.1} parent=1 // pred_check_branch
      %19 = sbr.rel (0) target = $region17
    $region16: #{pag_forward.1} parent=1 // pred_region
      %s21 = ssub.s32 1920, 1920
      %22 = vsyncadd [#allocation3], %s21
      %s23 = sshll.u32 [#allocation2], 4
      %s24 = int_to_ptr.vmem [resolvable:$true] %s23
      %29 = dma.hbm_to_vmem [thread:$0]  %s3, 1920, %s24, [#allocation3], 128, 128, 8
    $region17: #{pag_forward.1} parent=1 // pred_fallthru
      _
    // Predicated region
    $region18: #{pag_forward.1} parent=1 // pred_check
      _
    $region19: #{pag_forward.1} parent=1 // pred_check_branch
      %31 = sbr.rel (0) target = $region21
    $region20: #{pag_forward.1} parent=1 // pred_region
      %s33 = ssub.s32 16, 16
      %34 = vsyncadd [#allocation4], %s33
      %s36 = sshll.u32 %s4, 4
      %s37 = int_to_ptr.vmem [resolvable:$true] %s36
      %39 = dma.vmem_to_smem %s37, 16, [#allocation5], [#allocation4]
    $region21: #{pag_forward.1} parent=1 // pred_fallthru
      _
    // Predicated region
    $region22: #{pag_forward.1} parent=1 // pred_check
      _
    $region23: #{pag_forward.1} parent=1 // pred_check_branch
      %41 = sbr.rel (0) target = $region25
    $region24: #{pag_forward.1} parent=1 // pred_region
      %42 = dma.done [#allocation3], 1920
    $region25: #{pag_forward.1} parent=1 // pred_fallthru
      _
    // Predicated region
    $region26: #{pag_forward.1} parent=1 // pred_check
      _
    $region27: #{pag_forward.1} parent=1 // pred_check_branch
      %44 = sbr.rel (0) target = $region29
    $region28: #{pag_forward.1} parent=1 // pred_region
      %45 = dma.done [#allocation4], 16
    $region29: #{pag_forward.1} parent=1 // pred_fallthru
      _
    %46 = sfence
    %v47 = vld [vmem:[%s0] sm:$0xff]
    %v48 = vld [vmem:[%s0 + $0x8] sm:$0xff]
    %v49 = vld [vmem:[%s1] sm:$0xff]
    %v50 = vld [vmem:[%s1 + $0x8] sm:$0xff]
    %s51 = sld [smem:[#allocation5]]
    %v52 = vstv %s51
    %v53 = vmul.f32 %v52, %v47
    %v54 = vmul.f32 %v52, %v48
    %s55 = sld [smem:[#allocation5 + $0x1]]
    %v56 = vstv %s55
    %v57 = vmul.f32 %v56, %v49
    %v58 = vmul.f32 %v56, %v50
    %v59 = vadd.f32 %v53, %v57
    %v60 = vadd.f32 %v54, %v58
    %s61 = sld [smem:[#allocation5 + $0x2]]
    %v62 = vstv %s61
    %v63 = vmul.f32 %v62, %v47
    %v64 = vmul.f32 %v62, %v48
    %67 = vrot.lane.b32.xlu0 %v63, 127
    %v68 = vpop.permute.xlu0 %67
    %69 = vrot.lane.b32.xlu0 %v64, 127
    %v70 = vpop.permute.xlu0 %69
    %v73 = vadd.f32 %v59, %v68
    %v74 = vadd.f32 %v60, %v70
    %s75 = sld [smem:[#allocation5 + $0x3]]
    %v76 = vstv %s75
    %v77 = vmul.f32 %v76, %v49
    %v78 = vmul.f32 %v76, %v50
    %81 = vrot.lane.b32.xlu0 %v77, 127
    %v82 = vpop.permute.xlu0 %81
    %83 = vrot.lane.b32.xlu0 %v78, 127
    %v84 = vpop.permute.xlu0 %83
    %v87 = vadd.f32 %v73, %v82
    %v88 = vadd.f32 %v74, %v84
    %s89 = sld [smem:[#allocation5 + $0x4]]
    %v90 = vstv %s89
    %v91 = vadd.f32 %v87, %v90
    %v92 = vadd.f32 %v88, %v90
    %v93 = vld [vmem:[%s2] sm:$0xff]
    %v94 = vld [vmem:[%s2 + $0x8] sm:$0xff]
    %vm95 = vcmp.eq.f32.partialorder %v93, 0.0
    %vm96 = vcmp.eq.f32.partialorder %v94, 0.0
    %v97 = vsel %vm95, -1e+09, 0.0
    %v98 = vsel %vm96, -1e+09, 0.0
    %v99 = vld [vmem:[#allocation2] sm:$0xf]
    %v100 = vld [vmem:[#allocation2 + $0x4] sm:$0xf]
    %v101 = vld [vmem:[#allocation2 + $0x8] sm:$0xff]
    %v102 = vld [vmem:[#allocation2 + $0x10] sm:$0x7]
    %v103 = vld [vmem:[#allocation2 + $0x18] sm:$0x1]
    %vm104 = vcmask 89088
    %v106 = vsel %vm104, %v91, 0
    %v109 = vsel %vm104, %v99, 0
    %111 = vmatprep.subr.mxu0 0.0
    %112 = vmatpush1.xpose.msra.mxu0 %v109
    %113 = vmatprep.subr.mxu0 0.0
    %114 = vmatpush1.xpose.msra.mxu0 0.0
    %115 = vmatprep.subr.mxu0 0.0
    %116 = vmatpush1.xpose.msra.mxu0 0.0
    %117 = vmatprep.subr.mxu0 0.0
    %118 = vmatpush1.xpose.msra.mxu0 0.0
    %119 = vmatprep.subr.mxu0 0.0
    %120 = vmatpush1.xpose.msra.mxu0 0.0
    %121 = vmatprep.subr.mxu0 0.0
    %122 = vmatpush1.xpose.msra.mxu0 0.0
    %123 = vmatprep.subr.mxu0 0.0
    %124 = vmatpush1.xpose.msra.mxu0 0.0
    %125 = vmatprep.subr.mxu0 0.0
    %126 = vmatpush1.xpose.msra.mxu0 0.0
    %127 = vmatprep.subr.mxu0 0.0
    %128 = vmatpush1.xpose.msra.mxu0 0.0
    %129 = vmatprep.subr.mxu0 0.0
    %130 = vmatpush1.xpose.msra.mxu0 0.0
    %131 = vmatprep.subr.mxu0 0.0
    %132 = vmatpush1.xpose.msra.mxu0 0.0
    %133 = vmatprep.subr.mxu0 0.0
    %134 = vmatpush1.xpose.msra.mxu0 0.0
    %135 = vmatprep.subr.mxu0 0.0
    %136 = vmatpush1.xpose.msra.mxu0 0.0
    %137 = vmatprep.subr.mxu0 0.0
    %138 = vmatpush1.xpose.msra.mxu0 0.0
    %139 = vmatprep.subr.mxu0 0.0
    %140 = vmatpush1.xpose.msra.mxu0 0.0
    %141 = vmatprep.subr.mxu0 0.0
    %142 = vmatpush1.xpose.msra.mxu0 0.0
    %143 = vmatprep.subr.mxu0 0.0
    %144 = vmatpush1.xpose.msra.mxu0 0.0
    %145 = vmatprep.subr.mxu0 0.0
    %146 = vmatpush1.xpose.msra.mxu0 0.0
    %147 = vmatprep.subr.mxu0 0.0
    %148 = vmatpush1.xpose.msra.mxu0 0.0
    %149 = vmatprep.subr.mxu0 0.0
    %150 = vmatpush1.xpose.msra.mxu0 0.0
    %151 = vmatprep.subr.mxu0 0.0
    %152 = vmatpush1.xpose.msra.mxu0 0.0
    %153 = vmatprep.subr.mxu0 0.0
    %154 = vmatpush1.xpose.msra.mxu0 0.0
    %155 = vmatprep.subr.mxu0 0.0
    %156 = vmatpush1.xpose.msra.mxu0 0.0
    %157 = vmatprep.subr.mxu0 0.0
    %158 = vmatpush1.xpose.msra.mxu0 0.0
    %159 = vmatprep.subr.mxu0 0.0
    %160 = vmatpush1.xpose.msra.mxu0 0.0
    %161 = vmatprep.subr.mxu0 0.0
    %162 = vmatpush1.xpose.msra.mxu0 0.0
    %163 = vmatprep.subr.mxu0 0.0
    %164 = vmatpush1.xpose.msra.mxu0 0.0
    %165 = vmatprep.subr.mxu0 0.0
    %166 = vmatpush1.xpose.msra.mxu0 0.0
    %167 = vmatprep.subr.mxu0 0.0
    %168 = vmatpush1.xpose.msra.mxu0 0.0
    %169 = vmatprep.subr.mxu0 0.0
    %170 = vmatpush1.xpose.msra.mxu0 0.0
    %171 = vmatprep.subr.mxu0 0.0
    %172 = vmatpush1.xpose.msra.mxu0 0.0
    %173 = vmatprep.subr.mxu0 0.0
    %174 = vmatpush1.xpose.msra.mxu0 0.0
    %175 = vmatprep.mubr.f32.mxu0 0.0
    %176 = vmatmul.mubr.f32.gmra.mrb[0].mxu0 %v106
    %v177 = vpop.f32.mrb[0].mxu0
    %v178 = vadd.f32 0.0, %v177
    %v179 = vpop.f32.mrb[0].mxu0
    %180 = vdwg.mxu0
    %v182 = vsel %vm104, %v100, 0
    %184 = vmatprep.subr.mxu0 0.0
    %185 = vmatpush1.xpose.msra.mxu0 %v106
    %186 = vmatprep.subr.mxu0 0.0
    %187 = vmatpush1.xpose.msra.mxu0 0.0
    %188 = vmatprep.subr.mxu0 0.0
    %189 = vmatpush1.xpose.msra.mxu0 0.0
    %190 = vmatprep.subr.mxu0 0.0
    %191 = vmatpush1.xpose.msra.mxu0 0.0
    %192 = vmatprep.subr.mxu0 0.0
    %193 = vmatpush1.xpose.msra.mxu0 0.0
    %194 = vmatprep.subr.mxu0 0.0
    %195 = vmatpush1.xpose.msra.mxu0 0.0
    %196 = vmatprep.subr.mxu0 0.0
    %197 = vmatpush1.xpose.msra.mxu0 0.0
    %198 = vmatprep.subr.mxu0 0.0
    %199 = vmatpush1.xpose.msra.mxu0 0.0
    %200 = vmatprep.subr.mxu0 0.0
    %201 = vmatpush1.xpose.msra.mxu0 0.0
    %202 = vmatprep.subr.mxu0 0.0
    %203 = vmatpush1.xpose.msra.mxu0 0.0
    %204 = vmatprep.subr.mxu0 0.0
    %205 = vmatpush1.xpose.msra.mxu0 0.0
    %206 = vmatprep.subr.mxu0 0.0
    %207 = vmatpush1.xpose.msra.mxu0 0.0
    %208 = vmatprep.subr.mxu0 0.0
    %209 = vmatpush1.xpose.msra.mxu0 0.0
    %210 = vmatprep.subr.mxu0 0.0
    %211 = vmatpush1.xpose.msra.mxu0 0.0
    %212 = vmatprep.subr.mxu0 0.0
    %213 = vmatpush1.xpose.msra.mxu0 0.0
    %214 = vmatprep.subr.mxu0 0.0
    %215 = vmatpush1.xpose.msra.mxu0 0.0
    %216 = vmatprep.subr.mxu0 0.0
    %217 = vmatpush1.xpose.msra.mxu0 0.0
    %218 = vmatprep.subr.mxu0 0.0
    %219 = vmatpush1.xpose.msra.mxu0 0.0
    %220 = vmatprep.subr.mxu0 0.0
    %221 = vmatpush1.xpose.msra.mxu0 0.0
    %222 = vmatprep.subr.mxu0 0.0
    %223 = vmatpush1.xpose.msra.mxu0 0.0
    %224 = vmatprep.subr.mxu0 0.0
    %225 = vmatpush1.xpose.msra.mxu0 0.0
    %226 = vmatprep.subr.mxu0 0.0
    %227 = vmatpush1.xpose.msra.mxu0 0.0
    %228 = vmatprep.subr.mxu0 0.0
    %229 = vmatpush1.xpose.msra.mxu0 0.0
    %230 = vmatprep.subr.mxu0 0.0
    %231 = vmatpush1.xpose.msra.mxu0 0.0
    %232 = vmatprep.subr.mxu0 0.0
    %233 = vmatpush1.xpose.msra.mxu0 0.0
    %234 = vmatprep.subr.mxu0 0.0
    %235 = vmatpush1.xpose.msra.mxu0 0.0
    %236 = vmatprep.subr.mxu0 0.0
    %237 = vmatpush1.xpose.msra.mxu0 0.0
    %238 = vmatprep.subr.mxu0 0.0
    %239 = vmatpush1.xpose.msra.mxu0 0.0
    %240 = vmatprep.subr.mxu0 0.0
    %241 = vmatpush1.xpose.msra.mxu0 0.0
    %242 = vmatprep.subr.mxu0 0.0
    %243 = vmatpush1.xpose.msra.mxu0 0.0
    %244 = vmatprep.subr.mxu0 0.0
    %245 = vmatpush1.xpose.msra.mxu0 0.0
    %246 = vmatprep.subr.mxu0 0.0
    %247 = vmatpush1.xpose.msra.mxu0 0.0
    %248 = vmatprep.mubr.f32.mxu0 0.0
    %249 = vmatmul.mubr.f32.gmra.mrb[0].mxu0 %v182
    %v250 = vpop.f32.mrb[0].mxu0
    %v251 = vadd.f32 0.0, %v250
    %v252 = vpop.f32.mrb[0].mxu0
    %253 = vdwg.mxu0
    %255 = vrot.lane.b32.xlu0 %v251, 8
    %v256 = vpop.permute.xlu0 %255
    %vm258 = vcmask 64512
    %v259 = vsel %vm258, %v251, %v256
    %s260 = sld [smem:[#allocation5 + $0x9]]
    %v261 = vstv %s260
    %263 = vset.pattern.permute.xlu0 0
    %264 = vperm.xlu0 %263, %v178
    %v265 = vpop.permute.xlu0 %264
    %v267 = vlaneseq
    %v268 = vshrl.u32 %v267, 7
    %v269 = vsub.s32 0, %v268
    %v270 = vrot.slane %v259, %v269
    %v271 = vadd.f32 %v265, %v270
    %vm272 = vcmp.gt.f32.partialorder %v271, 0.0
    %v273 = vmul.f32 %v271, 0.2
    %v274 = vsel %vm272, %v271, %v273
    %s275 = sld [smem:[#allocation5 + $0x5]]
    %v276 = vstv %s275
    %v277 = vmul.f32 %v276, %v274
    %v278 = vadd.f32 %v261, %v277
    %279 = vset.pattern.permute.xlu0 1
    %280 = vperm.xlu0 %279, %v178
    %v281 = vpop.permute.xlu0 %280
    %v283 = vlaneseq
    %v284 = vshrl.u32 %v283, 7
    %v285 = vsub.s32 1, %v284
    %v286 = vrot.slane %v259, %v285
    %v287 = vadd.f32 %v281, %v286
    %vm288 = vcmp.gt.f32.partialorder %v287, 0.0
    %v289 = vmul.f32 %v287, 0.2
    %v290 = vsel %vm288, %v287, %v289
    %s291 = sld [smem:[#allocation5 + $0x6]]
    %v292 = vstv %s291
    %v293 = vmul.f32 %v292, %v290
    %v294 = vadd.f32 %v278, %v293
    %295 = vset.pattern.permute.xlu0 2
    %296 = vperm.xlu0 %295, %v178
    %v297 = vpop.permute.xlu0 %296
    %v299 = vlaneseq
    %v300 = vshrl.u32 %v299, 7
    %v301 = vsub.s32 2, %v300
    %v302 = vrot.slane %v259, %v301
    %v303 = vadd.f32 %v297, %v302
    %vm304 = vcmp.gt.f32.partialorder %v303, 0.0
    %v305 = vmul.f32 %v303, 0.2
    %v306 = vsel %vm304, %v303, %v305
    %s307 = sld [smem:[#allocation5 + $0x7]]
    %v308 = vstv %s307
    %v309 = vmul.f32 %v308, %v306
    %v310 = vadd.f32 %v294, %v309
    %311 = vset.pattern.permute.xlu0 3
    %312 = vperm.xlu0 %311, %v178
    %v313 = vpop.permute.xlu0 %312
    %v315 = vlaneseq
    %v316 = vshrl.u32 %v315, 7
    %v317 = vsub.s32 3, %v316
    %v318 = vrot.slane %v259, %v317
    %v319 = vadd.f32 %v313, %v318
    %vm320 = vcmp.gt.f32.partialorder %v319, 0.0
    %v321 = vmul.f32 %v319, 0.2
    %v322 = vsel %vm320, %v319, %v321
    %s323 = sld [smem:[#allocation5 + $0x8]]
    %v324 = vstv %s323
    %v325 = vmul.f32 %v324, %v322
    %v326 = vadd.f32 %v310, %v325
    %v327 = vmul.f32 %v93, %v326
    %v328 = vmul.f32 %v94, %v326
    %v329 = vadd.f32 %v327, %v97
    %v330 = vadd.f32 %v328, %v98
    %vm331 = vcmask 130048
    %v332 = vsel %vm331, %v329, -inf
    %v333 = vsel %vm331, %v330, -inf
    %v334 = vmax.f32 %v332, %v333
    %v335 = vrot.slane %v334, 4
    %v336 = vmax.f32 %v334, %v335
    %v337 = vrot.slane %v336, 2
    %v338 = vmax.f32 %v336, %v337
    %v339 = vrot.slane %v338, 1
    %v340 = vmax.f32 %v338, %v339
    %v341 = vsub.f32 %v329, %v340
    %v342 = vsub.f32 %v330, %v340
    %v343 = vmul.f32 %v341, 1.442695
    %v344 = vpow.pop %v343
    %v345 = vmul.f32 %v342, 1.442695
    %v346 = vpow.pop %v345
    %v347 = vsel %vm331, %v344, 0.0
    %v348 = vsel %vm331, %v346, 0.0
    %v349 = vadd.f32 %v347, %v348
    %v350 = vrot.slane %v349, 4
    %v351 = vadd.f32 %v349, %v350
    %v352 = vrot.slane %v351, 2
    %v353 = vadd.f32 %v351, %v352
    %v354 = vrot.slane %v353, 1
    %v355 = vadd.f32 %v353, %v354
    %v356 = vrcp.pop %v355
    %v357 = vmul.f32 %v344, %v356
    %v358 = vmul.f32 %v346, %v356
    %v360 = vsel %vm104, %v92, 0
    %vm362 = vcmask 1042432
    %v364 = vsel %vm362, %v102, 0
    %366 = vmatprep.subr.mxu0 0.0
    %367 = vmatpush1.msra.mxu0 %v101
    %368 = vmatprep.subr.mxu0 0.0
    %369 = vmatpush1.msra.mxu0 %v364
    %370 = vmatprep.subr.mxu0 0.0
    %371 = vmatpush1.msra.mxu0 0.0
    %372 = vmatprep.subr.mxu0 0.0
    %373 = vmatpush1.msra.mxu0 0.0
    %374 = vmatprep.subr.mxu0 0.0
    %375 = vmatpush1.msra.mxu0 0.0
    %376 = vmatprep.subr.mxu0 0.0
    %377 = vmatpush1.msra.mxu0 0.0
    %378 = vmatprep.subr.mxu0 0.0
    %379 = vmatpush1.msra.mxu0 0.0
    %380 = vmatprep.subr.mxu0 0.0
    %381 = vmatpush1.msra.mxu0 0.0
    %382 = vmatprep.subr.mxu0 0.0
    %383 = vmatpush1.msra.mxu0 0.0
    %384 = vmatprep.subr.mxu0 0.0
    %385 = vmatpush1.msra.mxu0 0.0
    %386 = vmatprep.subr.mxu0 0.0
    %387 = vmatpush1.msra.mxu0 0.0
    %388 = vmatprep.subr.mxu0 0.0
    %389 = vmatpush1.msra.mxu0 0.0
    %390 = vmatprep.subr.mxu0 0.0
    %391 = vmatpush1.msra.mxu0 0.0
    %392 = vmatprep.subr.mxu0 0.0
    %393 = vmatpush1.msra.mxu0 0.0
    %394 = vmatprep.subr.mxu0 0.0
    %395 = vmatpush1.msra.mxu0 0.0
    %396 = vmatprep.subr.mxu0 0.0
    %397 = vmatpush1.msra.mxu0 0.0
    %398 = vmatprep.subr.mxu0 0.0
    %399 = vmatpush1.msra.mxu0 0.0
    %400 = vmatprep.subr.mxu0 0.0
    %401 = vmatpush1.msra.mxu0 0.0
    %402 = vmatprep.subr.mxu0 0.0
    %403 = vmatpush1.msra.mxu0 0.0
    %404 = vmatprep.subr.mxu0 0.0
    %405 = vmatpush1.msra.mxu0 0.0
    %406 = vmatprep.subr.mxu0 0.0
    %407 = vmatpush1.msra.mxu0 0.0
    %408 = vmatprep.subr.mxu0 0.0
    %409 = vmatpush1.msra.mxu0 0.0
    %410 = vmatprep.subr.mxu0 0.0
    %411 = vmatpush1.msra.mxu0 0.0
    %412 = vmatprep.subr.mxu0 0.0
    %413 = vmatpush1.msra.mxu0 0.0
    %414 = vmatprep.subr.mxu0 0.0
    %415 = vmatpush1.msra.mxu0 0.0
    %416 = vmatprep.subr.mxu0 0.0
    %417 = vmatpush1.msra.mxu0 0.0
    %418 = vmatprep.subr.mxu0 0.0
    %419 = vmatpush1.msra.mxu0 0.0
    %420 = vmatprep.subr.mxu0 0.0
    %421 = vmatpush1.msra.mxu0 0.0
    %422 = vmatprep.subr.mxu0 0.0
    %423 = vmatpush1.msra.mxu0 0.0
    %424 = vmatprep.subr.mxu0 0.0
    %425 = vmatpush1.msra.mxu0 0.0
    %426 = vmatprep.subr.mxu0 0.0
    %427 = vmatpush1.msra.mxu0 0.0
    %428 = vmatprep.subr.mxu0 0.0
    %429 = vmatpush1.msra.mxu0 0.0
    %430 = vmatprep.mubr.f32.mxu0 0.0
    %431 = vmatmul.mubr.f32.gmra.mrb[0].mxu0 %v106
    %v432 = vpop.f32.mrb[0].mxu0
    %v433 = vadd.f32 0.0, %v432
    %v434 = vpop.f32.mrb[0].mxu0
    %435 = vmatprep.mubr.f32.mxu0 0.0
    %436 = vmatmul.mubr.f32.gmra.mrb[0].mxu0 %v360
    %v437 = vpop.f32.mrb[0].mxu0
    %v438 = vadd.f32 0.0, %v437
    %v439 = vpop.f32.mrb[0].mxu0
    %440 = vdwg.mxu0
    %v441 = vlaneseq
    %v442 = vshrl.u32 %v441, 7
    %v443 = vsub.s32 0, %v442
    %v444 = vrot.slane %v103, %v443
    %v446 = vsel %vm331, %v357, 0
    %v449 = vsel %vm331, %v358, 0
    %451 = vmatprep.subr.mxu0 0.0
    %452 = vmatpush1.msra.mxu0 %v433
    %453 = vmatprep.subr.mxu0 0.0
    %454 = vmatpush1.msra.mxu0 %v438
    %455 = vmatprep.subr.mxu0 0.0
    %456 = vmatpush1.msra.mxu0 0.0
    %457 = vmatprep.subr.mxu0 0.0
    %458 = vmatpush1.msra.mxu0 0.0
    %459 = vmatprep.subr.mxu0 0.0
    %460 = vmatpush1.msra.mxu0 0.0
    %461 = vmatprep.subr.mxu0 0.0
    %462 = vmatpush1.msra.mxu0 0.0
    %463 = vmatprep.subr.mxu0 0.0
    %464 = vmatpush1.msra.mxu0 0.0
    %465 = vmatprep.subr.mxu0 0.0
    %466 = vmatpush1.msra.mxu0 0.0
    %467 = vmatprep.subr.mxu0 0.0
    %468 = vmatpush1.msra.mxu0 0.0
    %469 = vmatprep.subr.mxu0 0.0
    %470 = vmatpush1.msra.mxu0 0.0
    %471 = vmatprep.subr.mxu0 0.0
    %472 = vmatpush1.msra.mxu0 0.0
    %473 = vmatprep.subr.mxu0 0.0
    %474 = vmatpush1.msra.mxu0 0.0
    %475 = vmatprep.subr.mxu0 0.0
    %476 = vmatpush1.msra.mxu0 0.0
    %477 = vmatprep.subr.mxu0 0.0
    %478 = vmatpush1.msra.mxu0 0.0
    %479 = vmatprep.subr.mxu0 0.0
    %480 = vmatpush1.msra.mxu0 0.0
    %481 = vmatprep.subr.mxu0 0.0
    %482 = vmatpush1.msra.mxu0 0.0
    %483 = vmatprep.subr.mxu0 0.0
    %484 = vmatpush1.msra.mxu0 0.0
    %485 = vmatprep.subr.mxu0 0.0
    %486 = vmatpush1.msra.mxu0 0.0
    %487 = vmatprep.subr.mxu0 0.0
    %488 = vmatpush1.msra.mxu0 0.0
    %489 = vmatprep.subr.mxu0 0.0
    %490 = vmatpush1.msra.mxu0 0.0
    %491 = vmatprep.subr.mxu0 0.0
    %492 = vmatpush1.msra.mxu0 0.0
    %493 = vmatprep.subr.mxu0 0.0
    %494 = vmatpush1.msra.mxu0 0.0
    %495 = vmatprep.subr.mxu0 0.0
    %496 = vmatpush1.msra.mxu0 0.0
    %497 = vmatprep.subr.mxu0 0.0
    %498 = vmatpush1.msra.mxu0 0.0
    %499 = vmatprep.subr.mxu0 0.0
    %500 = vmatpush1.msra.mxu0 0.0
    %501 = vmatprep.subr.mxu0 0.0
    %502 = vmatpush1.msra.mxu0 0.0
    %503 = vmatprep.subr.mxu0 0.0
    %504 = vmatpush1.msra.mxu0 0.0
    %505 = vmatprep.subr.mxu0 0.0
    %506 = vmatpush1.msra.mxu0 0.0
    %507 = vmatprep.subr.mxu0 0.0
    %508 = vmatpush1.msra.mxu0 0.0
    %509 = vmatprep.subr.mxu0 0.0
    %510 = vmatpush1.msra.mxu0 0.0
    %511 = vmatprep.subr.mxu0 0.0
    %512 = vmatpush1.msra.mxu0 0.0
    %513 = vmatprep.subr.mxu0 0.0
    %514 = vmatpush1.msra.mxu0 0.0
    %515 = vmatprep.mubr.f32.mxu0 0.0
    %516 = vmatmul.mubr.f32.gmra.mrb[0].mxu0 %v446
    %v517 = vpop.f32.mrb[0].mxu0
    %v518 = vadd.f32 %v444, %v517
    %v519 = vpop.f32.mrb[0].mxu0
    %520 = vmatprep.mubr.f32.mxu0 0.0
    %521 = vmatmul.mubr.f32.gmra.mrb[0].mxu0 %v449
    %v522 = vpop.f32.mrb[0].mxu0
    %v523 = vadd.f32 %v444, %v522
    %v524 = vpop.f32.mrb[0].mxu0
    %525 = vdwg.mxu0
    %vm526 = vcmp.gt.f32.partialorder %v518, 0.0
    %vm527 = vcmp.gt.f32.partialorder %v523, 0.0
    %v528 = vmul.f32 %v518, 0.01
    %v529 = vmul.f32 %v523, 0.01
    %v530 = vsel %vm526, %v518, %v528
    %v531 = vsel %vm527, %v523, %v529
    %v533 = vsel %vm104, %v530, 0
    %535 = vmatprep.subr.mxu0 0.0
    %536 = vmatpush1.xpose.msra.mxu0 %v109
    %537 = vmatprep.subr.mxu0 0.0
    %538 = vmatpush1.xpose.msra.mxu0 0.0
    %539 = vmatprep.subr.mxu0 0.0
    %540 = vmatpush1.xpose.msra.mxu0 0.0
    %541 = vmatprep.subr.mxu0 0.0
    %542 = vmatpush1.xpose.msra.mxu0 0.0
    %543 = vmatprep.subr.mxu0 0.0
    %544 = vmatpush1.xpose.msra.mxu0 0.0
    %545 = vmatprep.subr.mxu0 0.0
    %546 = vmatpush1.xpose.msra.mxu0 0.0
    %547 = vmatprep.subr.mxu0 0.0
    %548 = vmatpush1.xpose.msra.mxu0 0.0
    %549 = vmatprep.subr.mxu0 0.0
    %550 = vmatpush1.xpose.msra.mxu0 0.0
    %551 = vmatprep.subr.mxu0 0.0
    %552 = vmatpush1.xpose.msra.mxu0 0.0
    %553 = vmatprep.subr.mxu0 0.0
    %554 = vmatpush1.xpose.msra.mxu0 0.0
    %555 = vmatprep.subr.mxu0 0.0
    %556 = vmatpush1.xpose.msra.mxu0 0.0
    %557 = vmatprep.subr.mxu0 0.0
    %558 = vmatpush1.xpose.msra.mxu0 0.0
    %559 = vmatprep.subr.mxu0 0.0
    %560 = vmatpush1.xpose.msra.mxu0 0.0
    %561 = vmatprep.subr.mxu0 0.0
    %562 = vmatpush1.xpose.msra.mxu0 0.0
    %563 = vmatprep.subr.mxu0 0.0
    %564 = vmatpush1.xpose.msra.mxu0 0.0
    %565 = vmatprep.subr.mxu0 0.0
    %566 = vmatpush1.xpose.msra.mxu0 0.0
    %567 = vmatprep.subr.mxu0 0.0
    %568 = vmatpush1.xpose.msra.mxu0 0.0
    %569 = vmatprep.subr.mxu0 0.0
    %570 = vmatpush1.xpose.msra.mxu0 0.0
    %571 = vmatprep.subr.mxu0 0.0
    %572 = vmatpush1.xpose.msra.mxu0 0.0
    %573 = vmatprep.subr.mxu0 0.0
    %574 = vmatpush1.xpose.msra.mxu0 0.0
    %575 = vmatprep.subr.mxu0 0.0
    %576 = vmatpush1.xpose.msra.mxu0 0.0
    %577 = vmatprep.subr.mxu0 0.0
    %578 = vmatpush1.xpose.msra.mxu0 0.0
    %579 = vmatprep.subr.mxu0 0.0
    %580 = vmatpush1.xpose.msra.mxu0 0.0
    %581 = vmatprep.subr.mxu0 0.0
    %582 = vmatpush1.xpose.msra.mxu0 0.0
    %583 = vmatprep.subr.mxu0 0.0
    %584 = vmatpush1.xpose.msra.mxu0 0.0
    %585 = vmatprep.subr.mxu0 0.0
    %586 = vmatpush1.xpose.msra.mxu0 0.0
    %587 = vmatprep.subr.mxu0 0.0
    %588 = vmatpush1.xpose.msra.mxu0 0.0
    %589 = vmatprep.subr.mxu0 0.0
    %590 = vmatpush1.xpose.msra.mxu0 0.0
    %591 = vmatprep.subr.mxu0 0.0
    %592 = vmatpush1.xpose.msra.mxu0 0.0
    %593 = vmatprep.subr.mxu0 0.0
    %594 = vmatpush1.xpose.msra.mxu0 0.0
    %595 = vmatprep.subr.mxu0 0.0
    %596 = vmatpush1.xpose.msra.mxu0 0.0
    %597 = vmatprep.subr.mxu0 0.0
    %598 = vmatpush1.xpose.msra.mxu0 0.0
    %599 = vmatprep.mubr.f32.mxu0 0.0
    %600 = vmatmul.mubr.f32.gmra.mrb[0].mxu0 %v533
    %v601 = vpop.f32.mrb[0].mxu0
    %v602 = vadd.f32 0.0, %v601
    %v603 = vpop.f32.mrb[0].mxu0
    %604 = vdwg.mxu0
    %605 = vmatprep.subr.mxu0 0.0
    %606 = vmatpush1.xpose.msra.mxu0 %v533
    %607 = vmatprep.subr.mxu0 0.0
    %608 = vmatpush1.xpose.msra.mxu0 0.0
    %609 = vmatprep.subr.mxu0 0.0
    %610 = vmatpush1.xpose.msra.mxu0 0.0
    %611 = vmatprep.subr.mxu0 0.0
    %612 = vmatpush1.xpose.msra.mxu0 0.0
    %613 = vmatprep.subr.mxu0 0.0
    %614 = vmatpush1.xpose.msra.mxu0 0.0
    %615 = vmatprep.subr.mxu0 0.0
    %616 = vmatpush1.xpose.msra.mxu0 0.0
    %617 = vmatprep.subr.mxu0 0.0
    %618 = vmatpush1.xpose.msra.mxu0 0.0
    %619 = vmatprep.subr.mxu0 0.0
    %620 = vmatpush1.xpose.msra.mxu0 0.0
    %621 = vmatprep.subr.mxu0 0.0
    %622 = vmatpush1.xpose.msra.mxu0 0.0
    %623 = vmatprep.subr.mxu0 0.0
    %624 = vmatpush1.xpose.msra.mxu0 0.0
    %625 = vmatprep.subr.mxu0 0.0
    %626 = vmatpush1.xpose.msra.mxu0 0.0
    %627 = vmatprep.subr.mxu0 0.0
    %628 = vmatpush1.xpose.msra.mxu0 0.0
    %629 = vmatprep.subr.mxu0 0.0
    %630 = vmatpush1.xpose.msra.mxu0 0.0
    %631 = vmatprep.subr.mxu0 0.0
    %632 = vmatpush1.xpose.msra.mxu0 0.0
    %633 = vmatprep.subr.mxu0 0.0
    %634 = vmatpush1.xpose.msra.mxu0 0.0
    %635 = vmatprep.subr.mxu0 0.0
    %636 = vmatpush1.xpose.msra.mxu0 0.0
    %637 = vmatprep.subr.mxu0 0.0
    %638 = vmatpush1.xpose.msra.mxu0 0.0
    %639 = vmatprep.subr.mxu0 0.0
    %640 = vmatpush1.xpose.msra.mxu0 0.0
    %641 = vmatprep.subr.mxu0 0.0
    %642 = vmatpush1.xpose.msra.mxu0 0.0
    %643 = vmatprep.subr.mxu0 0.0
    %644 = vmatpush1.xpose.msra.mxu0 0.0
    %645 = vmatprep.subr.mxu0 0.0
    %646 = vmatpush1.xpose.msra.mxu0 0.0
    %647 = vmatprep.subr.mxu0 0.0
    %648 = vmatpush1.xpose.msra.mxu0 0.0
    %649 = vmatprep.subr.mxu0 0.0
    %650 = vmatpush1.xpose.msra.mxu0 0.0
    %651 = vmatprep.subr.mxu0 0.0
    %652 = vmatpush1.xpose.msra.mxu0 0.0
    %653 = vmatprep.subr.mxu0 0.0
    %654 = vmatpush1.xpose.msra.mxu0 0.0
    %655 = vmatprep.subr.mxu0 0.0
    %656 = vmatpush1.xpose.msra.mxu0 0.0
    %657 = vmatprep.subr.mxu0 0.0
    %658 = vmatpush1.xpose.msra.mxu0 0.0
    %659 = vmatprep.subr.mxu0 0.0
    %660 = vmatpush1.xpose.msra.mxu0 0.0
    %661 = vmatprep.subr.mxu0 0.0
    %662 = vmatpush1.xpose.msra.mxu0 0.0
    %663 = vmatprep.subr.mxu0 0.0
    %664 = vmatpush1.xpose.msra.mxu0 0.0
    %665 = vmatprep.subr.mxu0 0.0
    %666 = vmatpush1.xpose.msra.mxu0 0.0
    %667 = vmatprep.subr.mxu0 0.0
    %668 = vmatpush1.xpose.msra.mxu0 0.0
    %669 = vmatprep.mubr.f32.mxu0 0.0
    %670 = vmatmul.mubr.f32.gmra.mrb[0].mxu0 %v182
    %v671 = vpop.f32.mrb[0].mxu0
    %v672 = vadd.f32 0.0, %v671
    %v673 = vpop.f32.mrb[0].mxu0
    %674 = vdwg.mxu0
    %676 = vrot.lane.b32.xlu0 %v672, 8
    %v677 = vpop.permute.xlu0 %676
    %v679 = vsel %vm258, %v672, %v677
    %681 = vset.pattern.permute.xlu0 0
    %682 = vperm.xlu0 %681, %v602
    %v683 = vpop.permute.xlu0 %682
    %v685 = vlaneseq
    %v686 = vshrl.u32 %v685, 7
    %v687 = vsub.s32 0, %v686
    %v688 = vrot.slane %v679, %v687
    %v689 = vadd.f32 %v683, %v688
    %vm690 = vcmp.gt.f32.partialorder %v689, 0.0
    %v691 = vmul.f32 %v689, 0.2
    %v692 = vsel %vm690, %v689, %v691
    %v693 = vmul.f32 %v276, %v692
    %v694 = vadd.f32 %v261, %v693
    %695 = vset.pattern.permute.xlu0 1
    %696 = vperm.xlu0 %695, %v602
    %v697 = vpop.permute.xlu0 %696
    %v699 = vlaneseq
    %v700 = vshrl.u32 %v699, 7
    %v701 = vsub.s32 1, %v700
    %v702 = vrot.slane %v679, %v701
    %v703 = vadd.f32 %v697, %v702
    %vm704 = vcmp.gt.f32.partialorder %v703, 0.0
    %v705 = vmul.f32 %v703, 0.2
    %v706 = vsel %vm704, %v703, %v705
    %v707 = vmul.f32 %v292, %v706
    %v708 = vadd.f32 %v694, %v707
    %709 = vset.pattern.permute.xlu0 2
    %710 = vperm.xlu0 %709, %v602
    %v711 = vpop.permute.xlu0 %710
    %v713 = vlaneseq
    %v714 = vshrl.u32 %v713, 7
    %v715 = vsub.s32 2, %v714
    %v716 = vrot.slane %v679, %v715
    %v717 = vadd.f32 %v711, %v716
    %vm718 = vcmp.gt.f32.partialorder %v717, 0.0
    %v719 = vmul.f32 %v717, 0.2
    %v720 = vsel %vm718, %v717, %v719
    %v721 = vmul.f32 %v308, %v720
    %v722 = vadd.f32 %v708, %v721
    %723 = vset.pattern.permute.xlu0 3
    %724 = vperm.xlu0 %723, %v602
    %v725 = vpop.permute.xlu0 %724
    %v727 = vlaneseq
    %v728 = vshrl.u32 %v727, 7
    %v729 = vsub.s32 3, %v728
    %v730 = vrot.slane %v679, %v729
    %v731 = vadd.f32 %v725, %v730
    %vm732 = vcmp.gt.f32.partialorder %v731, 0.0
    %v733 = vmul.f32 %v731, 0.2
    %v734 = vsel %vm732, %v731, %v733
    %v735 = vmul.f32 %v324, %v734
    %v736 = vadd.f32 %v722, %v735
    %v737 = vmul.f32 %v93, %v736
    %v738 = vmul.f32 %v94, %v736
    %v739 = vadd.f32 %v737, %v97
    %v740 = vadd.f32 %v738, %v98
    %v741 = vsel %vm331, %v739, -inf
    %v742 = vsel %vm331, %v740, -inf
    %v743 = vmax.f32 %v741, %v742
    %v744 = vrot.slane %v743, 4
    %v745 = vmax.f32 %v743, %v744
    %v746 = vrot.slane %v745, 2
    %v747 = vmax.f32 %v745, %v746
    %v748 = vrot.slane %v747, 1
    %v749 = vmax.f32 %v747, %v748
    %v750 = vsub.f32 %v739, %v749
    %v751 = vsub.f32 %v740, %v749
    %v752 = vmul.f32 %v750, 1.442695
    %v753 = vpow.pop %v752
    %v754 = vmul.f32 %v751, 1.442695
    %v755 = vpow.pop %v754
    %v756 = vsel %vm331, %v753, 0.0
    %v757 = vsel %vm331, %v755, 0.0
    %v758 = vadd.f32 %v756, %v757
    %v759 = vrot.slane %v758, 4
    %v760 = vadd.f32 %v758, %v759
    %v761 = vrot.slane %v760, 2
    %v762 = vadd.f32 %v760, %v761
    %v763 = vrot.slane %v762, 1
    %v764 = vadd.f32 %v762, %v763
    %v765 = vrcp.pop %v764
    %v766 = vmul.f32 %v753, %v765
    %v767 = vmul.f32 %v755, %v765
    %v769 = vsel %vm104, %v531, 0
    %771 = vmatprep.subr.mxu0 0.0
    %772 = vmatpush1.msra.mxu0 %v101
    %773 = vmatprep.subr.mxu0 0.0
    %774 = vmatpush1.msra.mxu0 %v364
    %775 = vmatprep.subr.mxu0 0.0
    %776 = vmatpush1.msra.mxu0 0.0
    %777 = vmatprep.subr.mxu0 0.0
    %778 = vmatpush1.msra.mxu0 0.0
    %779 = vmatprep.subr.mxu0 0.0
    %780 = vmatpush1.msra.mxu0 0.0
    %781 = vmatprep.subr.mxu0 0.0
    %782 = vmatpush1.msra.mxu0 0.0
    %783 = vmatprep.subr.mxu0 0.0
    %784 = vmatpush1.msra.mxu0 0.0
    %785 = vmatprep.subr.mxu0 0.0
    %786 = vmatpush1.msra.mxu0 0.0
    %787 = vmatprep.subr.mxu0 0.0
    %788 = vmatpush1.msra.mxu0 0.0
    %789 = vmatprep.subr.mxu0 0.0
    %790 = vmatpush1.msra.mxu0 0.0
    %791 = vmatprep.subr.mxu0 0.0
    %792 = vmatpush1.msra.mxu0 0.0
    %793 = vmatprep.subr.mxu0 0.0
    %794 = vmatpush1.msra.mxu0 0.0
    %795 = vmatprep.subr.mxu0 0.0
    %796 = vmatpush1.msra.mxu0 0.0
    %797 = vmatprep.subr.mxu0 0.0
    %798 = vmatpush1.msra.mxu0 0.0
    %799 = vmatprep.subr.mxu0 0.0
    %800 = vmatpush1.msra.mxu0 0.0
    %801 = vmatprep.subr.mxu0 0.0
    %802 = vmatpush1.msra.mxu0 0.0
    %803 = vmatprep.subr.mxu0 0.0
    %804 = vmatpush1.msra.mxu0 0.0
    %805 = vmatprep.subr.mxu0 0.0
    %806 = vmatpush1.msra.mxu0 0.0
    %807 = vmatprep.subr.mxu0 0.0
    %808 = vmatpush1.msra.mxu0 0.0
    %809 = vmatprep.subr.mxu0 0.0
    %810 = vmatpush1.msra.mxu0 0.0
    %811 = vmatprep.subr.mxu0 0.0
    %812 = vmatpush1.msra.mxu0 0.0
    %813 = vmatprep.subr.mxu0 0.0
    %814 = vmatpush1.msra.mxu0 0.0
    %815 = vmatprep.subr.mxu0 0.0
    %816 = vmatpush1.msra.mxu0 0.0
    %817 = vmatprep.subr.mxu0 0.0
    %818 = vmatpush1.msra.mxu0 0.0
    %819 = vmatprep.subr.mxu0 0.0
    %820 = vmatpush1.msra.mxu0 0.0
    %821 = vmatprep.subr.mxu0 0.0
    %822 = vmatpush1.msra.mxu0 0.0
    %823 = vmatprep.subr.mxu0 0.0
    %824 = vmatpush1.msra.mxu0 0.0
    %825 = vmatprep.subr.mxu0 0.0
    %826 = vmatpush1.msra.mxu0 0.0
    %827 = vmatprep.subr.mxu0 0.0
    %828 = vmatpush1.msra.mxu0 0.0
    %829 = vmatprep.subr.mxu0 0.0
    %830 = vmatpush1.msra.mxu0 0.0
    %831 = vmatprep.subr.mxu0 0.0
    %832 = vmatpush1.msra.mxu0 0.0
    %833 = vmatprep.subr.mxu0 0.0
    %834 = vmatpush1.msra.mxu0 0.0
    %835 = vmatprep.mubr.f32.mxu0 0.0
    %836 = vmatmul.mubr.f32.gmra.mrb[0].mxu0 %v533
    %v837 = vpop.f32.mrb[0].mxu0
    %v838 = vadd.f32 0.0, %v837
    %v839 = vpop.f32.mrb[0].mxu0
    %840 = vmatprep.mubr.f32.mxu0 0.0
    %841 = vmatmul.mubr.f32.gmra.mrb[0].mxu0 %v769
    %v842 = vpop.f32.mrb[0].mxu0
    %v843 = vadd.f32 0.0, %v842
    %v844 = vpop.f32.mrb[0].mxu0
    %845 = vdwg.mxu0
    %v847 = vsel %vm331, %v766, 0
    %v850 = vsel %vm331, %v767, 0
    %852 = vmatprep.subr.mxu0 0.0
    %853 = vmatpush1.msra.mxu0 %v838
    %854 = vmatprep.subr.mxu0 0.0
    %855 = vmatpush1.msra.mxu0 %v843
    %856 = vmatprep.subr.mxu0 0.0
    %857 = vmatpush1.msra.mxu0 0.0
    %858 = vmatprep.subr.mxu0 0.0
    %859 = vmatpush1.msra.mxu0 0.0
    %860 = vmatprep.subr.mxu0 0.0
    %861 = vmatpush1.msra.mxu0 0.0
    %862 = vmatprep.subr.mxu0 0.0
    %863 = vmatpush1.msra.mxu0 0.0
    %864 = vmatprep.subr.mxu0 0.0
    %865 = vmatpush1.msra.mxu0 0.0
    %866 = vmatprep.subr.mxu0 0.0
    %867 = vmatpush1.msra.mxu0 0.0
    %868 = vmatprep.subr.mxu0 0.0
    %869 = vmatpush1.msra.mxu0 0.0
    %870 = vmatprep.subr.mxu0 0.0
    %871 = vmatpush1.msra.mxu0 0.0
    %872 = vmatprep.subr.mxu0 0.0
    %873 = vmatpush1.msra.mxu0 0.0
    %874 = vmatprep.subr.mxu0 0.0
    %875 = vmatpush1.msra.mxu0 0.0
    %876 = vmatprep.subr.mxu0 0.0
    %877 = vmatpush1.msra.mxu0 0.0
    %878 = vmatprep.subr.mxu0 0.0
    %879 = vmatpush1.msra.mxu0 0.0
    %880 = vmatprep.subr.mxu0 0.0
    %881 = vmatpush1.msra.mxu0 0.0
    %882 = vmatprep.subr.mxu0 0.0
    %883 = vmatpush1.msra.mxu0 0.0
    %884 = vmatprep.subr.mxu0 0.0
    %885 = vmatpush1.msra.mxu0 0.0
    %886 = vmatprep.subr.mxu0 0.0
    %887 = vmatpush1.msra.mxu0 0.0
    %888 = vmatprep.subr.mxu0 0.0
    %889 = vmatpush1.msra.mxu0 0.0
    %890 = vmatprep.subr.mxu0 0.0
    %891 = vmatpush1.msra.mxu0 0.0
    %892 = vmatprep.subr.mxu0 0.0
    %893 = vmatpush1.msra.mxu0 0.0
    %894 = vmatprep.subr.mxu0 0.0
    %895 = vmatpush1.msra.mxu0 0.0
    %896 = vmatprep.subr.mxu0 0.0
    %897 = vmatpush1.msra.mxu0 0.0
    %898 = vmatprep.subr.mxu0 0.0
    %899 = vmatpush1.msra.mxu0 0.0
    %900 = vmatprep.subr.mxu0 0.0
    %901 = vmatpush1.msra.mxu0 0.0
    %902 = vmatprep.subr.mxu0 0.0
    %903 = vmatpush1.msra.mxu0 0.0
    %904 = vmatprep.subr.mxu0 0.0
    %905 = vmatpush1.msra.mxu0 0.0
    %906 = vmatprep.subr.mxu0 0.0
    %907 = vmatpush1.msra.mxu0 0.0
    %908 = vmatprep.subr.mxu0 0.0
    %909 = vmatpush1.msra.mxu0 0.0
    %910 = vmatprep.subr.mxu0 0.0
    %911 = vmatpush1.msra.mxu0 0.0
    %912 = vmatprep.subr.mxu0 0.0
    %913 = vmatpush1.msra.mxu0 0.0
    %914 = vmatprep.subr.mxu0 0.0
    %915 = vmatpush1.msra.mxu0 0.0
    %916 = vmatprep.mubr.f32.mxu0 0.0
    %917 = vmatmul.mubr.f32.gmra.mrb[0].mxu0 %v847
    %v918 = vpop.f32.mrb[0].mxu0
    %v919 = vadd.f32 %v444, %v918
    %v920 = vpop.f32.mrb[0].mxu0
    %921 = vmatprep.mubr.f32.mxu0 0.0
    %922 = vmatmul.mubr.f32.gmra.mrb[0].mxu0 %v850
    %v923 = vpop.f32.mrb[0].mxu0
    %v924 = vadd.f32 %v444, %v923
    %v925 = vpop.f32.mrb[0].mxu0
    %926 = vdwg.mxu0
    %vm927 = vcmp.gt.f32.partialorder %v919, 0.0
    %vm928 = vcmp.gt.f32.partialorder %v924, 0.0
    %v929 = vmul.f32 %v919, 0.01
    %v930 = vmul.f32 %v924, 0.01
    %v931 = vsel %vm927, %v919, %v929
    %v932 = vsel %vm928, %v924, %v930
    %v933 = vmul.f32 %v530, 0.5
    %v934 = vmul.f32 %v531, 0.5
    %v935 = vmul.f32 %v91, 0.5
    %v936 = vmul.f32 %v92, 0.5
    %v937 = vadd.f32 %v933, %v935
    %v938 = vadd.f32 %v934, %v936
    %v939 = vmul.f32 %v931, 0.5
    %v940 = vmul.f32 %v932, 0.5
    %v941 = vmul.f32 %v937, 0.5
    %v942 = vmul.f32 %v938, 0.5
    %v943 = vadd.f32 %v939, %v941
    %v944 = vadd.f32 %v940, %v942
    %v945 = vld [vmem:[#allocation2 + $0x20] sm:$0xff]
    %v946 = vld [vmem:[#allocation2 + $0x28] sm:$0xff]
    %v947 = vld [vmem:[#allocation2 + $0x30] sm:$0x3f]
    %v948 = vld [vmem:[#allocation2 + $0x38] sm:$0x1]
    %951 = vrot.lane.b32.xlu0 %v943, 11
    %v952 = vpop.permute.xlu0 %951
    %953 = vrot.lane.b32.xlu0 %v944, 11
    %v954 = vpop.permute.xlu0 %953
    %v957 = vsel %vm104, %v937, %v952
    %v958 = vsel %vm104, %v938, %v954
    %v959 = vlaneseq
    %v960 = vshrl.u32 %v959, 7
    %v961 = vsub.s32 0, %v960
    %v962 = vrot.slane %v948, %v961
    %vm963 = vcmask 179200
    %v965 = vsel %vm963, %v957, 0
    %v968 = vsel %vm963, %v958, 0
    %vm970 = vcmask 1045504
    %v972 = vsel %vm970, %v947, 0
    %974 = vmatprep.subr.mxu0 0.0
    %975 = vmatpush1.msra.mxu0 %v945
    %976 = vmatprep.subr.mxu0 0.0
    %977 = vmatpush1.msra.mxu0 %v946
    %978 = vmatprep.subr.mxu0 0.0
    %979 = vmatpush1.msra.mxu0 %v972
    %980 = vmatprep.subr.mxu0 0.0
    %981 = vmatpush1.msra.mxu0 0.0
    %982 = vmatprep.subr.mxu0 0.0
    %983 = vmatpush1.msra.mxu0 0.0
    %984 = vmatprep.subr.mxu0 0.0
    %985 = vmatpush1.msra.mxu0 0.0
    %986 = vmatprep.subr.mxu0 0.0
    %987 = vmatpush1.msra.mxu0 0.0
    %988 = vmatprep.subr.mxu0 0.0
    %989 = vmatpush1.msra.mxu0 0.0
    %990 = vmatprep.subr.mxu0 0.0
    %991 = vmatpush1.msra.mxu0 0.0
    %992 = vmatprep.subr.mxu0 0.0
    %993 = vmatpush1.msra.mxu0 0.0
    %994 = vmatprep.subr.mxu0 0.0
    %995 = vmatpush1.msra.mxu0 0.0
    %996 = vmatprep.subr.mxu0 0.0
    %997 = vmatpush1.msra.mxu0 0.0
    %998 = vmatprep.subr.mxu0 0.0
    %999 = vmatpush1.msra.mxu0 0.0
    %1000 = vmatprep.subr.mxu0 0.0
    %1001 = vmatpush1.msra.mxu0 0.0
    %1002 = vmatprep.subr.mxu0 0.0
    %1003 = vmatpush1.msra.mxu0 0.0
    %1004 = vmatprep.subr.mxu0 0.0
    %1005 = vmatpush1.msra.mxu0 0.0
    %1006 = vmatprep.subr.mxu0 0.0
    %1007 = vmatpush1.msra.mxu0 0.0
    %1008 = vmatprep.subr.mxu0 0.0
    %1009 = vmatpush1.msra.mxu0 0.0
    %1010 = vmatprep.subr.mxu0 0.0
    %1011 = vmatpush1.msra.mxu0 0.0
    %1012 = vmatprep.subr.mxu0 0.0
    %1013 = vmatpush1.msra.mxu0 0.0
    %1014 = vmatprep.subr.mxu0 0.0
    %1015 = vmatpush1.msra.mxu0 0.0
    %1016 = vmatprep.subr.mxu0 0.0
    %1017 = vmatpush1.msra.mxu0 0.0
    %1018 = vmatprep.subr.mxu0 0.0
    %1019 = vmatpush1.msra.mxu0 0.0
    %1020 = vmatprep.subr.mxu0 0.0
    %1021 = vmatpush1.msra.mxu0 0.0
    %1022 = vmatprep.subr.mxu0 0.0
    %1023 = vmatpush1.msra.mxu0 0.0
    %1024 = vmatprep.subr.mxu0 0.0
    %1025 = vmatpush1.msra.mxu0 0.0
    %1026 = vmatprep.subr.mxu0 0.0
    %1027 = vmatpush1.msra.mxu0 0.0
    %1028 = vmatprep.subr.mxu0 0.0
    %1029 = vmatpush1.msra.mxu0 0.0
    %1030 = vmatprep.subr.mxu0 0.0
    %1031 = vmatpush1.msra.mxu0 0.0
    %1032 = vmatprep.subr.mxu0 0.0
    %1033 = vmatpush1.msra.mxu0 0.0
    %1034 = vmatprep.subr.mxu0 0.0
    %1035 = vmatpush1.msra.mxu0 0.0
    %1036 = vmatprep.subr.mxu0 0.0
    %1037 = vmatpush1.msra.mxu0 0.0
    %1038 = vmatprep.mubr.f32.mxu0 0.0
    %1039 = vmatmul.mubr.f32.gmra.mrb[0].mxu0 %v965
    %v1040 = vpop.f32.mrb[0].mxu0
    %v1041 = vadd.f32 %v962, %v1040
    %v1042 = vpop.f32.mrb[0].mxu0
    %1043 = vmatprep.mubr.f32.mxu0 0.0
    %1044 = vmatmul.mubr.f32.gmra.mrb[0].mxu0 %v968
    %v1045 = vpop.f32.mrb[0].mxu0
    %v1046 = vadd.f32 %v962, %v1045
    %v1047 = vpop.f32.mrb[0].mxu0
    %1048 = vdwg.mxu0
    %v1049 = vld [vmem:[#allocation2 + $0x40] sm:$0x7f]
    %v1050 = vlaneseq
    %v1051 = vand.u32 %v1050, 127
    %vm1052 = vcmp.ge.s32.totalorder %v1051, 4
    %vm1053 = vcmp.lt.s32.totalorder %v1051, 6
    %vm1054 = vmand %vm1052, %vm1053
    %v1055 = vlaneseq
    %v1056 = vshrl.u32 %v1055, 7
    %v1057 = vsub.s32 0, %v1056
    %v1058 = vrot.slane %v1049, %v1057
    %v1059 = vmul.f32 %v1058, 0.0
    %v1060 = vlaneseq
    %v1061 = vshrl.u32 %v1060, 7
    %v1062 = vsub.s32 1, %v1061
    %v1063 = vrot.slane %v1049, %v1062
    %v1064 = vmul.f32 %v1063, 0.0
    %v1065 = vadd.f32 %v1059, %v1064
    %v1066 = vadd.f32 %v1041, %v1065
    %v1067 = vadd.f32 %v1046, %v1065
    %v1068 = vmul.f32 %v1066, 0.5
    %v1069 = vmul.f32 %v1067, 0.5
    %v1070 = vsel %vm1054, %v1066, %v1068
    %v1071 = vsel %vm1054, %v1067, %v1069
    %v1072 = vtanh.pop %v1070
    %v1073 = vtanh.pop %v1071
    %v1074 = vadd.f32 %v1072, 1.0
    %v1075 = vadd.f32 %v1073, 1.0
    %v1076 = vmul.f32 %v1074, 0.5
    %v1077 = vmul.f32 %v1075, 0.5
    %v1078 = vsel %vm1054, %v1072, %v1076
    %v1079 = vsel %vm1054, %v1073, %v1077
    %v1080 = vmul.f32 %v1078, 0.0
    %v1081 = vmul.f32 %v1079, 0.0
    %1084 = vrot.lane.b32.xlu0 %v1078, 124
    %v1085 = vpop.permute.xlu0 %1084
    %1086 = vrot.lane.b32.xlu0 %v1079, 124
    %v1087 = vpop.permute.xlu0 %1086
    %v1090 = vmul.f32 %v1078, %v1085
    %v1091 = vmul.f32 %v1079, %v1087
    %1094 = vrot.lane.b32.xlu0 %v1090, 2
    %v1095 = vpop.permute.xlu0 %1094
    %1096 = vrot.lane.b32.xlu0 %v1091, 2
    %v1097 = vpop.permute.xlu0 %1096
    %v1100 = vadd.f32 %v1080, %v1095
    %v1101 = vadd.f32 %v1081, %v1097
    %v1102 = vtanh.pop %v1100
    %v1103 = vtanh.pop %v1101
    %1106 = vrot.lane.b32.xlu0 %v1102, 4
    %v1107 = vpop.permute.xlu0 %1106
    %1108 = vrot.lane.b32.xlu0 %v1103, 4
    %v1109 = vpop.permute.xlu0 %1108
    %v1112 = vmul.f32 %v1078, %v1107
    %v1113 = vmul.f32 %v1079, %v1109
    %1115 = vset.pattern.permute.xlu0 6
    %1116 = vperm.xlu0 %1115, %v1112
    %v1117 = vpop.permute.xlu0 %1116
    %1120 = vset.pattern.permute.xlu0 6
    %1121 = vperm.xlu0 %1120, %v1113
    %v1122 = vpop.permute.xlu0 %1121
    %v1124 = vlaneseq
    %v1125 = vshrl.u32 %v1124, 7
    %v1126 = vsub.s32 2, %v1125
    %v1127 = vrot.slane %v1049, %v1126
    %v1128 = vmul.f32 %v1117, %v1127
    %v1129 = vmul.f32 %v1122, %v1127
    %1130 = vset.pattern.permute.xlu0 7
    %1131 = vperm.xlu0 %1130, %v1112
    %v1132 = vpop.permute.xlu0 %1131
    %1134 = vset.pattern.permute.xlu0 7
    %1135 = vperm.xlu0 %1134, %v1113
    %v1136 = vpop.permute.xlu0 %1135
    %v1138 = vlaneseq
    %v1139 = vshrl.u32 %v1138, 7
    %v1140 = vsub.s32 3, %v1139
    %v1141 = vrot.slane %v1049, %v1140
    %v1142 = vmul.f32 %v1132, %v1141
    %v1143 = vmul.f32 %v1136, %v1141
    %v1144 = vadd.f32 %v1128, %v1142
    %v1145 = vadd.f32 %v1129, %v1143
    %v1146 = vlaneseq
    %v1147 = vshrl.u32 %v1146, 7
    %v1148 = vsub.s32 4, %v1147
    %v1149 = vrot.slane %v1049, %v1148
    %v1150 = vmul.f32 %v1149, 0.0
    %v1151 = vlaneseq
    %v1152 = vshrl.u32 %v1151, 7
    %v1153 = vsub.s32 5, %v1152
    %v1154 = vrot.slane %v1049, %v1153
    %v1155 = vmul.f32 %v1154, 0.0
    %v1156 = vadd.f32 %v1150, %v1155
    %v1157 = vadd.f32 %v1144, %v1156
    %v1158 = vadd.f32 %v1145, %v1156
    %v1159 = vlaneseq
    %v1160 = vshrl.u32 %v1159, 7
    %v1161 = vsub.s32 6, %v1160
    %v1162 = vrot.slane %v1049, %v1161
    %v1163 = vadd.f32 %v1157, %v1162
    %v1164 = vadd.f32 %v1158, %v1162
    %v1165 = vmul.f32 %v1163, 0.5
    %v1166 = vmul.f32 %v1164, 0.5
    %v1167 = vsel %vm1054, %v1163, %v1165
    %v1168 = vsel %vm1054, %v1164, %v1166
    %v1169 = vtanh.pop %v1167
    %v1170 = vtanh.pop %v1168
    %v1171 = vadd.f32 %v1169, 1.0
    %v1172 = vadd.f32 %v1170, 1.0
    %v1173 = vmul.f32 %v1171, 0.5
    %v1174 = vmul.f32 %v1172, 0.5
    %v1175 = vsel %vm1054, %v1169, %v1173
    %v1176 = vsel %vm1054, %v1170, %v1174
    %v1177 = vmul.f32 %v1175, 0.0
    %v1178 = vmul.f32 %v1176, 0.0
    %1181 = vrot.lane.b32.xlu0 %v1175, 124
    %v1182 = vpop.permute.xlu0 %1181
    %1183 = vrot.lane.b32.xlu0 %v1176, 124
    %v1184 = vpop.permute.xlu0 %1183
    %v1187 = vmul.f32 %v1175, %v1182
    %v1188 = vmul.f32 %v1176, %v1184
    %1191 = vrot.lane.b32.xlu0 %v1187, 2
    %v1192 = vpop.permute.xlu0 %1191
    %1193 = vrot.lane.b32.xlu0 %v1188, 2
    %v1194 = vpop.permute.xlu0 %1193
    %v1197 = vadd.f32 %v1177, %v1192
    %v1198 = vadd.f32 %v1178, %v1194
    %v1199 = vtanh.pop %v1197
    %v1200 = vtanh.pop %v1198
    %1203 = vrot.lane.b32.xlu0 %v1199, 4
    %v1204 = vpop.permute.xlu0 %1203
    %1205 = vrot.lane.b32.xlu0 %v1200, 4
    %v1206 = vpop.permute.xlu0 %1205
    %v1209 = vmul.f32 %v1175, %v1204
    %v1210 = vmul.f32 %v1176, %v1206
    %v1211 = vmul.f32 %v1117, %v1058
    %v1212 = vmul.f32 %v1122, %v1058
    %v1213 = vmul.f32 %v1132, %v1063
    %v1214 = vmul.f32 %v1136, %v1063
    %v1215 = vadd.f32 %v1211, %v1213
    %v1216 = vadd.f32 %v1212, %v1214
    %1219 = vrot.lane.b32.xlu0 %v1215, 8
    %v1220 = vpop.permute.xlu0 %1219
    %1221 = vrot.lane.b32.xlu0 %v1216, 8
    %v1222 = vpop.permute.xlu0 %1221
    %v1225 = vadd.f32 %v1041, %v1220
    %v1226 = vadd.f32 %v1046, %v1222
    %v1227 = vmul.f32 %v1225, 0.5
    %v1228 = vmul.f32 %v1226, 0.5
    %1231 = vrot.lane.b32.xlu0 %v1225, 120
    %v1232 = vpop.permute.xlu0 %1231
    %1233 = vrot.lane.b32.xlu0 %v1226, 120
    %v1234 = vpop.permute.xlu0 %1233
    %1239 = vrot.lane.b32.xlu0 %v1227, 120
    %v1240 = vpop.permute.xlu0 %1239
    %1241 = vrot.lane.b32.xlu0 %v1228, 120
    %v1242 = vpop.permute.xlu0 %1241
    %v1245 = vsel %vm1054, %v1232, %v1240
    %v1246 = vsel %vm1054, %v1234, %v1242
    %v1247 = vtanh.pop %v1245
    %v1248 = vtanh.pop %v1246
    %v1249 = vadd.f32 %v1247, 1.0
    %v1250 = vadd.f32 %v1248, 1.0
    %v1251 = vmul.f32 %v1249, 0.5
    %v1252 = vmul.f32 %v1250, 0.5
    %v1253 = vsel %vm1054, %v1247, %v1251
    %v1254 = vsel %vm1054, %v1248, %v1252
    %v1255 = vmul.f32 %v1253, %v1100
    %v1256 = vmul.f32 %v1254, %v1101
    %1259 = vrot.lane.b32.xlu0 %v1253, 124
    %v1260 = vpop.permute.xlu0 %1259
    %1261 = vrot.lane.b32.xlu0 %v1254, 124
    %v1262 = vpop.permute.xlu0 %1261
    %v1265 = vmul.f32 %v1253, %v1260
    %v1266 = vmul.f32 %v1254, %v1262
    %1269 = vrot.lane.b32.xlu0 %v1265, 2
    %v1270 = vpop.permute.xlu0 %1269
    %1271 = vrot.lane.b32.xlu0 %v1266, 2
    %v1272 = vpop.permute.xlu0 %1271
    %v1275 = vadd.f32 %v1255, %v1270
    %v1276 = vadd.f32 %v1256, %v1272
    %v1277 = vtanh.pop %v1275
    %v1278 = vtanh.pop %v1276
    %1281 = vrot.lane.b32.xlu0 %v1277, 4
    %v1282 = vpop.permute.xlu0 %1281
    %1283 = vrot.lane.b32.xlu0 %v1278, 4
    %v1284 = vpop.permute.xlu0 %1283
    %v1287 = vmul.f32 %v1253, %v1282
    %v1288 = vmul.f32 %v1254, %v1284
    %1290 = vset.pattern.permute.xlu0 6
    %1291 = vperm.xlu0 %1290, %v1287
    %v1292 = vpop.permute.xlu0 %1291
    %1295 = vset.pattern.permute.xlu0 6
    %1296 = vperm.xlu0 %1295, %v1288
    %v1297 = vpop.permute.xlu0 %1296
    %v1299 = vmul.f32 %v1292, %v1127
    %v1300 = vmul.f32 %v1297, %v1127
    %1301 = vset.pattern.permute.xlu0 7
    %1302 = vperm.xlu0 %1301, %v1287
    %v1303 = vpop.permute.xlu0 %1302
    %1305 = vset.pattern.permute.xlu0 7
    %1306 = vperm.xlu0 %1305, %v1288
    %v1307 = vpop.permute.xlu0 %1306
    %v1309 = vmul.f32 %v1303, %v1141
    %v1310 = vmul.f32 %v1307, %v1141
    %v1311 = vadd.f32 %v1299, %v1309
    %v1312 = vadd.f32 %v1300, %v1310
    %1314 = vset.pattern.permute.xlu0 6
    %1315 = vperm.xlu0 %1314, %v1209
    %v1316 = vpop.permute.xlu0 %1315
    %1319 = vset.pattern.permute.xlu0 6
    %1320 = vperm.xlu0 %1319, %v1210
    %v1321 = vpop.permute.xlu0 %1320
    %v1323 = vmul.f32 %v1316, %v1149
    %v1324 = vmul.f32 %v1321, %v1149
    %1325 = vset.pattern.permute.xlu0 7
    %1326 = vperm.xlu0 %1325, %v1209
    %v1327 = vpop.permute.xlu0 %1326
    %1329 = vset.pattern.permute.xlu0 7
    %1330 = vperm.xlu0 %1329, %v1210
    %v1331 = vpop.permute.xlu0 %1330
    %v1333 = vmul.f32 %v1327, %v1154
    %v1334 = vmul.f32 %v1331, %v1154
    %v1335 = vadd.f32 %v1323, %v1333
    %v1336 = vadd.f32 %v1324, %v1334
    %v1337 = vadd.f32 %v1311, %v1335
    %v1338 = vadd.f32 %v1312, %v1336
    %v1339 = vadd.f32 %v1337, %v1162
    %v1340 = vadd.f32 %v1338, %v1162
    %v1341 = vmul.f32 %v1339, 0.5
    %v1342 = vmul.f32 %v1340, 0.5
    %v1343 = vsel %vm1054, %v1339, %v1341
    %v1344 = vsel %vm1054, %v1340, %v1342
    %v1345 = vtanh.pop %v1343
    %v1346 = vtanh.pop %v1344
    %v1347 = vadd.f32 %v1345, 1.0
    %v1348 = vadd.f32 %v1346, 1.0
    %v1349 = vmul.f32 %v1347, 0.5
    %v1350 = vmul.f32 %v1348, 0.5
    %v1351 = vsel %vm1054, %v1345, %v1349
    %v1352 = vsel %vm1054, %v1346, %v1350
    %v1353 = vmul.f32 %v1351, %v1197
    %v1354 = vmul.f32 %v1352, %v1198
    %1357 = vrot.lane.b32.xlu0 %v1351, 124
    %v1358 = vpop.permute.xlu0 %1357
    %1359 = vrot.lane.b32.xlu0 %v1352, 124
    %v1360 = vpop.permute.xlu0 %1359
    %v1363 = vmul.f32 %v1351, %v1358
    %v1364 = vmul.f32 %v1352, %v1360
    %1367 = vrot.lane.b32.xlu0 %v1363, 2
    %v1368 = vpop.permute.xlu0 %1367
    %1369 = vrot.lane.b32.xlu0 %v1364, 2
    %v1370 = vpop.permute.xlu0 %1369
    %v1373 = vadd.f32 %v1353, %v1368
    %v1374 = vadd.f32 %v1354, %v1370
    %v1375 = vtanh.pop %v1373
    %v1376 = vtanh.pop %v1374
    %1379 = vrot.lane.b32.xlu0 %v1375, 4
    %v1380 = vpop.permute.xlu0 %1379
    %1381 = vrot.lane.b32.xlu0 %v1376, 4
    %v1382 = vpop.permute.xlu0 %1381
    %v1385 = vmul.f32 %v1351, %v1380
    %v1386 = vmul.f32 %v1352, %v1382
    %v1387 = vmul.f32 %v1292, %v1058
    %v1388 = vmul.f32 %v1297, %v1058
    %v1389 = vmul.f32 %v1303, %v1063
    %v1390 = vmul.f32 %v1307, %v1063
    %v1391 = vadd.f32 %v1387, %v1389
    %v1392 = vadd.f32 %v1388, %v1390
    %1395 = vrot.lane.b32.xlu0 %v1391, 16
    %v1396 = vpop.permute.xlu0 %1395
    %1397 = vrot.lane.b32.xlu0 %v1392, 16
    %v1398 = vpop.permute.xlu0 %1397
    %v1401 = vadd.f32 %v1041, %v1396
    %v1402 = vadd.f32 %v1046, %v1398
    %v1403 = vmul.f32 %v1401, 0.5
    %v1404 = vmul.f32 %v1402, 0.5
    %1407 = vrot.lane.b32.xlu0 %v1401, 112
    %v1408 = vpop.permute.xlu0 %1407
    %1409 = vrot.lane.b32.xlu0 %v1402, 112
    %v1410 = vpop.permute.xlu0 %1409
    %1415 = vrot.lane.b32.xlu0 %v1403, 112
    %v1416 = vpop.permute.xlu0 %1415
    %1417 = vrot.lane.b32.xlu0 %v1404, 112
    %v1418 = vpop.permute.xlu0 %1417
    %v1421 = vsel %vm1054, %v1408, %v1416
    %v1422 = vsel %vm1054, %v1410, %v1418
    %v1423 = vtanh.pop %v1421
    %v1424 = vtanh.pop %v1422
    %v1425 = vadd.f32 %v1423, 1.0
    %v1426 = vadd.f32 %v1424, 1.0
    %v1427 = vmul.f32 %v1425, 0.5
    %v1428 = vmul.f32 %v1426, 0.5
    %v1429 = vsel %vm1054, %v1423, %v1427
    %v1430 = vsel %vm1054, %v1424, %v1428
    %v1431 = vmul.f32 %v1429, %v1275
    %v1432 = vmul.f32 %v1430, %v1276
    %1435 = vrot.lane.b32.xlu0 %v1429, 124
    %v1436 = vpop.permute.xlu0 %1435
    %1437 = vrot.lane.b32.xlu0 %v1430, 124
    %v1438 = vpop.permute.xlu0 %1437
    %v1441 = vmul.f32 %v1429, %v1436
    %v1442 = vmul.f32 %v1430, %v1438
    %1445 = vrot.lane.b32.xlu0 %v1441, 2
    %v1446 = vpop.permute.xlu0 %1445
    %1447 = vrot.lane.b32.xlu0 %v1442, 2
    %v1448 = vpop.permute.xlu0 %1447
    %v1451 = vadd.f32 %v1431, %v1446
    %v1452 = vadd.f32 %v1432, %v1448
    %v1453 = vtanh.pop %v1451
    %v1454 = vtanh.pop %v1452
    %1457 = vrot.lane.b32.xlu0 %v1453, 4
    %v1458 = vpop.permute.xlu0 %1457
    %1459 = vrot.lane.b32.xlu0 %v1454, 4
    %v1460 = vpop.permute.xlu0 %1459
    %v1463 = vmul.f32 %v1429, %v1458
    %v1464 = vmul.f32 %v1430, %v1460
    %1466 = vset.pattern.permute.xlu0 6
    %1467 = vperm.xlu0 %1466, %v1463
    %v1468 = vpop.permute.xlu0 %1467
    %1471 = vset.pattern.permute.xlu0 6
    %1472 = vperm.xlu0 %1471, %v1464
    %v1473 = vpop.permute.xlu0 %1472
    %v1475 = vmul.f32 %v1468, %v1127
    %v1476 = vmul.f32 %v1473, %v1127
    %1477 = vset.pattern.permute.xlu0 7
    %1478 = vperm.xlu0 %1477, %v1463
    %v1479 = vpop.permute.xlu0 %1478
    %1481 = vset.pattern.permute.xlu0 7
    %1482 = vperm.xlu0 %1481, %v1464
    %v1483 = vpop.permute.xlu0 %1482
    %v1485 = vmul.f32 %v1479, %v1141
    %v1486 = vmul.f32 %v1483, %v1141
    %v1487 = vadd.f32 %v1475, %v1485
    %v1488 = vadd.f32 %v1476, %v1486
    %1490 = vset.pattern.permute.xlu0 6
    %1491 = vperm.xlu0 %1490, %v1385
    %v1492 = vpop.permute.xlu0 %1491
    %1495 = vset.pattern.permute.xlu0 6
    %1496 = vperm.xlu0 %1495, %v1386
    %v1497 = vpop.permute.xlu0 %1496
    %v1499 = vmul.f32 %v1492, %v1149
    %v1500 = vmul.f32 %v1497, %v1149
    %1501 = vset.pattern.permute.xlu0 7
    %1502 = vperm.xlu0 %1501, %v1385
    %v1503 = vpop.permute.xlu0 %1502
    %1505 = vset.pattern.permute.xlu0 7
    %1506 = vperm.xlu0 %1505, %v1386
    %v1507 = vpop.permute.xlu0 %1506
    %v1509 = vmul.f32 %v1503, %v1154
    %v1510 = vmul.f32 %v1507, %v1154
    %v1511 = vadd.f32 %v1499, %v1509
    %v1512 = vadd.f32 %v1500, %v1510
    %v1513 = vadd.f32 %v1487, %v1511
    %v1514 = vadd.f32 %v1488, %v1512
    %v1515 = vadd.f32 %v1513, %v1162
    %v1516 = vadd.f32 %v1514, %v1162
    %v1517 = vmul.f32 %v1515, 0.5
    %v1518 = vmul.f32 %v1516, 0.5
    %v1519 = vsel %vm1054, %v1515, %v1517
    %v1520 = vsel %vm1054, %v1516, %v1518
    %v1521 = vtanh.pop %v1519
    %v1522 = vtanh.pop %v1520
    %v1523 = vadd.f32 %v1521, 1.0
    %v1524 = vadd.f32 %v1522, 1.0
    %v1525 = vmul.f32 %v1523, 0.5
    %v1526 = vmul.f32 %v1524, 0.5
    %v1527 = vsel %vm1054, %v1521, %v1525
    %v1528 = vsel %vm1054, %v1522, %v1526
    %v1529 = vmul.f32 %v1527, %v1373
    %v1530 = vmul.f32 %v1528, %v1374
    %1533 = vrot.lane.b32.xlu0 %v1527, 124
    %v1534 = vpop.permute.xlu0 %1533
    %1535 = vrot.lane.b32.xlu0 %v1528, 124
    %v1536 = vpop.permute.xlu0 %1535
    %v1539 = vmul.f32 %v1527, %v1534
    %v1540 = vmul.f32 %v1528, %v1536
    %1543 = vrot.lane.b32.xlu0 %v1539, 2
    %v1544 = vpop.permute.xlu0 %1543
    %1545 = vrot.lane.b32.xlu0 %v1540, 2
    %v1546 = vpop.permute.xlu0 %1545
    %v1549 = vadd.f32 %v1529, %v1544
    %v1550 = vadd.f32 %v1530, %v1546
    %v1551 = vtanh.pop %v1549
    %v1552 = vtanh.pop %v1550
    %1555 = vrot.lane.b32.xlu0 %v1551, 4
    %v1556 = vpop.permute.xlu0 %1555
    %1557 = vrot.lane.b32.xlu0 %v1552, 4
    %v1558 = vpop.permute.xlu0 %1557
    %v1561 = vmul.f32 %v1527, %v1556
    %v1562 = vmul.f32 %v1528, %v1558
    %v1563 = vmul.f32 %v1468, %v1058
    %v1564 = vmul.f32 %v1473, %v1058
    %v1565 = vmul.f32 %v1479, %v1063
    %v1566 = vmul.f32 %v1483, %v1063
    %v1567 = vadd.f32 %v1563, %v1565
    %v1568 = vadd.f32 %v1564, %v1566
    %1571 = vrot.lane.b32.xlu0 %v1567, 24
    %v1572 = vpop.permute.xlu0 %1571
    %1573 = vrot.lane.b32.xlu0 %v1568, 24
    %v1574 = vpop.permute.xlu0 %1573
    %v1577 = vadd.f32 %v1041, %v1572
    %v1578 = vadd.f32 %v1046, %v1574
    %v1579 = vmul.f32 %v1577, 0.5
    %v1580 = vmul.f32 %v1578, 0.5
    %1583 = vrot.lane.b32.xlu0 %v1577, 104
    %v1584 = vpop.permute.xlu0 %1583
    %1585 = vrot.lane.b32.xlu0 %v1578, 104
    %v1586 = vpop.permute.xlu0 %1585
    %1591 = vrot.lane.b32.xlu0 %v1579, 104
    %v1592 = vpop.permute.xlu0 %1591
    %1593 = vrot.lane.b32.xlu0 %v1580, 104
    %v1594 = vpop.permute.xlu0 %1593
    %v1597 = vsel %vm1054, %v1584, %v1592
    %v1598 = vsel %vm1054, %v1586, %v1594
    %v1599 = vtanh.pop %v1597
    %v1600 = vtanh.pop %v1598
    %v1601 = vadd.f32 %v1599, 1.0
    %v1602 = vadd.f32 %v1600, 1.0
    %v1603 = vmul.f32 %v1601, 0.5
    %v1604 = vmul.f32 %v1602, 0.5
    %v1605 = vsel %vm1054, %v1599, %v1603
    %v1606 = vsel %vm1054, %v1600, %v1604
    %v1607 = vmul.f32 %v1605, %v1451
    %v1608 = vmul.f32 %v1606, %v1452
    %1611 = vrot.lane.b32.xlu0 %v1605, 124
    %v1612 = vpop.permute.xlu0 %1611
    %1613 = vrot.lane.b32.xlu0 %v1606, 124
    %v1614 = vpop.permute.xlu0 %1613
    %v1617 = vmul.f32 %v1605, %v1612
    %v1618 = vmul.f32 %v1606, %v1614
    %1621 = vrot.lane.b32.xlu0 %v1617, 2
    %v1622 = vpop.permute.xlu0 %1621
    %1623 = vrot.lane.b32.xlu0 %v1618, 2
    %v1624 = vpop.permute.xlu0 %1623
    %v1627 = vadd.f32 %v1607, %v1622
    %v1628 = vadd.f32 %v1608, %v1624
    %v1629 = vtanh.pop %v1627
    %v1630 = vtanh.pop %v1628
    %1633 = vrot.lane.b32.xlu0 %v1629, 4
    %v1634 = vpop.permute.xlu0 %1633
    %1635 = vrot.lane.b32.xlu0 %v1630, 4
    %v1636 = vpop.permute.xlu0 %1635
    %v1639 = vmul.f32 %v1605, %v1634
    %v1640 = vmul.f32 %v1606, %v1636
    %1642 = vset.pattern.permute.xlu0 6
    %1643 = vperm.xlu0 %1642, %v1639
    %v1644 = vpop.permute.xlu0 %1643
    %1647 = vset.pattern.permute.xlu0 6
    %1648 = vperm.xlu0 %1647, %v1640
    %v1649 = vpop.permute.xlu0 %1648
    %v1651 = vmul.f32 %v1644, %v1127
    %v1652 = vmul.f32 %v1649, %v1127
    %1653 = vset.pattern.permute.xlu0 7
    %1654 = vperm.xlu0 %1653, %v1639
    %v1655 = vpop.permute.xlu0 %1654
    %1657 = vset.pattern.permute.xlu0 7
    %1658 = vperm.xlu0 %1657, %v1640
    %v1659 = vpop.permute.xlu0 %1658
    %v1661 = vmul.f32 %v1655, %v1141
    %v1662 = vmul.f32 %v1659, %v1141
    %v1663 = vadd.f32 %v1651, %v1661
    %v1664 = vadd.f32 %v1652, %v1662
    %1666 = vset.pattern.permute.xlu0 6
    %1667 = vperm.xlu0 %1666, %v1561
    %v1668 = vpop.permute.xlu0 %1667
    %1671 = vset.pattern.permute.xlu0 6
    %1672 = vperm.xlu0 %1671, %v1562
    %v1673 = vpop.permute.xlu0 %1672
    %v1675 = vmul.f32 %v1668, %v1149
    %v1676 = vmul.f32 %v1673, %v1149
    %1677 = vset.pattern.permute.xlu0 7
    %1678 = vperm.xlu0 %1677, %v1561
    %v1679 = vpop.permute.xlu0 %1678
    %1681 = vset.pattern.permute.xlu0 7
    %1682 = vperm.xlu0 %1681, %v1562
    %v1683 = vpop.permute.xlu0 %1682
    %v1685 = vmul.f32 %v1679, %v1154
    %v1686 = vmul.f32 %v1683, %v1154
    %v1687 = vadd.f32 %v1675, %v1685
    %v1688 = vadd.f32 %v1676, %v1686
    %v1689 = vadd.f32 %v1663, %v1687
    %v1690 = vadd.f32 %v1664, %v1688
    %v1691 = vadd.f32 %v1689, %v1162
    %v1692 = vadd.f32 %v1690, %v1162
    %v1693 = vmul.f32 %v1691, 0.5
    %v1694 = vmul.f32 %v1692, 0.5
    %v1695 = vsel %vm1054, %v1691, %v1693
    %v1696 = vsel %vm1054, %v1692, %v1694
    %v1697 = vtanh.pop %v1695
    %v1698 = vtanh.pop %v1696
    %v1699 = vadd.f32 %v1697, 1.0
    %v1700 = vadd.f32 %v1698, 1.0
    %v1701 = vmul.f32 %v1699, 0.5
    %v1702 = vmul.f32 %v1700, 0.5
    %v1703 = vsel %vm1054, %v1697, %v1701
    %v1704 = vsel %vm1054, %v1698, %v1702
    %v1705 = vmul.f32 %v1703, %v1549
    %v1706 = vmul.f32 %v1704, %v1550
    %1709 = vrot.lane.b32.xlu0 %v1703, 124
    %v1710 = vpop.permute.xlu0 %1709
    %1711 = vrot.lane.b32.xlu0 %v1704, 124
    %v1712 = vpop.permute.xlu0 %1711
    %v1715 = vmul.f32 %v1703, %v1710
    %v1716 = vmul.f32 %v1704, %v1712
    %1719 = vrot.lane.b32.xlu0 %v1715, 2
    %v1720 = vpop.permute.xlu0 %1719
    %1721 = vrot.lane.b32.xlu0 %v1716, 2
    %v1722 = vpop.permute.xlu0 %1721
    %v1725 = vadd.f32 %v1705, %v1720
    %v1726 = vadd.f32 %v1706, %v1722
    %v1727 = vtanh.pop %v1725
    %v1728 = vtanh.pop %v1726
    %1731 = vrot.lane.b32.xlu0 %v1727, 4
    %v1732 = vpop.permute.xlu0 %1731
    %1733 = vrot.lane.b32.xlu0 %v1728, 4
    %v1734 = vpop.permute.xlu0 %1733
    %v1737 = vmul.f32 %v1703, %v1732
    %v1738 = vmul.f32 %v1704, %v1734
    %v1739 = vmul.f32 %v1644, %v1058
    %v1740 = vmul.f32 %v1649, %v1058
    %v1741 = vmul.f32 %v1655, %v1063
    %v1742 = vmul.f32 %v1659, %v1063
    %v1743 = vadd.f32 %v1739, %v1741
    %v1744 = vadd.f32 %v1740, %v1742
    %1747 = vrot.lane.b32.xlu0 %v1743, 32
    %v1748 = vpop.permute.xlu0 %1747
    %1749 = vrot.lane.b32.xlu0 %v1744, 32
    %v1750 = vpop.permute.xlu0 %1749
    %v1753 = vadd.f32 %v1041, %v1748
    %v1754 = vadd.f32 %v1046, %v1750
    %v1755 = vmul.f32 %v1753, 0.5
    %v1756 = vmul.f32 %v1754, 0.5
    %1759 = vrot.lane.b32.xlu0 %v1753, 96
    %v1760 = vpop.permute.xlu0 %1759
    %1761 = vrot.lane.b32.xlu0 %v1754, 96
    %v1762 = vpop.permute.xlu0 %1761
    %1767 = vrot.lane.b32.xlu0 %v1755, 96
    %v1768 = vpop.permute.xlu0 %1767
    %1769 = vrot.lane.b32.xlu0 %v1756, 96
    %v1770 = vpop.permute.xlu0 %1769
    %v1773 = vsel %vm1054, %v1760, %v1768
    %v1774 = vsel %vm1054, %v1762, %v1770
    %v1775 = vtanh.pop %v1773
    %v1776 = vtanh.pop %v1774
    %v1777 = vadd.f32 %v1775, 1.0
    %v1778 = vadd.f32 %v1776, 1.0
    %v1779 = vmul.f32 %v1777, 0.5
    %v1780 = vmul.f32 %v1778, 0.5
    %v1781 = vsel %vm1054, %v1775, %v1779
    %v1782 = vsel %vm1054, %v1776, %v1780
    %v1783 = vmul.f32 %v1781, %v1627
    %v1784 = vmul.f32 %v1782, %v1628
    %1787 = vrot.lane.b32.xlu0 %v1781, 124
    %v1788 = vpop.permute.xlu0 %1787
    %1789 = vrot.lane.b32.xlu0 %v1782, 124
    %v1790 = vpop.permute.xlu0 %1789
    %v1793 = vmul.f32 %v1781, %v1788
    %v1794 = vmul.f32 %v1782, %v1790
    %1797 = vrot.lane.b32.xlu0 %v1793, 2
    %v1798 = vpop.permute.xlu0 %1797
    %1799 = vrot.lane.b32.xlu0 %v1794, 2
    %v1800 = vpop.permute.xlu0 %1799
    %v1803 = vadd.f32 %v1783, %v1798
    %v1804 = vadd.f32 %v1784, %v1800
    %v1805 = vtanh.pop %v1803
    %v1806 = vtanh.pop %v1804
    %1809 = vrot.lane.b32.xlu0 %v1805, 4
    %v1810 = vpop.permute.xlu0 %1809
    %1811 = vrot.lane.b32.xlu0 %v1806, 4
    %v1812 = vpop.permute.xlu0 %1811
    %v1815 = vmul.f32 %v1781, %v1810
    %v1816 = vmul.f32 %v1782, %v1812
    %1818 = vset.pattern.permute.xlu0 6
    %1819 = vperm.xlu0 %1818, %v1815
    %v1820 = vpop.permute.xlu0 %1819
    %1823 = vset.pattern.permute.xlu0 6
    %1824 = vperm.xlu0 %1823, %v1816
    %v1825 = vpop.permute.xlu0 %1824
    %v1827 = vmul.f32 %v1820, %v1127
    %v1828 = vmul.f32 %v1825, %v1127
    %1829 = vset.pattern.permute.xlu0 7
    %1830 = vperm.xlu0 %1829, %v1815
    %v1831 = vpop.permute.xlu0 %1830
    %1833 = vset.pattern.permute.xlu0 7
    %1834 = vperm.xlu0 %1833, %v1816
    %v1835 = vpop.permute.xlu0 %1834
    %v1837 = vmul.f32 %v1831, %v1141
    %v1838 = vmul.f32 %v1835, %v1141
    %v1839 = vadd.f32 %v1827, %v1837
    %v1840 = vadd.f32 %v1828, %v1838
    %1842 = vset.pattern.permute.xlu0 6
    %1843 = vperm.xlu0 %1842, %v1737
    %v1844 = vpop.permute.xlu0 %1843
    %1847 = vset.pattern.permute.xlu0 6
    %1848 = vperm.xlu0 %1847, %v1738
    %v1849 = vpop.permute.xlu0 %1848
    %v1851 = vmul.f32 %v1844, %v1149
    %v1852 = vmul.f32 %v1849, %v1149
    %1853 = vset.pattern.permute.xlu0 7
    %1854 = vperm.xlu0 %1853, %v1737
    %v1855 = vpop.permute.xlu0 %1854
    %1857 = vset.pattern.permute.xlu0 7
    %1858 = vperm.xlu0 %1857, %v1738
    %v1859 = vpop.permute.xlu0 %1858
    %v1861 = vmul.f32 %v1855, %v1154
    %v1862 = vmul.f32 %v1859, %v1154
    %v1863 = vadd.f32 %v1851, %v1861
    %v1864 = vadd.f32 %v1852, %v1862
    %v1865 = vadd.f32 %v1839, %v1863
    %v1866 = vadd.f32 %v1840, %v1864
    %v1867 = vadd.f32 %v1865, %v1162
    %v1868 = vadd.f32 %v1866, %v1162
    %v1869 = vmul.f32 %v1867, 0.5
    %v1870 = vmul.f32 %v1868, 0.5
    %v1871 = vsel %vm1054, %v1867, %v1869
    %v1872 = vsel %vm1054, %v1868, %v1870
    %v1873 = vtanh.pop %v1871
    %v1874 = vtanh.pop %v1872
    %v1875 = vadd.f32 %v1873, 1.0
    %v1876 = vadd.f32 %v1874, 1.0
    %v1877 = vmul.f32 %v1875, 0.5
    %v1878 = vmul.f32 %v1876, 0.5
    %v1879 = vsel %vm1054, %v1873, %v1877
    %v1880 = vsel %vm1054, %v1874, %v1878
    %v1881 = vmul.f32 %v1879, %v1725
    %v1882 = vmul.f32 %v1880, %v1726
    %1885 = vrot.lane.b32.xlu0 %v1879, 124
    %v1886 = vpop.permute.xlu0 %1885
    %1887 = vrot.lane.b32.xlu0 %v1880, 124
    %v1888 = vpop.permute.xlu0 %1887
    %v1891 = vmul.f32 %v1879, %v1886
    %v1892 = vmul.f32 %v1880, %v1888
    %1895 = vrot.lane.b32.xlu0 %v1891, 2
    %v1896 = vpop.permute.xlu0 %1895
    %1897 = vrot.lane.b32.xlu0 %v1892, 2
    %v1898 = vpop.permute.xlu0 %1897
    %v1901 = vadd.f32 %v1881, %v1896
    %v1902 = vadd.f32 %v1882, %v1898
    %v1903 = vtanh.pop %v1901
    %v1904 = vtanh.pop %v1902
    %1907 = vrot.lane.b32.xlu0 %v1903, 4
    %v1908 = vpop.permute.xlu0 %1907
    %1909 = vrot.lane.b32.xlu0 %v1904, 4
    %v1910 = vpop.permute.xlu0 %1909
    %v1913 = vmul.f32 %v1879, %v1908
    %v1914 = vmul.f32 %v1880, %v1910
    %v1915 = vmul.f32 %v1820, %v1058
    %v1916 = vmul.f32 %v1825, %v1058
    %v1917 = vmul.f32 %v1831, %v1063
    %v1918 = vmul.f32 %v1835, %v1063
    %v1919 = vadd.f32 %v1915, %v1917
    %v1920 = vadd.f32 %v1916, %v1918
    %1923 = vrot.lane.b32.xlu0 %v1919, 40
    %v1924 = vpop.permute.xlu0 %1923
    %1925 = vrot.lane.b32.xlu0 %v1920, 40
    %v1926 = vpop.permute.xlu0 %1925
    %v1929 = vadd.f32 %v1041, %v1924
    %v1930 = vadd.f32 %v1046, %v1926
    %v1931 = vmul.f32 %v1929, 0.5
    %v1932 = vmul.f32 %v1930, 0.5
    %1935 = vrot.lane.b32.xlu0 %v1929, 88
    %v1936 = vpop.permute.xlu0 %1935
    %1937 = vrot.lane.b32.xlu0 %v1930, 88
    %v1938 = vpop.permute.xlu0 %1937
    %1943 = vrot.lane.b32.xlu0 %v1931, 88
    %v1944 = vpop.permute.xlu0 %1943
    %1945 = vrot.lane.b32.xlu0 %v1932, 88
    %v1946 = vpop.permute.xlu0 %1945
    %v1949 = vsel %vm1054, %v1936, %v1944
    %v1950 = vsel %vm1054, %v1938, %v1946
    %v1951 = vtanh.pop %v1949
    %v1952 = vtanh.pop %v1950
    %v1953 = vadd.f32 %v1951, 1.0
    %v1954 = vadd.f32 %v1952, 1.0
    %v1955 = vmul.f32 %v1953, 0.5
    %v1956 = vmul.f32 %v1954, 0.5
    %v1957 = vsel %vm1054, %v1951, %v1955
    %v1958 = vsel %vm1054, %v1952, %v1956
    %v1959 = vmul.f32 %v1957, %v1803
    %v1960 = vmul.f32 %v1958, %v1804
    %1963 = vrot.lane.b32.xlu0 %v1957, 124
    %v1964 = vpop.permute.xlu0 %1963
    %1965 = vrot.lane.b32.xlu0 %v1958, 124
    %v1966 = vpop.permute.xlu0 %1965
    %v1969 = vmul.f32 %v1957, %v1964
    %v1970 = vmul.f32 %v1958, %v1966
    %1973 = vrot.lane.b32.xlu0 %v1969, 2
    %v1974 = vpop.permute.xlu0 %1973
    %1975 = vrot.lane.b32.xlu0 %v1970, 2
    %v1976 = vpop.permute.xlu0 %1975
    %v1979 = vadd.f32 %v1959, %v1974
    %v1980 = vadd.f32 %v1960, %v1976
    %v1981 = vtanh.pop %v1979
    %v1982 = vtanh.pop %v1980
    %1985 = vrot.lane.b32.xlu0 %v1981, 4
    %v1986 = vpop.permute.xlu0 %1985
    %1987 = vrot.lane.b32.xlu0 %v1982, 4
    %v1988 = vpop.permute.xlu0 %1987
    %v1991 = vmul.f32 %v1957, %v1986
    %v1992 = vmul.f32 %v1958, %v1988
    %1994 = vset.pattern.permute.xlu0 6
    %1995 = vperm.xlu0 %1994, %v1991
    %v1996 = vpop.permute.xlu0 %1995
    %1999 = vset.pattern.permute.xlu0 6
    %2000 = vperm.xlu0 %1999, %v1992
    %v2001 = vpop.permute.xlu0 %2000
    %v2003 = vmul.f32 %v1996, %v1127
    %v2004 = vmul.f32 %v2001, %v1127
    %2005 = vset.pattern.permute.xlu0 7
    %2006 = vperm.xlu0 %2005, %v1991
    %v2007 = vpop.permute.xlu0 %2006
    %2009 = vset.pattern.permute.xlu0 7
    %2010 = vperm.xlu0 %2009, %v1992
    %v2011 = vpop.permute.xlu0 %2010
    %v2013 = vmul.f32 %v2007, %v1141
    %v2014 = vmul.f32 %v2011, %v1141
    %v2015 = vadd.f32 %v2003, %v2013
    %v2016 = vadd.f32 %v2004, %v2014
    %2018 = vset.pattern.permute.xlu0 6
    %2019 = vperm.xlu0 %2018, %v1913
    %v2020 = vpop.permute.xlu0 %2019
    %2023 = vset.pattern.permute.xlu0 6
    %2024 = vperm.xlu0 %2023, %v1914
    %v2025 = vpop.permute.xlu0 %2024
    %v2027 = vmul.f32 %v2020, %v1149
    %v2028 = vmul.f32 %v2025, %v1149
    %2029 = vset.pattern.permute.xlu0 7
    %2030 = vperm.xlu0 %2029, %v1913
    %v2031 = vpop.permute.xlu0 %2030
    %2033 = vset.pattern.permute.xlu0 7
    %2034 = vperm.xlu0 %2033, %v1914
    %v2035 = vpop.permute.xlu0 %2034
    %v2037 = vmul.f32 %v2031, %v1154
    %v2038 = vmul.f32 %v2035, %v1154
    %v2039 = vadd.f32 %v2027, %v2037
    %v2040 = vadd.f32 %v2028, %v2038
    %v2041 = vadd.f32 %v2015, %v2039
    %v2042 = vadd.f32 %v2016, %v2040
    %v2043 = vadd.f32 %v2041, %v1162
    %v2044 = vadd.f32 %v2042, %v1162
    %v2045 = vmul.f32 %v2043, 0.5
    %v2046 = vmul.f32 %v2044, 0.5
    %v2047 = vsel %vm1054, %v2043, %v2045
    %v2048 = vsel %vm1054, %v2044, %v2046
    %v2049 = vtanh.pop %v2047
    %v2050 = vtanh.pop %v2048
    %v2051 = vadd.f32 %v2049, 1.0
    %v2052 = vadd.f32 %v2050, 1.0
    %v2053 = vmul.f32 %v2051, 0.5
    %v2054 = vmul.f32 %v2052, 0.5
    %v2055 = vsel %vm1054, %v2049, %v2053
    %v2056 = vsel %vm1054, %v2050, %v2054
    %v2057 = vmul.f32 %v2055, %v1901
    %v2058 = vmul.f32 %v2056, %v1902
    %2061 = vrot.lane.b32.xlu0 %v2055, 124
    %v2062 = vpop.permute.xlu0 %2061
    %2063 = vrot.lane.b32.xlu0 %v2056, 124
    %v2064 = vpop.permute.xlu0 %2063
    %v2067 = vmul.f32 %v2055, %v2062
    %v2068 = vmul.f32 %v2056, %v2064
    %2071 = vrot.lane.b32.xlu0 %v2067, 2
    %v2072 = vpop.permute.xlu0 %2071
    %2073 = vrot.lane.b32.xlu0 %v2068, 2
    %v2074 = vpop.permute.xlu0 %2073
    %v2077 = vadd.f32 %v2057, %v2072
    %v2078 = vadd.f32 %v2058, %v2074
    %v2079 = vtanh.pop %v2077
    %v2080 = vtanh.pop %v2078
    %2083 = vrot.lane.b32.xlu0 %v2079, 4
    %v2084 = vpop.permute.xlu0 %2083
    %2085 = vrot.lane.b32.xlu0 %v2080, 4
    %v2086 = vpop.permute.xlu0 %2085
    %v2089 = vmul.f32 %v2055, %v2084
    %v2090 = vmul.f32 %v2056, %v2086
    %v2091 = vmul.f32 %v1996, %v1058
    %v2092 = vmul.f32 %v2001, %v1058
    %v2093 = vmul.f32 %v2007, %v1063
    %v2094 = vmul.f32 %v2011, %v1063
    %v2095 = vadd.f32 %v2091, %v2093
    %v2096 = vadd.f32 %v2092, %v2094
    %2099 = vrot.lane.b32.xlu0 %v2095, 48
    %v2100 = vpop.permute.xlu0 %2099
    %2101 = vrot.lane.b32.xlu0 %v2096, 48
    %v2102 = vpop.permute.xlu0 %2101
    %v2105 = vadd.f32 %v1041, %v2100
    %v2106 = vadd.f32 %v1046, %v2102
    %v2107 = vmul.f32 %v2105, 0.5
    %v2108 = vmul.f32 %v2106, 0.5
    %2111 = vrot.lane.b32.xlu0 %v2105, 80
    %v2112 = vpop.permute.xlu0 %2111
    %2113 = vrot.lane.b32.xlu0 %v2106, 80
    %v2114 = vpop.permute.xlu0 %2113
    %2119 = vrot.lane.b32.xlu0 %v2107, 80
    %v2120 = vpop.permute.xlu0 %2119
    %2121 = vrot.lane.b32.xlu0 %v2108, 80
    %v2122 = vpop.permute.xlu0 %2121
    %v2125 = vsel %vm1054, %v2112, %v2120
    %v2126 = vsel %vm1054, %v2114, %v2122
    %v2127 = vtanh.pop %v2125
    %v2128 = vtanh.pop %v2126
    %v2129 = vadd.f32 %v2127, 1.0
    %v2130 = vadd.f32 %v2128, 1.0
    %v2131 = vmul.f32 %v2129, 0.5
    %v2132 = vmul.f32 %v2130, 0.5
    %v2133 = vsel %vm1054, %v2127, %v2131
    %v2134 = vsel %vm1054, %v2128, %v2132
    %v2135 = vmul.f32 %v2133, %v1979
    %v2136 = vmul.f32 %v2134, %v1980
    %2139 = vrot.lane.b32.xlu0 %v2133, 124
    %v2140 = vpop.permute.xlu0 %2139
    %2141 = vrot.lane.b32.xlu0 %v2134, 124
    %v2142 = vpop.permute.xlu0 %2141
    %v2145 = vmul.f32 %v2133, %v2140
    %v2146 = vmul.f32 %v2134, %v2142
    %2149 = vrot.lane.b32.xlu0 %v2145, 2
    %v2150 = vpop.permute.xlu0 %2149
    %2151 = vrot.lane.b32.xlu0 %v2146, 2
    %v2152 = vpop.permute.xlu0 %2151
    %v2155 = vadd.f32 %v2135, %v2150
    %v2156 = vadd.f32 %v2136, %v2152
    %v2157 = vtanh.pop %v2155
    %v2158 = vtanh.pop %v2156
    %2161 = vrot.lane.b32.xlu0 %v2157, 4
    %v2162 = vpop.permute.xlu0 %2161
    %2163 = vrot.lane.b32.xlu0 %v2158, 4
    %v2164 = vpop.permute.xlu0 %2163
    %v2167 = vmul.f32 %v2133, %v2162
    %v2168 = vmul.f32 %v2134, %v2164
    %2170 = vset.pattern.permute.xlu0 6
    %2171 = vperm.xlu0 %2170, %v2167
    %v2172 = vpop.permute.xlu0 %2171
    %2175 = vset.pattern.permute.xlu0 6
    %2176 = vperm.xlu0 %2175, %v2168
    %v2177 = vpop.permute.xlu0 %2176
    %v2179 = vmul.f32 %v2172, %v1127
    %v2180 = vmul.f32 %v2177, %v1127
    %2181 = vset.pattern.permute.xlu0 7
    %2182 = vperm.xlu0 %2181, %v2167
    %v2183 = vpop.permute.xlu0 %2182
    %2185 = vset.pattern.permute.xlu0 7
    %2186 = vperm.xlu0 %2185, %v2168
    %v2187 = vpop.permute.xlu0 %2186
    %v2189 = vmul.f32 %v2183, %v1141
    %v2190 = vmul.f32 %v2187, %v1141
    %v2191 = vadd.f32 %v2179, %v2189
    %v2192 = vadd.f32 %v2180, %v2190
    %2194 = vset.pattern.permute.xlu0 6
    %2195 = vperm.xlu0 %2194, %v2089
    %v2196 = vpop.permute.xlu0 %2195
    %2199 = vset.pattern.permute.xlu0 6
    %2200 = vperm.xlu0 %2199, %v2090
    %v2201 = vpop.permute.xlu0 %2200
    %v2203 = vmul.f32 %v2196, %v1149
    %v2204 = vmul.f32 %v2201, %v1149
    %2205 = vset.pattern.permute.xlu0 7
    %2206 = vperm.xlu0 %2205, %v2089
    %v2207 = vpop.permute.xlu0 %2206
    %2209 = vset.pattern.permute.xlu0 7
    %2210 = vperm.xlu0 %2209, %v2090
    %v2211 = vpop.permute.xlu0 %2210
    %v2213 = vmul.f32 %v2207, %v1154
    %v2214 = vmul.f32 %v2211, %v1154
    %v2215 = vadd.f32 %v2203, %v2213
    %v2216 = vadd.f32 %v2204, %v2214
    %v2217 = vadd.f32 %v2191, %v2215
    %v2218 = vadd.f32 %v2192, %v2216
    %v2219 = vadd.f32 %v2217, %v1162
    %v2220 = vadd.f32 %v2218, %v1162
    %v2221 = vmul.f32 %v2219, 0.5
    %v2222 = vmul.f32 %v2220, 0.5
    %v2223 = vsel %vm1054, %v2219, %v2221
    %v2224 = vsel %vm1054, %v2220, %v2222
    %v2225 = vtanh.pop %v2223
    %v2226 = vtanh.pop %v2224
    %v2227 = vadd.f32 %v2225, 1.0
    %v2228 = vadd.f32 %v2226, 1.0
    %v2229 = vmul.f32 %v2227, 0.5
    %v2230 = vmul.f32 %v2228, 0.5
    %v2231 = vsel %vm1054, %v2225, %v2229
    %v2232 = vsel %vm1054, %v2226, %v2230
    %v2233 = vmul.f32 %v2231, %v2077
    %v2234 = vmul.f32 %v2232, %v2078
    %2237 = vrot.lane.b32.xlu0 %v2231, 124
    %v2238 = vpop.permute.xlu0 %2237
    %2239 = vrot.lane.b32.xlu0 %v2232, 124
    %v2240 = vpop.permute.xlu0 %2239
    %v2243 = vmul.f32 %v2231, %v2238
    %v2244 = vmul.f32 %v2232, %v2240
    %2247 = vrot.lane.b32.xlu0 %v2243, 2
    %v2248 = vpop.permute.xlu0 %2247
    %2249 = vrot.lane.b32.xlu0 %v2244, 2
    %v2250 = vpop.permute.xlu0 %2249
    %v2253 = vadd.f32 %v2233, %v2248
    %v2254 = vadd.f32 %v2234, %v2250
    %v2255 = vtanh.pop %v2253
    %v2256 = vtanh.pop %v2254
    %2259 = vrot.lane.b32.xlu0 %v2255, 4
    %v2260 = vpop.permute.xlu0 %2259
    %2261 = vrot.lane.b32.xlu0 %v2256, 4
    %v2262 = vpop.permute.xlu0 %2261
    %v2265 = vmul.f32 %v2231, %v2260
    %v2266 = vmul.f32 %v2232, %v2262
    %v2267 = vmul.f32 %v2172, %v1058
    %v2268 = vmul.f32 %v2177, %v1058
    %v2269 = vmul.f32 %v2183, %v1063
    %v2270 = vmul.f32 %v2187, %v1063
    %v2271 = vadd.f32 %v2267, %v2269
    %v2272 = vadd.f32 %v2268, %v2270
    %2275 = vrot.lane.b32.xlu0 %v2271, 56
    %v2276 = vpop.permute.xlu0 %2275
    %2277 = vrot.lane.b32.xlu0 %v2272, 56
    %v2278 = vpop.permute.xlu0 %2277
    %v2281 = vadd.f32 %v1041, %v2276
    %v2282 = vadd.f32 %v1046, %v2278
    %v2283 = vmul.f32 %v2281, 0.5
    %v2284 = vmul.f32 %v2282, 0.5
    %2287 = vrot.lane.b32.xlu0 %v2281, 72
    %v2288 = vpop.permute.xlu0 %2287
    %2289 = vrot.lane.b32.xlu0 %v2282, 72
    %v2290 = vpop.permute.xlu0 %2289
    %2295 = vrot.lane.b32.xlu0 %v2283, 72
    %v2296 = vpop.permute.xlu0 %2295
    %2297 = vrot.lane.b32.xlu0 %v2284, 72
    %v2298 = vpop.permute.xlu0 %2297
    %v2301 = vsel %vm1054, %v2288, %v2296
    %v2302 = vsel %vm1054, %v2290, %v2298
    %v2303 = vtanh.pop %v2301
    %v2304 = vtanh.pop %v2302
    %v2305 = vadd.f32 %v2303, 1.0
    %v2306 = vadd.f32 %v2304, 1.0
    %v2307 = vmul.f32 %v2305, 0.5
    %v2308 = vmul.f32 %v2306, 0.5
    %v2309 = vsel %vm1054, %v2303, %v2307
    %v2310 = vsel %vm1054, %v2304, %v2308
    %v2311 = vmul.f32 %v2309, %v2155
    %v2312 = vmul.f32 %v2310, %v2156
    %2315 = vrot.lane.b32.xlu0 %v2309, 124
    %v2316 = vpop.permute.xlu0 %2315
    %2317 = vrot.lane.b32.xlu0 %v2310, 124
    %v2318 = vpop.permute.xlu0 %2317
    %v2321 = vmul.f32 %v2309, %v2316
    %v2322 = vmul.f32 %v2310, %v2318
    %2325 = vrot.lane.b32.xlu0 %v2321, 2
    %v2326 = vpop.permute.xlu0 %2325
    %2327 = vrot.lane.b32.xlu0 %v2322, 2
    %v2328 = vpop.permute.xlu0 %2327
    %v2331 = vadd.f32 %v2311, %v2326
    %v2332 = vadd.f32 %v2312, %v2328
    %v2333 = vtanh.pop %v2331
    %v2334 = vtanh.pop %v2332
    %2337 = vrot.lane.b32.xlu0 %v2333, 4
    %v2338 = vpop.permute.xlu0 %2337
    %2339 = vrot.lane.b32.xlu0 %v2334, 4
    %v2340 = vpop.permute.xlu0 %2339
    %v2343 = vmul.f32 %v2309, %v2338
    %v2344 = vmul.f32 %v2310, %v2340
    %2346 = vset.pattern.permute.xlu0 6
    %2347 = vperm.xlu0 %2346, %v2343
    %v2348 = vpop.permute.xlu0 %2347
    %2351 = vset.pattern.permute.xlu0 6
    %2352 = vperm.xlu0 %2351, %v2344
    %v2353 = vpop.permute.xlu0 %2352
    %v2355 = vmul.f32 %v2348, %v1127
    %v2356 = vmul.f32 %v2353, %v1127
    %2357 = vset.pattern.permute.xlu0 7
    %2358 = vperm.xlu0 %2357, %v2343
    %v2359 = vpop.permute.xlu0 %2358
    %2361 = vset.pattern.permute.xlu0 7
    %2362 = vperm.xlu0 %2361, %v2344
    %v2363 = vpop.permute.xlu0 %2362
    %v2365 = vmul.f32 %v2359, %v1141
    %v2366 = vmul.f32 %v2363, %v1141
    %v2367 = vadd.f32 %v2355, %v2365
    %v2368 = vadd.f32 %v2356, %v2366
    %2370 = vset.pattern.permute.xlu0 6
    %2371 = vperm.xlu0 %2370, %v2265
    %v2372 = vpop.permute.xlu0 %2371
    %2375 = vset.pattern.permute.xlu0 6
    %2376 = vperm.xlu0 %2375, %v2266
    %v2377 = vpop.permute.xlu0 %2376
    %v2379 = vmul.f32 %v2372, %v1149
    %v2380 = vmul.f32 %v2377, %v1149
    %2381 = vset.pattern.permute.xlu0 7
    %2382 = vperm.xlu0 %2381, %v2265
    %v2383 = vpop.permute.xlu0 %2382
    %2385 = vset.pattern.permute.xlu0 7
    %2386 = vperm.xlu0 %2385, %v2266
    %v2387 = vpop.permute.xlu0 %2386
    %v2389 = vmul.f32 %v2383, %v1154
    %v2390 = vmul.f32 %v2387, %v1154
    %v2391 = vadd.f32 %v2379, %v2389
    %v2392 = vadd.f32 %v2380, %v2390
    %v2393 = vadd.f32 %v2367, %v2391
    %v2394 = vadd.f32 %v2368, %v2392
    %v2395 = vadd.f32 %v2393, %v1162
    %v2396 = vadd.f32 %v2394, %v1162
    %v2397 = vmul.f32 %v2395, 0.5
    %v2398 = vmul.f32 %v2396, 0.5
    %v2399 = vsel %vm1054, %v2395, %v2397
    %v2400 = vsel %vm1054, %v2396, %v2398
    %v2401 = vtanh.pop %v2399
    %v2402 = vtanh.pop %v2400
    %v2403 = vadd.f32 %v2401, 1.0
    %v2404 = vadd.f32 %v2402, 1.0
    %v2405 = vmul.f32 %v2403, 0.5
    %v2406 = vmul.f32 %v2404, 0.5
    %v2407 = vsel %vm1054, %v2401, %v2405
    %v2408 = vsel %vm1054, %v2402, %v2406
    %v2409 = vmul.f32 %v2407, %v2253
    %v2410 = vmul.f32 %v2408, %v2254
    %2413 = vrot.lane.b32.xlu0 %v2407, 124
    %v2414 = vpop.permute.xlu0 %2413
    %2415 = vrot.lane.b32.xlu0 %v2408, 124
    %v2416 = vpop.permute.xlu0 %2415
    %v2419 = vmul.f32 %v2407, %v2414
    %v2420 = vmul.f32 %v2408, %v2416
    %2423 = vrot.lane.b32.xlu0 %v2419, 2
    %v2424 = vpop.permute.xlu0 %2423
    %2425 = vrot.lane.b32.xlu0 %v2420, 2
    %v2426 = vpop.permute.xlu0 %2425
    %v2429 = vadd.f32 %v2409, %v2424
    %v2430 = vadd.f32 %v2410, %v2426
    %v2431 = vtanh.pop %v2429
    %v2432 = vtanh.pop %v2430
    %2435 = vrot.lane.b32.xlu0 %v2431, 4
    %v2436 = vpop.permute.xlu0 %2435
    %2437 = vrot.lane.b32.xlu0 %v2432, 4
    %v2438 = vpop.permute.xlu0 %2437
    %v2441 = vmul.f32 %v2407, %v2436
    %v2442 = vmul.f32 %v2408, %v2438
    %v2443 = vmul.f32 %v2348, %v1058
    %v2444 = vmul.f32 %v2353, %v1058
    %v2445 = vmul.f32 %v2359, %v1063
    %v2446 = vmul.f32 %v2363, %v1063
    %v2447 = vadd.f32 %v2443, %v2445
    %v2448 = vadd.f32 %v2444, %v2446
    %2451 = vrot.lane.b32.xlu0 %v2447, 64
    %v2452 = vpop.permute.xlu0 %2451
    %2453 = vrot.lane.b32.xlu0 %v2448, 64
    %v2454 = vpop.permute.xlu0 %2453
    %v2457 = vadd.f32 %v1041, %v2452
    %v2458 = vadd.f32 %v1046, %v2454
    %v2459 = vmul.f32 %v2457, 0.5
    %v2460 = vmul.f32 %v2458, 0.5
    %2463 = vrot.lane.b32.xlu0 %v2457, 64
    %v2464 = vpop.permute.xlu0 %2463
    %2465 = vrot.lane.b32.xlu0 %v2458, 64
    %v2466 = vpop.permute.xlu0 %2465
    %2471 = vrot.lane.b32.xlu0 %v2459, 64
    %v2472 = vpop.permute.xlu0 %2471
    %2473 = vrot.lane.b32.xlu0 %v2460, 64
    %v2474 = vpop.permute.xlu0 %2473
    %v2477 = vsel %vm1054, %v2464, %v2472
    %v2478 = vsel %vm1054, %v2466, %v2474
    %v2479 = vtanh.pop %v2477
    %v2480 = vtanh.pop %v2478
    %v2481 = vadd.f32 %v2479, 1.0
    %v2482 = vadd.f32 %v2480, 1.0
    %v2483 = vmul.f32 %v2481, 0.5
    %v2484 = vmul.f32 %v2482, 0.5
    %v2485 = vsel %vm1054, %v2479, %v2483
    %v2486 = vsel %vm1054, %v2480, %v2484
    %v2487 = vmul.f32 %v2485, %v2331
    %v2488 = vmul.f32 %v2486, %v2332
    %2491 = vrot.lane.b32.xlu0 %v2485, 124
    %v2492 = vpop.permute.xlu0 %2491
    %2493 = vrot.lane.b32.xlu0 %v2486, 124
    %v2494 = vpop.permute.xlu0 %2493
    %v2497 = vmul.f32 %v2485, %v2492
    %v2498 = vmul.f32 %v2486, %v2494
    %2501 = vrot.lane.b32.xlu0 %v2497, 2
    %v2502 = vpop.permute.xlu0 %2501
    %2503 = vrot.lane.b32.xlu0 %v2498, 2
    %v2504 = vpop.permute.xlu0 %2503
    %v2507 = vadd.f32 %v2487, %v2502
    %v2508 = vadd.f32 %v2488, %v2504
    %v2509 = vtanh.pop %v2507
    %v2510 = vtanh.pop %v2508
    %2513 = vrot.lane.b32.xlu0 %v2509, 4
    %v2514 = vpop.permute.xlu0 %2513
    %2515 = vrot.lane.b32.xlu0 %v2510, 4
    %v2516 = vpop.permute.xlu0 %2515
    %v2519 = vmul.f32 %v2485, %v2514
    %v2520 = vmul.f32 %v2486, %v2516
    %2522 = vset.pattern.permute.xlu0 6
    %2523 = vperm.xlu0 %2522, %v2519
    %v2524 = vpop.permute.xlu0 %2523
    %2527 = vset.pattern.permute.xlu0 6
    %2528 = vperm.xlu0 %2527, %v2520
    %v2529 = vpop.permute.xlu0 %2528
    %v2531 = vmul.f32 %v2524, %v1127
    %v2532 = vmul.f32 %v2529, %v1127
    %2533 = vset.pattern.permute.xlu0 7
    %2534 = vperm.xlu0 %2533, %v2519
    %v2535 = vpop.permute.xlu0 %2534
    %2537 = vset.pattern.permute.xlu0 7
    %2538 = vperm.xlu0 %2537, %v2520
    %v2539 = vpop.permute.xlu0 %2538
    %v2541 = vmul.f32 %v2535, %v1141
    %v2542 = vmul.f32 %v2539, %v1141
    %v2543 = vadd.f32 %v2531, %v2541
    %v2544 = vadd.f32 %v2532, %v2542
    %2546 = vset.pattern.permute.xlu0 6
    %2547 = vperm.xlu0 %2546, %v2441
    %v2548 = vpop.permute.xlu0 %2547
    %2551 = vset.pattern.permute.xlu0 6
    %2552 = vperm.xlu0 %2551, %v2442
    %v2553 = vpop.permute.xlu0 %2552
    %v2555 = vmul.f32 %v2548, %v1149
    %v2556 = vmul.f32 %v2553, %v1149
    %2557 = vset.pattern.permute.xlu0 7
    %2558 = vperm.xlu0 %2557, %v2441
    %v2559 = vpop.permute.xlu0 %2558
    %2561 = vset.pattern.permute.xlu0 7
    %2562 = vperm.xlu0 %2561, %v2442
    %v2563 = vpop.permute.xlu0 %2562
    %v2565 = vmul.f32 %v2559, %v1154
    %v2566 = vmul.f32 %v2563, %v1154
    %v2567 = vadd.f32 %v2555, %v2565
    %v2568 = vadd.f32 %v2556, %v2566
    %v2569 = vadd.f32 %v2543, %v2567
    %v2570 = vadd.f32 %v2544, %v2568
    %v2571 = vadd.f32 %v2569, %v1162
    %v2572 = vadd.f32 %v2570, %v1162
    %v2573 = vmul.f32 %v2571, 0.5
    %v2574 = vmul.f32 %v2572, 0.5
    %v2575 = vsel %vm1054, %v2571, %v2573
    %v2576 = vsel %vm1054, %v2572, %v2574
    %v2577 = vtanh.pop %v2575
    %v2578 = vtanh.pop %v2576
    %v2579 = vadd.f32 %v2577, 1.0
    %v2580 = vadd.f32 %v2578, 1.0
    %v2581 = vmul.f32 %v2579, 0.5
    %v2582 = vmul.f32 %v2580, 0.5
    %v2583 = vsel %vm1054, %v2577, %v2581
    %v2584 = vsel %vm1054, %v2578, %v2582
    %v2585 = vmul.f32 %v2583, %v2429
    %v2586 = vmul.f32 %v2584, %v2430
    %2589 = vrot.lane.b32.xlu0 %v2583, 124
    %v2590 = vpop.permute.xlu0 %2589
    %2591 = vrot.lane.b32.xlu0 %v2584, 124
    %v2592 = vpop.permute.xlu0 %2591
    %v2595 = vmul.f32 %v2583, %v2590
    %v2596 = vmul.f32 %v2584, %v2592
    %2599 = vrot.lane.b32.xlu0 %v2595, 2
    %v2600 = vpop.permute.xlu0 %2599
    %2601 = vrot.lane.b32.xlu0 %v2596, 2
    %v2602 = vpop.permute.xlu0 %2601
    %v2605 = vadd.f32 %v2585, %v2600
    %v2606 = vadd.f32 %v2586, %v2602
    %v2607 = vtanh.pop %v2605
    %v2608 = vtanh.pop %v2606
    %2611 = vrot.lane.b32.xlu0 %v2607, 4
    %v2612 = vpop.permute.xlu0 %2611
    %2613 = vrot.lane.b32.xlu0 %v2608, 4
    %v2614 = vpop.permute.xlu0 %2613
    %v2617 = vmul.f32 %v2583, %v2612
    %v2618 = vmul.f32 %v2584, %v2614
    %v2619 = vmul.f32 %v2524, %v1058
    %v2620 = vmul.f32 %v2529, %v1058
    %v2621 = vmul.f32 %v2535, %v1063
    %v2622 = vmul.f32 %v2539, %v1063
    %v2623 = vadd.f32 %v2619, %v2621
    %v2624 = vadd.f32 %v2620, %v2622
    %2627 = vrot.lane.b32.xlu0 %v2623, 72
    %v2628 = vpop.permute.xlu0 %2627
    %2629 = vrot.lane.b32.xlu0 %v2624, 72
    %v2630 = vpop.permute.xlu0 %2629
    %v2633 = vadd.f32 %v1041, %v2628
    %v2634 = vadd.f32 %v1046, %v2630
    %v2635 = vmul.f32 %v2633, 0.5
    %v2636 = vmul.f32 %v2634, 0.5
    %2639 = vrot.lane.b32.xlu0 %v2633, 56
    %v2640 = vpop.permute.xlu0 %2639
    %2641 = vrot.lane.b32.xlu0 %v2634, 56
    %v2642 = vpop.permute.xlu0 %2641
    %2647 = vrot.lane.b32.xlu0 %v2635, 56
    %v2648 = vpop.permute.xlu0 %2647
    %2649 = vrot.lane.b32.xlu0 %v2636, 56
    %v2650 = vpop.permute.xlu0 %2649
    %v2653 = vsel %vm1054, %v2640, %v2648
    %v2654 = vsel %vm1054, %v2642, %v2650
    %v2655 = vtanh.pop %v2653
    %v2656 = vtanh.pop %v2654
    %v2657 = vadd.f32 %v2655, 1.0
    %v2658 = vadd.f32 %v2656, 1.0
    %v2659 = vmul.f32 %v2657, 0.5
    %v2660 = vmul.f32 %v2658, 0.5
    %v2661 = vsel %vm1054, %v2655, %v2659
    %v2662 = vsel %vm1054, %v2656, %v2660
    %v2663 = vmul.f32 %v2661, %v2507
    %v2664 = vmul.f32 %v2662, %v2508
    %2667 = vrot.lane.b32.xlu0 %v2661, 124
    %v2668 = vpop.permute.xlu0 %2667
    %2669 = vrot.lane.b32.xlu0 %v2662, 124
    %v2670 = vpop.permute.xlu0 %2669
    %v2673 = vmul.f32 %v2661, %v2668
    %v2674 = vmul.f32 %v2662, %v2670
    %2677 = vrot.lane.b32.xlu0 %v2673, 2
    %v2678 = vpop.permute.xlu0 %2677
    %2679 = vrot.lane.b32.xlu0 %v2674, 2
    %v2680 = vpop.permute.xlu0 %2679
    %v2683 = vadd.f32 %v2663, %v2678
    %v2684 = vadd.f32 %v2664, %v2680
    %v2685 = vtanh.pop %v2683
    %v2686 = vtanh.pop %v2684
    %2689 = vrot.lane.b32.xlu0 %v2685, 4
    %v2690 = vpop.permute.xlu0 %2689
    %2691 = vrot.lane.b32.xlu0 %v2686, 4
    %v2692 = vpop.permute.xlu0 %2691
    %v2695 = vmul.f32 %v2661, %v2690
    %v2696 = vmul.f32 %v2662, %v2692
    %2698 = vset.pattern.permute.xlu0 6
    %2699 = vperm.xlu0 %2698, %v2695
    %v2700 = vpop.permute.xlu0 %2699
    %2703 = vset.pattern.permute.xlu0 6
    %2704 = vperm.xlu0 %2703, %v2696
    %v2705 = vpop.permute.xlu0 %2704
    %v2707 = vmul.f32 %v2700, %v1127
    %v2708 = vmul.f32 %v2705, %v1127
    %2709 = vset.pattern.permute.xlu0 7
    %2710 = vperm.xlu0 %2709, %v2695
    %v2711 = vpop.permute.xlu0 %2710
    %2713 = vset.pattern.permute.xlu0 7
    %2714 = vperm.xlu0 %2713, %v2696
    %v2715 = vpop.permute.xlu0 %2714
    %v2717 = vmul.f32 %v2711, %v1141
    %v2718 = vmul.f32 %v2715, %v1141
    %v2719 = vadd.f32 %v2707, %v2717
    %v2720 = vadd.f32 %v2708, %v2718
    %2722 = vset.pattern.permute.xlu0 6
    %2723 = vperm.xlu0 %2722, %v2617
    %v2724 = vpop.permute.xlu0 %2723
    %2727 = vset.pattern.permute.xlu0 6
    %2728 = vperm.xlu0 %2727, %v2618
    %v2729 = vpop.permute.xlu0 %2728
    %v2731 = vmul.f32 %v2724, %v1149
    %v2732 = vmul.f32 %v2729, %v1149
    %2733 = vset.pattern.permute.xlu0 7
    %2734 = vperm.xlu0 %2733, %v2617
    %v2735 = vpop.permute.xlu0 %2734
    %2737 = vset.pattern.permute.xlu0 7
    %2738 = vperm.xlu0 %2737, %v2618
    %v2739 = vpop.permute.xlu0 %2738
    %v2741 = vmul.f32 %v2735, %v1154
    %v2742 = vmul.f32 %v2739, %v1154
    %v2743 = vadd.f32 %v2731, %v2741
    %v2744 = vadd.f32 %v2732, %v2742
    %v2745 = vadd.f32 %v2719, %v2743
    %v2746 = vadd.f32 %v2720, %v2744
    %v2747 = vadd.f32 %v2745, %v1162
    %v2748 = vadd.f32 %v2746, %v1162
    %v2749 = vmul.f32 %v2747, 0.5
    %v2750 = vmul.f32 %v2748, 0.5
    %v2751 = vsel %vm1054, %v2747, %v2749
    %v2752 = vsel %vm1054, %v2748, %v2750
    %v2753 = vtanh.pop %v2751
    %v2754 = vtanh.pop %v2752
    %v2755 = vadd.f32 %v2753, 1.0
    %v2756 = vadd.f32 %v2754, 1.0
    %v2757 = vmul.f32 %v2755, 0.5
    %v2758 = vmul.f32 %v2756, 0.5
    %v2759 = vsel %vm1054, %v2753, %v2757
    %v2760 = vsel %vm1054, %v2754, %v2758
    %v2761 = vmul.f32 %v2759, %v2605
    %v2762 = vmul.f32 %v2760, %v2606
    %2765 = vrot.lane.b32.xlu0 %v2759, 124
    %v2766 = vpop.permute.xlu0 %2765
    %2767 = vrot.lane.b32.xlu0 %v2760, 124
    %v2768 = vpop.permute.xlu0 %2767
    %v2771 = vmul.f32 %v2759, %v2766
    %v2772 = vmul.f32 %v2760, %v2768
    %2775 = vrot.lane.b32.xlu0 %v2771, 2
    %v2776 = vpop.permute.xlu0 %2775
    %2777 = vrot.lane.b32.xlu0 %v2772, 2
    %v2778 = vpop.permute.xlu0 %2777
    %v2781 = vadd.f32 %v2761, %v2776
    %v2782 = vadd.f32 %v2762, %v2778
    %v2783 = vtanh.pop %v2781
    %v2784 = vtanh.pop %v2782
    %2787 = vrot.lane.b32.xlu0 %v2783, 4
    %v2788 = vpop.permute.xlu0 %2787
    %2789 = vrot.lane.b32.xlu0 %v2784, 4
    %v2790 = vpop.permute.xlu0 %2789
    %v2793 = vmul.f32 %v2759, %v2788
    %v2794 = vmul.f32 %v2760, %v2790
    %v2795 = vmul.f32 %v2700, %v1058
    %v2796 = vmul.f32 %v2705, %v1058
    %v2797 = vmul.f32 %v2711, %v1063
    %v2798 = vmul.f32 %v2715, %v1063
    %v2799 = vadd.f32 %v2795, %v2797
    %v2800 = vadd.f32 %v2796, %v2798
    %2803 = vrot.lane.b32.xlu0 %v2799, 80
    %v2804 = vpop.permute.xlu0 %2803
    %2805 = vrot.lane.b32.xlu0 %v2800, 80
    %v2806 = vpop.permute.xlu0 %2805
    %v2809 = vadd.f32 %v1041, %v2804
    %v2810 = vadd.f32 %v1046, %v2806
    %v2811 = vmul.f32 %v2809, 0.5
    %v2812 = vmul.f32 %v2810, 0.5
    %2815 = vrot.lane.b32.xlu0 %v2809, 48
    %v2816 = vpop.permute.xlu0 %2815
    %2817 = vrot.lane.b32.xlu0 %v2810, 48
    %v2818 = vpop.permute.xlu0 %2817
    %2823 = vrot.lane.b32.xlu0 %v2811, 48
    %v2824 = vpop.permute.xlu0 %2823
    %2825 = vrot.lane.b32.xlu0 %v2812, 48
    %v2826 = vpop.permute.xlu0 %2825
    %v2829 = vsel %vm1054, %v2816, %v2824
    %v2830 = vsel %vm1054, %v2818, %v2826
    %v2831 = vtanh.pop %v2829
    %v2832 = vtanh.pop %v2830
    %v2833 = vadd.f32 %v2831, 1.0
    %v2834 = vadd.f32 %v2832, 1.0
    %v2835 = vmul.f32 %v2833, 0.5
    %v2836 = vmul.f32 %v2834, 0.5
    %v2837 = vsel %vm1054, %v2831, %v2835
    %v2838 = vsel %vm1054, %v2832, %v2836
    %v2839 = vmul.f32 %v2837, %v2683
    %v2840 = vmul.f32 %v2838, %v2684
    %2843 = vrot.lane.b32.xlu0 %v2837, 124
    %v2844 = vpop.permute.xlu0 %2843
    %2845 = vrot.lane.b32.xlu0 %v2838, 124
    %v2846 = vpop.permute.xlu0 %2845
    %v2849 = vmul.f32 %v2837, %v2844
    %v2850 = vmul.f32 %v2838, %v2846
    %2853 = vrot.lane.b32.xlu0 %v2849, 2
    %v2854 = vpop.permute.xlu0 %2853
    %2855 = vrot.lane.b32.xlu0 %v2850, 2
    %v2856 = vpop.permute.xlu0 %2855
    %v2859 = vadd.f32 %v2839, %v2854
    %v2860 = vadd.f32 %v2840, %v2856
    %v2861 = vtanh.pop %v2859
    %v2862 = vtanh.pop %v2860
    %2865 = vrot.lane.b32.xlu0 %v2861, 4
    %v2866 = vpop.permute.xlu0 %2865
    %2867 = vrot.lane.b32.xlu0 %v2862, 4
    %v2868 = vpop.permute.xlu0 %2867
    %v2871 = vmul.f32 %v2837, %v2866
    %v2872 = vmul.f32 %v2838, %v2868
    %2874 = vset.pattern.permute.xlu0 6
    %2875 = vperm.xlu0 %2874, %v2871
    %v2876 = vpop.permute.xlu0 %2875
    %2879 = vset.pattern.permute.xlu0 6
    %2880 = vperm.xlu0 %2879, %v2872
    %v2881 = vpop.permute.xlu0 %2880
    %v2883 = vmul.f32 %v2876, %v1127
    %v2884 = vmul.f32 %v2881, %v1127
    %2885 = vset.pattern.permute.xlu0 7
    %2886 = vperm.xlu0 %2885, %v2871
    %v2887 = vpop.permute.xlu0 %2886
    %2889 = vset.pattern.permute.xlu0 7
    %2890 = vperm.xlu0 %2889, %v2872
    %v2891 = vpop.permute.xlu0 %2890
    %v2893 = vmul.f32 %v2887, %v1141
    %v2894 = vmul.f32 %v2891, %v1141
    %v2895 = vadd.f32 %v2883, %v2893
    %v2896 = vadd.f32 %v2884, %v2894
    %2898 = vset.pattern.permute.xlu0 6
    %2899 = vperm.xlu0 %2898, %v2793
    %v2900 = vpop.permute.xlu0 %2899
    %2903 = vset.pattern.permute.xlu0 6
    %2904 = vperm.xlu0 %2903, %v2794
    %v2905 = vpop.permute.xlu0 %2904
    %v2907 = vmul.f32 %v2900, %v1149
    %v2908 = vmul.f32 %v2905, %v1149
    %2909 = vset.pattern.permute.xlu0 7
    %2910 = vperm.xlu0 %2909, %v2793
    %v2911 = vpop.permute.xlu0 %2910
    %2913 = vset.pattern.permute.xlu0 7
    %2914 = vperm.xlu0 %2913, %v2794
    %v2915 = vpop.permute.xlu0 %2914
    %v2917 = vmul.f32 %v2911, %v1154
    %v2918 = vmul.f32 %v2915, %v1154
    %v2919 = vadd.f32 %v2907, %v2917
    %v2920 = vadd.f32 %v2908, %v2918
    %v2921 = vadd.f32 %v2895, %v2919
    %v2922 = vadd.f32 %v2896, %v2920
    %v2923 = vadd.f32 %v2921, %v1162
    %v2924 = vadd.f32 %v2922, %v1162
    %v2925 = vmul.f32 %v2923, 0.5
    %v2926 = vmul.f32 %v2924, 0.5
    %v2927 = vsel %vm1054, %v2923, %v2925
    %v2928 = vsel %vm1054, %v2924, %v2926
    %v2929 = vtanh.pop %v2927
    %v2930 = vtanh.pop %v2928
    %v2931 = vadd.f32 %v2929, 1.0
    %v2932 = vadd.f32 %v2930, 1.0
    %v2933 = vmul.f32 %v2931, 0.5
    %v2934 = vmul.f32 %v2932, 0.5
    %v2935 = vsel %vm1054, %v2929, %v2933
    %v2936 = vsel %vm1054, %v2930, %v2934
    %v2937 = vmul.f32 %v2935, %v2781
    %v2938 = vmul.f32 %v2936, %v2782
    %2941 = vrot.lane.b32.xlu0 %v2935, 124
    %v2942 = vpop.permute.xlu0 %2941
    %2943 = vrot.lane.b32.xlu0 %v2936, 124
    %v2944 = vpop.permute.xlu0 %2943
    %v2947 = vmul.f32 %v2935, %v2942
    %v2948 = vmul.f32 %v2936, %v2944
    %2951 = vrot.lane.b32.xlu0 %v2947, 2
    %v2952 = vpop.permute.xlu0 %2951
    %2953 = vrot.lane.b32.xlu0 %v2948, 2
    %v2954 = vpop.permute.xlu0 %2953
    %v2957 = vadd.f32 %v2937, %v2952
    %v2958 = vadd.f32 %v2938, %v2954
    %v2959 = vtanh.pop %v2957
    %v2960 = vtanh.pop %v2958
    %2963 = vrot.lane.b32.xlu0 %v2959, 4
    %v2964 = vpop.permute.xlu0 %2963
    %2965 = vrot.lane.b32.xlu0 %v2960, 4
    %v2966 = vpop.permute.xlu0 %2965
    %v2969 = vmul.f32 %v2935, %v2964
    %v2970 = vmul.f32 %v2936, %v2966
    %2971 = vrot.lane.b32.xlu0 %v1209, 122
    %v2972 = vpop.permute.xlu0 %2971
    %2973 = vrot.lane.b32.xlu0 %v1210, 122
    %v2974 = vpop.permute.xlu0 %2973
    %2977 = vrot.lane.b32.xlu0 %v1385, 124
    %v2978 = vpop.permute.xlu0 %2977
    %2979 = vrot.lane.b32.xlu0 %v1386, 124
    %v2980 = vpop.permute.xlu0 %2979
    %2983 = vrot.lane.b32.xlu0 %v1561, 126
    %v2984 = vpop.permute.xlu0 %2983
    %2985 = vrot.lane.b32.xlu0 %v1562, 126
    %v2986 = vpop.permute.xlu0 %2985
    %2989 = vrot.lane.b32.xlu0 %v1913, 2
    %v2990 = vpop.permute.xlu0 %2989
    %2991 = vrot.lane.b32.xlu0 %v1914, 2
    %v2992 = vpop.permute.xlu0 %2991
    %2995 = vrot.lane.b32.xlu0 %v2089, 4
    %v2996 = vpop.permute.xlu0 %2995
    %2997 = vrot.lane.b32.xlu0 %v2090, 4
    %v2998 = vpop.permute.xlu0 %2997
    %3001 = vrot.lane.b32.xlu0 %v2265, 6
    %v3002 = vpop.permute.xlu0 %3001
    %3003 = vrot.lane.b32.xlu0 %v2266, 6
    %v3004 = vpop.permute.xlu0 %3003
    %3007 = vrot.lane.b32.xlu0 %v2441, 8
    %v3008 = vpop.permute.xlu0 %3007
    %3009 = vrot.lane.b32.xlu0 %v2442, 8
    %v3010 = vpop.permute.xlu0 %3009
    %3013 = vrot.lane.b32.xlu0 %v2617, 10
    %v3014 = vpop.permute.xlu0 %3013
    %3015 = vrot.lane.b32.xlu0 %v2618, 10
    %v3016 = vpop.permute.xlu0 %3015
    %3019 = vrot.lane.b32.xlu0 %v2793, 12
    %v3020 = vpop.permute.xlu0 %3019
    %3021 = vrot.lane.b32.xlu0 %v2794, 12
    %v3022 = vpop.permute.xlu0 %3021
    %vm3025 = vcmask 15360
    %v3026 = vsel %vm3025, %v2972, %v2978
    %v3027 = vsel %vm3025, %v2974, %v2980
    %vm3028 = vcmask 31744
    %v3029 = vsel %vm3028, %v3026, %v2984
    %v3030 = vsel %vm3028, %v3027, %v2986
    %vm3031 = vcmask 48128
    %v3032 = vsel %vm3031, %v3029, %v1737
    %v3033 = vsel %vm3031, %v3030, %v1738
    %v3034 = vsel %vm258, %v3032, %v2990
    %v3035 = vsel %vm258, %v3033, %v2992
    %vm3036 = vcmask 80896
    %v3037 = vsel %vm3036, %v3034, %v2996
    %v3038 = vsel %vm3036, %v3035, %v2998
    %vm3039 = vcmask 97280
    %v3040 = vsel %vm3039, %v3037, %v3002
    %v3041 = vsel %vm3039, %v3038, %v3004
    %vm3042 = vcmask 113664
    %v3043 = vsel %vm3042, %v3040, %v3008
    %v3044 = vsel %vm3042, %v3041, %v3010
    %v3045 = vsel %vm331, %v3043, %v3014
    %v3046 = vsel %vm331, %v3044, %v3016
    %vm3047 = vcmask 146432
    %v3048 = vsel %vm3047, %v3045, %v3020
    %v3049 = vsel %vm3047, %v3046, %v3022
    %v3050 = vld [vmem:[#allocation2 + $0x48] sm:$0xff]
    %v3051 = vld [vmem:[#allocation2 + $0x50] sm:$0xff]
    %v3052 = vld [vmem:[#allocation2 + $0x58] sm:$0xf]
    %v3053 = vld [vmem:[#allocation2 + $0x5c] sm:$0x1]
    %v3054 = vlaneseq
    %v3055 = vshrl.u32 %v3054, 7
    %v3056 = vsub.s32 0, %v3055
    %v3057 = vrot.slane %v3053, %v3056
    %vm3058 = vcmask 162816
    %v3060 = vsel %vm3058, %v3048, 0
    %v3063 = vsel %vm3058, %v3049, 0
    %vm3065 = vcmask 1043456
    %v3067 = vsel %vm3065, %v3052, 0
    %3069 = vmatprep.subr.mxu0 0.0
    %3070 = vmatpush1.msra.mxu0 %v3050
    %3071 = vmatprep.subr.mxu0 0.0
    %3072 = vmatpush1.msra.mxu0 %v3051
    %3073 = vmatprep.subr.mxu0 0.0
    %3074 = vmatpush1.msra.mxu0 %v3067
    %3075 = vmatprep.subr.mxu0 0.0
    %3076 = vmatpush1.msra.mxu0 0.0
    %3077 = vmatprep.subr.mxu0 0.0
    %3078 = vmatpush1.msra.mxu0 0.0
    %3079 = vmatprep.subr.mxu0 0.0
    %3080 = vmatpush1.msra.mxu0 0.0
    %3081 = vmatprep.subr.mxu0 0.0
    %3082 = vmatpush1.msra.mxu0 0.0
    %3083 = vmatprep.subr.mxu0 0.0
    %3084 = vmatpush1.msra.mxu0 0.0
    %3085 = vmatprep.subr.mxu0 0.0
    %3086 = vmatpush1.msra.mxu0 0.0
    %3087 = vmatprep.subr.mxu0 0.0
    %3088 = vmatpush1.msra.mxu0 0.0
    %3089 = vmatprep.subr.mxu0 0.0
    %3090 = vmatpush1.msra.mxu0 0.0
    %3091 = vmatprep.subr.mxu0 0.0
    %3092 = vmatpush1.msra.mxu0 0.0
    %3093 = vmatprep.subr.mxu0 0.0
    %3094 = vmatpush1.msra.mxu0 0.0
    %3095 = vmatprep.subr.mxu0 0.0
    %3096 = vmatpush1.msra.mxu0 0.0
    %3097 = vmatprep.subr.mxu0 0.0
    %3098 = vmatpush1.msra.mxu0 0.0
    %3099 = vmatprep.subr.mxu0 0.0
    %3100 = vmatpush1.msra.mxu0 0.0
    %3101 = vmatprep.subr.mxu0 0.0
    %3102 = vmatpush1.msra.mxu0 0.0
    %3103 = vmatprep.subr.mxu0 0.0
    %3104 = vmatpush1.msra.mxu0 0.0
    %3105 = vmatprep.subr.mxu0 0.0
    %3106 = vmatpush1.msra.mxu0 0.0
    %3107 = vmatprep.subr.mxu0 0.0
    %3108 = vmatpush1.msra.mxu0 0.0
    %3109 = vmatprep.subr.mxu0 0.0
    %3110 = vmatpush1.msra.mxu0 0.0
    %3111 = vmatprep.subr.mxu0 0.0
    %3112 = vmatpush1.msra.mxu0 0.0
    %3113 = vmatprep.subr.mxu0 0.0
    %3114 = vmatpush1.msra.mxu0 0.0
    %3115 = vmatprep.subr.mxu0 0.0
    %3116 = vmatpush1.msra.mxu0 0.0
    %3117 = vmatprep.subr.mxu0 0.0
    %3118 = vmatpush1.msra.mxu0 0.0
    %3119 = vmatprep.subr.mxu0 0.0
    %3120 = vmatpush1.msra.mxu0 0.0
    %3121 = vmatprep.subr.mxu0 0.0
    %3122 = vmatpush1.msra.mxu0 0.0
    %3123 = vmatprep.subr.mxu0 0.0
    %3124 = vmatpush1.msra.mxu0 0.0
    %3125 = vmatprep.subr.mxu0 0.0
    %3126 = vmatpush1.msra.mxu0 0.0
    %3127 = vmatprep.subr.mxu0 0.0
    %3128 = vmatpush1.msra.mxu0 0.0
    %3129 = vmatprep.subr.mxu0 0.0
    %3130 = vmatpush1.msra.mxu0 0.0
    %3131 = vmatprep.subr.mxu0 0.0
    %3132 = vmatpush1.msra.mxu0 0.0
    %3133 = vmatprep.mubr.f32.mxu0 0.0
    %3134 = vmatmul.mubr.f32.gmra.mrb[0].mxu0 %v3060
    %v3135 = vpop.f32.mrb[0].mxu0
    %v3136 = vadd.f32 %v3057, %v3135
    %v3137 = vpop.f32.mrb[0].mxu0
    %3138 = vmatprep.mubr.f32.mxu0 0.0
    %3139 = vmatmul.mubr.f32.gmra.mrb[0].mxu0 %v3063
    %v3140 = vpop.f32.mrb[0].mxu0
    %v3141 = vadd.f32 %v3057, %v3140
    %v3142 = vpop.f32.mrb[0].mxu0
    %3143 = vdwg.mxu0
    %v3144 = vld [vmem:[#allocation2 + $0x60] sm:$0xff]
    %v3145 = vld [vmem:[#allocation2 + $0x68] sm:$0xf]
    %v3146 = vld [vmem:[#allocation2 + $0x6c] sm:$0x1]
    %v3147 = vlaneseq
    %v3148 = vshrl.u32 %v3147, 7
    %v3149 = vsub.s32 0, %v3148
    %v3150 = vrot.slane %v3146, %v3149
    %v3152 = vsel %vm3039, %v3136, 0
    %v3155 = vsel %vm3039, %v3141, 0
    %v3158 = vsel %vm3065, %v3145, 0
    %3160 = vmatprep.subr.mxu0 0.0
    %3161 = vmatpush1.msra.mxu0 %v3144
    %3162 = vmatprep.subr.mxu0 0.0
    %3163 = vmatpush1.msra.mxu0 %v3158
    %3164 = vmatprep.subr.mxu0 0.0
    %3165 = vmatpush1.msra.mxu0 0.0
    %3166 = vmatprep.subr.mxu0 0.0
    %3167 = vmatpush1.msra.mxu0 0.0
    %3168 = vmatprep.subr.mxu0 0.0
    %3169 = vmatpush1.msra.mxu0 0.0
    %3170 = vmatprep.subr.mxu0 0.0
    %3171 = vmatpush1.msra.mxu0 0.0
    %3172 = vmatprep.subr.mxu0 0.0
    %3173 = vmatpush1.msra.mxu0 0.0
    %3174 = vmatprep.subr.mxu0 0.0
    %3175 = vmatpush1.msra.mxu0 0.0
    %3176 = vmatprep.subr.mxu0 0.0
    %3177 = vmatpush1.msra.mxu0 0.0
    %3178 = vmatprep.subr.mxu0 0.0
    %3179 = vmatpush1.msra.mxu0 0.0
    %3180 = vmatprep.subr.mxu0 0.0
    %3181 = vmatpush1.msra.mxu0 0.0
    %3182 = vmatprep.subr.mxu0 0.0
    %3183 = vmatpush1.msra.mxu0 0.0
    %3184 = vmatprep.subr.mxu0 0.0
    %3185 = vmatpush1.msra.mxu0 0.0
    %3186 = vmatprep.subr.mxu0 0.0
    %3187 = vmatpush1.msra.mxu0 0.0
    %3188 = vmatprep.subr.mxu0 0.0
    %3189 = vmatpush1.msra.mxu0 0.0
    %3190 = vmatprep.subr.mxu0 0.0
    %3191 = vmatpush1.msra.mxu0 0.0
    %3192 = vmatprep.subr.mxu0 0.0
    %3193 = vmatpush1.msra.mxu0 0.0
    %3194 = vmatprep.subr.mxu0 0.0
    %3195 = vmatpush1.msra.mxu0 0.0
    %3196 = vmatprep.subr.mxu0 0.0
    %3197 = vmatpush1.msra.mxu0 0.0
    %3198 = vmatprep.subr.mxu0 0.0
    %3199 = vmatpush1.msra.mxu0 0.0
    %3200 = vmatprep.subr.mxu0 0.0
    %3201 = vmatpush1.msra.mxu0 0.0
    %3202 = vmatprep.subr.mxu0 0.0
    %3203 = vmatpush1.msra.mxu0 0.0
    %3204 = vmatprep.subr.mxu0 0.0
    %3205 = vmatpush1.msra.mxu0 0.0
    %3206 = vmatprep.subr.mxu0 0.0
    %3207 = vmatpush1.msra.mxu0 0.0
    %3208 = vmatprep.subr.mxu0 0.0
    %3209 = vmatpush1.msra.mxu0 0.0
    %3210 = vmatprep.subr.mxu0 0.0
    %3211 = vmatpush1.msra.mxu0 0.0
    %3212 = vmatprep.subr.mxu0 0.0
    %3213 = vmatpush1.msra.mxu0 0.0
    %3214 = vmatprep.subr.mxu0 0.0
    %3215 = vmatpush1.msra.mxu0 0.0
    %3216 = vmatprep.subr.mxu0 0.0
    %3217 = vmatpush1.msra.mxu0 0.0
    %3218 = vmatprep.subr.mxu0 0.0
    %3219 = vmatpush1.msra.mxu0 0.0
    %3220 = vmatprep.subr.mxu0 0.0
    %3221 = vmatpush1.msra.mxu0 0.0
    %3222 = vmatprep.subr.mxu0 0.0
    %3223 = vmatpush1.msra.mxu0 0.0
    %3224 = vmatprep.mubr.f32.mxu0 0.0
    %3225 = vmatmul.mubr.f32.gmra.mrb[0].mxu0 %v3152
    %v3226 = vpop.f32.mrb[0].mxu0
    %v3227 = vadd.f32 %v3150, %v3226
    %v3228 = vpop.f32.mrb[0].mxu0
    %3229 = vmatprep.mubr.f32.mxu0 0.0
    %3230 = vmatmul.mubr.f32.gmra.mrb[0].mxu0 %v3155
    %v3231 = vpop.f32.mrb[0].mxu0
    %v3232 = vadd.f32 %v3150, %v3231
    %v3233 = vpop.f32.mrb[0].mxu0
    %3234 = vdwg.mxu0
    %3237 = vrot.lane.b32.xlu0 %v2969, 122
    %v3238 = vpop.permute.xlu0 %3237
    %3239 = vrot.lane.b32.xlu0 %v2970, 122
    %v3240 = vpop.permute.xlu0 %3239
    %v3243 = vmul.f32 %v3227, %v3238
    %v3244 = vmul.f32 %v3232, %v3240
    %v3245 = vsel %vm3025, %v3243, 0.0
    %3246 = vadd.xlane.f32.xlu0 %v3245
    %v3247 = vpop.xlane.xlu0 %3246
    %v3248 = vsel %vm3025, %v3244, 0.0
    %3249 = vadd.xlane.f32.xlu0 %v3248
    %v3250 = vpop.xlane.xlu0 %3249
    %3251 = vrot.lane.b32.xlu0 %v2969, 124
    %v3252 = vpop.permute.xlu0 %3251
    %3253 = vrot.lane.b32.xlu0 %v2970, 124
    %v3254 = vpop.permute.xlu0 %3253
    %v3257 = vmul.f32 %v3227, %v3252
    %v3258 = vmul.f32 %v3232, %v3254
    %3261 = vrot.lane.b32.xlu0 %v3257, 126
    %v3262 = vpop.permute.xlu0 %3261
    %3263 = vrot.lane.b32.xlu0 %v3258, 126
    %v3264 = vpop.permute.xlu0 %3263
    %v3267 = vsel %vm3025, %v3262, 0.0
    %3268 = vadd.xlane.f32.xlu0 %v3267
    %v3269 = vpop.xlane.xlu0 %3268
    %v3270 = vsel %vm3025, %v3264, 0.0
    %3271 = vadd.xlane.f32.xlu0 %v3270
    %v3272 = vpop.xlane.xlu0 %3271
    %vm3273 = vcmask 7168
    %v3274 = vsel %vm3273, %v3247, %v3269
    %v3275 = vsel %vm3273, %v3250, %v3272
    %v3276 = vxor.u32 %v3274, 2147483648
    %v3277 = vxor.u32 %v3275, 2147483648
    %v3278 = vmul.f32 %v3276, 1.442695
    %v3279 = vpow.pop %v3278
    %v3280 = vmul.f32 %v3277, 1.442695
    %v3281 = vpow.pop %v3280
    %v3282 = vadd.f32 %v3279, 1.0
    %v3283 = vadd.f32 %v3281, 1.0
    %v3284 = vrcp.pop %v3282
    %v3285 = vmul.f32 1.0, %v3284
    %v3286 = vrcp.pop %v3283
    %v3287 = vmul.f32 1.0, %v3286
    %3289 = vset.pattern.permute.xlu0 0
    %3290 = vperm.xlu0 %3289, %v3285
    %v3291 = vpop.permute.xlu0 %3290
    %3294 = vset.pattern.permute.xlu0 0
    %3295 = vperm.xlu0 %3294, %v3287
    %v3296 = vpop.permute.xlu0 %3295
    %v3298 = vmul.f32 %v3291, %v3136
    %v3299 = vmul.f32 %v3296, %v3141
    %3300 = vset.pattern.permute.xlu0 1
    %3301 = vperm.xlu0 %3300, %v3285
    %v3302 = vpop.permute.xlu0 %3301
    %3304 = vset.pattern.permute.xlu0 1
    %3305 = vperm.xlu0 %3304, %v3287
    %v3306 = vpop.permute.xlu0 %3305
    %v3308 = vmul.f32 %v3302, %v3136
    %v3309 = vmul.f32 %v3306, %v3141
    %3312 = vrot.lane.b32.xlu0 %v3308, 122
    %v3313 = vpop.permute.xlu0 %3312
    %3314 = vrot.lane.b32.xlu0 %v3309, 122
    %v3315 = vpop.permute.xlu0 %3314
    %v3318 = vadd.f32 %v3298, %v3313
    %v3319 = vadd.f32 %v3299, %v3315
    %v3320 = vld [vmem:[#allocation2 + $0x70] sm:$0x1]
    %v3321 = vsel %vm3031, %v3318, %v2969
    %v3322 = vsel %vm3031, %v3319, %v2970
    %v3323 = vlaneseq
    %v3324 = vshrl.u32 %v3323, 7
    %v3325 = vsub.s32 0, %v3324
    %v3326 = vrot.slane %v3320, %v3325
    %v3327 = vmul.f32 %v3321, %v3326
    %v3328 = vmul.f32 %v3322, %v3326
    %v3329 = vsel %vm258, %v3327, 0.0
    %3330 = vadd.xlane.f32.xlu0 %v3329
    %v3331 = vpop.xlane.xlu0 %3330
    %v3332 = vsel %vm258, %v3328, 0.0
    %3333 = vadd.xlane.f32.xlu0 %v3332
    %v3334 = vpop.xlane.xlu0 %3333
    %v3335 = vadd.f32 %v3331, %v3326
    %v3336 = vadd.f32 %v3334, %v3326
    %3339 = vrot.lane.b32.xlu0 %v3335, 120
    %v3340 = vpop.permute.xlu0 %3339
    %3341 = vrot.lane.b32.xlu0 %v3336, 120
    %v3342 = vpop.permute.xlu0 %3341
    %3345 = vst.msk [vmem:[%s5] sm:$0xff] %vm3273, %v3340
    %3346 = vst.msk [vmem:[%s5 + $0x8] sm:$0xff] %vm3273, %v3342
    // Predicated region
    $region30: #{pag_forward.1} parent=1 // pred_check
      _
    $region31: #{pag_forward.1} parent=1 // pred_check_branch
      %3348 = sbr.rel (0) target = $region33
    $region32: #{pag_forward.1} parent=1 // pred_region
      _
    $region33: #{pag_forward.1} parent=1 // pred_fallthru
      _
    // Predicated region
    $region34: #{pag_forward.1} parent=1 // pred_check
      _
    $region35: #{pag_forward.1} parent=1 // pred_check_branch
      %3350 = sbr.rel (0) target = $region37
    $region36: #{pag_forward.1} parent=1 // pred_region
      _
    $region37: #{pag_forward.1} parent=1 // pred_fallthru
      _
    %3351 = vsyncpa [#allocation3], 1
    %3352 = vsyncpa [#allocation4], 1

</llo_original>
